<compile_context>
chip_gen: v5e
topology: v5e:2x2
jax: 0.10.0
libtpu: 0.0.40
codegen_flags: <defaults>
</compile_context>

<pallas_src>
import math
import functools

import jax
import jax.numpy as jnp
from jax.experimental import pallas as pl
from jax.experimental.pallas import tpu as pltpu

# ----------------------- synthetic ViT configuration ------------------------
PATCH = 8          # patch size (real model: 32)
WIDTH = 64         # transformer width (real model: 768)
HEADS = 4          # attention heads (real model: 12)
HEAD_DIM = WIDTH // HEADS
LAYERS = 2         # transformer depth (real model: 12)
MLP_DIM = 4 * WIDTH
EMBED_DIM = 32     # output embedding dim (real model: 512)
LN_EPS = 1e-5

# Row layout of the packed per-layer parameter slab (L, 8, MLP_DIM), lane-padded with zeros.
_ROW_LN1_G, _ROW_LN1_B, _ROW_QKV_B, _ROW_OUT_B = 0, 1, 2, 3
_ROW_LN2_G, _ROW_LN2_B, _ROW_FC1_B, _ROW_FC2_B = 4, 5, 6, 7


# ------------------------------ in-kernel helpers -----------------------------
def _layernorm(x, g, b):
    mu = jnp.mean(x, axis=-1, keepdims=True)
    var = jnp.mean(jnp.square(x - mu), axis=-1, keepdims=True)
    return (x - mu) * jax.lax.rsqrt(var + LN_EPS) * g + b


# ------------------------------- fused ViT kernel ------------------------------
def _vit_encoder_kernel(
    # inputs (all full-array blocks; per-layer arrays indexed by the layer grid axis)
    patches_ref,         # (B*T_pad, patch_dim) bf16  -- per-batch row 0 = CLS slot (zeros)
    pos_cls_ref,         # (B*T_pad, WIDTH) f32       -- pos emb (+class emb in row 0), tiled per batch
    patch_w_ref,         # (patch_dim, WIDTH) bf16
    prepost_ref,         # (4, WIDTH) f32             -- [ln_pre_g, ln_pre_b, ln_post_g, ln_post_b]
    lpack_ref,           # (1, 8, MLP_DIM) f32        -- packed per-layer LN gains/biases + biases
    qkv_w_ref,           # (1, WIDTH, 3*WIDTH) bf16
    out_w_ref,           # (1, WIDTH, WIDTH) bf16
    fc1_w_ref,           # (1, WIDTH, MLP_DIM) bf16
    fc2_w_ref,           # (1, MLP_DIM, WIDTH) bf16
    proj_ref,            # (WIDTH, EMBED_DIM) bf16
    # outputs
    o_ref,               # (B, EMBED_DIM) f32 (lane-dense, 2-D)
    # scratch
    x_vmem,              # (B*T_pad, WIDTH) f32 residual stream, carried across layers
    *, t_real, t_pad, batch,
):
    layer = pl.program_id(0)

    # ---- layer 0: patch embedding + CLS/pos embedding + ln_pre (builds residual stream) ----
    @pl.when(layer == 0)
    def _build_tokens():
        seq = (
            jnp.dot(patches_ref[...], patch_w_ref[...],
                    preferred_element_type=jnp.float32)
            + pos_cls_ref[...]
        )
        x_vmem[...] = _layernorm(seq, prepost_ref[0:1, :], prepost_ref[1:2, :])

    x = x_vmem[...]                                   # (B*T_pad, WIDTH) f32

    # unpack the per-layer packed small parameters (single DMA'd slab)
    pk = lpack_ref[0]                                 # (8, MLP_DIM) f32
    ln1_g = pk[_ROW_LN1_G:_ROW_LN1_G + 1, :WIDTH]
    ln1_b = pk[_ROW_LN1_B:_ROW_LN1_B + 1, :WIDTH]
    qkv_b = pk[_ROW_QKV_B:_ROW_QKV_B + 1, :3 * WIDTH]
    out_b = pk[_ROW_OUT_B:_ROW_OUT_B + 1, :WIDTH]
    ln2_g = pk[_ROW_LN2_G:_ROW_LN2_G + 1, :WIDTH]
    ln2_b = pk[_ROW_LN2_B:_ROW_LN2_B + 1, :WIDTH]
    fc1_b = pk[_ROW_FC1_B:_ROW_FC1_B + 1, :]
    fc2_b = pk[_ROW_FC2_B:_ROW_FC2_B + 1, :WIDTH]

    # ------------------------- multi-head self-attention block -------------------------
    h = _layernorm(x, ln1_g, ln1_b)
    qkv = (
        jnp.dot(h.astype(jnp.bfloat16), qkv_w_ref[0],
                preferred_element_type=jnp.float32)
        + qkv_b
    )                                                 # (B*T_pad, 3*WIDTH) f32
    qkv_bf = qkv.astype(jnp.bfloat16)                 # single bf16 cast for all head slices

    # mask padded key positions (columns >= t_real); same mask for every batch element
    key_mask = jax.lax.broadcasted_iota(jnp.int32, (t_pad, t_pad), 1) < t_real
    scale = 1.0 / math.sqrt(HEAD_DIM)

    # per-batch (attention cannot mix batch elements), per-head score/context matmuls;
    # static unroll is fine at (B=2, HEADS=4).
    ctx_batches = []
    for b in range(batch):
        r0 = b * t_pad
        qkv_blk = qkv_bf[r0:r0 + t_pad, :]            # (T_pad, 3*WIDTH) bf16, static slice
        head_ctx = []
        for hh in range(HEADS):
            lo = hh * HEAD_DIM
            qh = qkv_blk[:, lo:lo + HEAD_DIM]
            kh = qkv_blk[:, WIDTH + lo:WIDTH + lo + HEAD_DIM]
            vh = qkv_blk[:, 2 * WIDTH + lo:2 * WIDTH + lo + HEAD_DIM]

            s = jax.lax.dot_general(                  # q @ k^T on the MXU
                qh, kh, (((1,), (1,)), ((), ())),
                preferred_element_type=jnp.float32) * scale
            s = jnp.where(key_mask, s, -1e30)
            p = jnp.exp(s - jnp.max(s, axis=-1, keepdims=True))
            p = p * pl.reciprocal(jnp.sum(p, axis=-1, keepdims=True), approx=False)
            head_ctx.append(jnp.dot(p.astype(jnp.bfloat16), vh,
                                    preferred_element_type=jnp.float32))
        ctx_batches.append(jnp.concatenate(head_ctx, axis=-1))   # (T_pad, WIDTH)
    ctx = jnp.concatenate(ctx_batches, axis=0)        # (B*T_pad, WIDTH) f32

    # single fused output projection over all batches/heads (K = WIDTH, M = B*T_pad)
    attn = jnp.dot(ctx.astype(jnp.bfloat16), out_w_ref[0],
                   preferred_element_type=jnp.float32) + out_b
    x = x + attn

    # ------------------------------------ MLP block ------------------------------------
    h2 = _layernorm(x, ln2_g, ln2_b)
    h2 = (
        jnp.dot(h2.astype(jnp.bfloat16), fc1_w_ref[0],
                preferred_element_type=jnp.float32)
        + fc1_b
    )
    # QuickGELU: x * sigmoid(1.702 x) == x * 0.5 * (1 + tanh(0.851 x))  (one EUP op, f32)
    h2 = h2 * (0.5 * (jnp.tanh(0.851 * h2) + 1.0))
    x = x + jnp.dot(h2.astype(jnp.bfloat16), fc2_w_ref[0],
                    preferred_element_type=jnp.float32) + fc2_b

    x_vmem[...] = x

    # ---- last layer: CLS pooling, post-LN, final projection (no bias) ----
    @pl.when(layer == pl.num_programs(0) - 1)
    def _pool_and_project():
        cls_rows = jnp.concatenate(
            [x[b * t_pad:b * t_pad + 1, :] for b in range(batch)], axis=0)   # (B, WIDTH)
        pooled = _layernorm(cls_rows, prepost_ref[2:3, :], prepost_ref[3:4, :])
        o_ref[...] = jnp.dot(pooled.astype(jnp.bfloat16), proj_ref[...],
                             preferred_element_type=jnp.float32)


# -------------------------- deterministic parameters --------------------------
def init_params(key, num_patches):
    patch_dim = 3 * PATCH * PATCH
    ks = jax.random.split(key, 8)
    L = LAYERS

    def nrm(k, shape, std, dtype=jnp.float32):
        return (jax.random.normal(k, shape, jnp.float32) * std).astype(dtype)

    return {
        # patch-embed conv (bias=False in CLIP) as a matmul
        "patch_w": nrm(ks[0], (patch_dim, WIDTH), 0.02, jnp.bfloat16),
        "class_emb": nrm(ks[1], (1, WIDTH), 0.02),
        "pos_emb": nrm(ks[2], (num_patches + 1, WIDTH), 0.01),
        "ln_pre_g": jnp.ones((WIDTH,), jnp.float32),
        "ln_pre_b": jnp.zeros((WIDTH,), jnp.float32),
        "ln_post_g": jnp.ones((WIDTH,), jnp.float32),
        "ln_post_b": jnp.zeros((WIDTH,), jnp.float32),
        "proj": nrm(ks[3], (WIDTH, EMBED_DIM), WIDTH ** -0.5, jnp.bfloat16),  # no bias in CLIP
        # per-layer weights stacked on a leading layer axis
        "ln1_g": jnp.ones((L, WIDTH), jnp.float32),
        "ln1_b": jnp.zeros((L, WIDTH), jnp.float32),
        "qkv_w": nrm(ks[4], (L, WIDTH, 3 * WIDTH), 0.02, jnp.bfloat16),
        "qkv_b": jnp.zeros((L, 3 * WIDTH), jnp.float32),
        "out_w": nrm(ks[5], (L, WIDTH, WIDTH), 0.02, jnp.bfloat16),
        "out_b": jnp.zeros((L, WIDTH), jnp.float32),
        "ln2_g": jnp.ones((L, WIDTH), jnp.float32),
        "ln2_b": jnp.zeros((L, WIDTH), jnp.float32),
        "fc1_w": nrm(ks[6], (L, WIDTH, MLP_DIM), 0.02, jnp.bfloat16),
        "fc1_b": jnp.zeros((L, MLP_DIM), jnp.float32),
        "fc2_w": nrm(ks[7], (L, MLP_DIM, WIDTH), 0.02, jnp.bfloat16),
        "fc2_b": jnp.zeros((L, WIDTH), jnp.float32),
    }


def _pack_layer_params(params):
    """Coalesce the 8 small per-layer f32 params into one (L, 8, MLP_DIM) slab (1 DMA/layer)."""
    L = params["qkv_w"].shape[0]
    slab = jnp.zeros((L, 8, MLP_DIM), jnp.float32)
    slab = slab.at[:, _ROW_LN1_G, :WIDTH].set(params["ln1_g"])
    slab = slab.at[:, _ROW_LN1_B, :WIDTH].set(params["ln1_b"])
    slab = slab.at[:, _ROW_QKV_B, :3 * WIDTH].set(params["qkv_b"])
    slab = slab.at[:, _ROW_OUT_B, :WIDTH].set(params["out_b"])
    slab = slab.at[:, _ROW_LN2_G, :WIDTH].set(params["ln2_g"])
    slab = slab.at[:, _ROW_LN2_B, :WIDTH].set(params["ln2_b"])
    slab = slab.at[:, _ROW_FC1_B, :].set(params["fc1_b"])
    slab = slab.at[:, _ROW_FC2_B, :WIDTH].set(params["fc2_b"])
    return slab


# --------------------------------- forward pass -------------------------------
def encode_image(params, vision_inputs):
    """vision_inputs: (B, C, H, W) float32 -> (B, EMBED_DIM) float32."""
    B, C, H, W_img = vision_inputs.shape
    gh, gw = H // PATCH, W_img // PATCH
    P = gh * gw
    patch_dim = C * PATCH * PATCH
    t_real = P + 1
    t_pad = ((t_real + 7) // 8) * 8          # pad sequence to a multiple of 8 sublanes
    bt = B * t_pad

    # conv1 (stride == kernel == PATCH, no bias) == matmul over flattened patches (XLA glue).
    patches = (
        vision_inputs.reshape(B, C, gh, PATCH, gw, PATCH)
        .transpose(0, 2, 4, 1, 3, 5)
        .reshape(B, P, patch_dim)
    )
    # Per batch element: row 0 reserved for the CLS token (zero patch -> zero projection),
    # trailing rows are sequence padding (their keys are masked in every attention layer).
    patches_pad = (
        jnp.pad(patches, ((0, 0), (1, t_pad - t_real), (0, 0)))
        .reshape(bt, patch_dim)
        .astype(jnp.bfloat16)
    )
    # Positional embedding padded to T_pad with the class embedding folded into row 0,
    # tiled across the batch so the whole token stack is one in-kernel matmul + add.
    pos_cls = jnp.zeros((t_pad, WIDTH), jnp.float32)
    pos_cls = pos_cls.at[:t_real].set(params["pos_emb"])
    pos_cls = pos_cls.at[0:1].add(params["class_emb"])
    pos_cls_full = jnp.tile(pos_cls, (B, 1))          # (B*T_pad, WIDTH)

    prepost = jnp.stack(
        [params["ln_pre_g"], params["ln_pre_b"],
         params["ln_post_g"], params["ln_post_b"]], axis=0)   # (4, WIDTH)
    lpack = _pack_layer_params(params)                # (L, 8, MLP_DIM)
    L = lpack.shape[0]

    def _shared(shape):
        nd = len(shape)
        return pl.BlockSpec(shape, lambda l, nd=nd: (0,) * nd)

    def _per_layer(tail):
        nd = len(tail)
        return pl.BlockSpec((1,) + tail, lambda l, nd=nd: (l,) + (0,) * nd)

    in_specs = [
        _shared((bt, patch_dim)),                    # patches_pad
        _shared((bt, WIDTH)),                        # pos_cls_full
        _shared((patch_dim, WIDTH)),                 # patch_w
        _shared((4, WIDTH)),                         # ln_pre / ln_post pack
        _per_layer((8, MLP_DIM)),                    # packed per-layer LN/bias slab
        _per_layer((WIDTH, 3 * WIDTH)),              # qkv_w
        _per_layer((WIDTH, WIDTH)),                  # out_w
        _per_layer((WIDTH, MLP_DIM)),                # fc1_w
        _per_layer((MLP_DIM, WIDTH)),                # fc2_w
        _shared((WIDTH, EMBED_DIM)),                 # proj
    ]
    out_spec = pl.BlockSpec((B, EMBED_DIM), lambda l: (0, 0))

    kernel = functools.partial(_vit_encoder_kernel,
                               t_real=t_real, t_pad=t_pad, batch=B)

    # Grid is (LAYERS,) only: weights are fetched once total, batch is fused into the
    # matmul M dimension.  Layer axis is sequential ("arbitrary").
    # TODO(synk): on v7x (2 TCs) add a leading parallel axis of size 2 with B/2 sequences
    # per core once B is large enough to keep M reasonable per core.
    out = pl.pallas_call(
        kernel,
        out_shape=jax.ShapeDtypeStruct((B, EMBED_DIM), jnp.float32),
        grid_spec=pltpu.PrefetchScalarGridSpec(
            num_scalar_prefetch=0,
            grid=(L,),
            in_specs=in_specs,
            out_specs=out_spec,
            scratch_shapes=[pltpu.VMEM((bt, WIDTH), jnp.float32)],
        ),
        compiler_params=pltpu.CompilerParams(
            dimension_semantics=("arbitrary",)),
    )(
        patches_pad, pos_cls_full, params["patch_w"],
        prepost, lpack,
        params["qkv_w"], params["out_w"],
        params["fc1_w"], params["fc2_w"],
        params["proj"],
    )
    return out


# ------------------------------------ main ------------------------------------
if __name__ == "__main__":
    key = jax.random.PRNGKey(0)
    k_param, k_img = jax.random.split(key)

    B, C, H, W_img = 2, 3, 32, 32        # small synthetic shapes (NCHW, like PyTorch)
    num_patches = (H // PATCH) * (W_img // PATCH)

    params = init_params(k_param, num_patches)
    vision_inputs = jax.random.normal(k_img, (B, C, H, W_img), jnp.float32)

    feats = jax.block_until_ready(encode_image(params, vision_inputs))

    assert feats.shape == (B, EMBED_DIM), feats.shape
    assert feats.dtype == jnp.float32
    assert bool(jnp.all(jnp.isfinite(feats)))
    print("KERNEL_OK")
</pallas_src>

<mosaic_0001>
module attributes {stable_mosaic.version = 11 : i64} {
  func.func @_vit_encoder_kernel(%arg0: i32, %arg1: memref<48x192xbf16, #tpu.memory_space<vmem>>, %arg2: memref<48x64xf32, #tpu.memory_space<vmem>>, %arg3: memref<192x64xbf16, #tpu.memory_space<vmem>>, %arg4: memref<4x64xf32, #tpu.memory_space<vmem>>, %arg5: memref<1x8x256xf32, #tpu.memory_space<vmem>>, %arg6: memref<1x64x192xbf16, #tpu.memory_space<vmem>>, %arg7: memref<1x64x64xbf16, #tpu.memory_space<vmem>>, %arg8: memref<1x64x256xbf16, #tpu.memory_space<vmem>>, %arg9: memref<1x256x64xbf16, #tpu.memory_space<vmem>>, %arg10: memref<64x32xbf16, #tpu.memory_space<vmem>>, %arg11: memref<2x32xf32, #tpu.memory_space<vmem>>, %arg12: memref<48x64xf32, #tpu.memory_space<vmem>>) attributes {dimension_semantics = [#tpu.dimension_semantics<arbitrary>], iteration_bounds = array<i64: 2>, scalar_prefetch = 0 : i64, scratch_operands = 1 : i64, tpu.core_type = #tpu.core_type<tc>, window_params = [{pipeline_mode = #tpu.pipeline_mode<synchronous>, transform_indices = @transform_0, window_bounds = array<i64: 48, 192>}, {pipeline_mode = #tpu.pipeline_mode<synchronous>, transform_indices = @transform_1, window_bounds = array<i64: 48, 64>}, {pipeline_mode = #tpu.pipeline_mode<synchronous>, transform_indices = @transform_2, window_bounds = array<i64: 192, 64>}, {pipeline_mode = #tpu.pipeline_mode<synchronous>, transform_indices = @transform_3, window_bounds = array<i64: 4, 64>}, {transform_indices = @transform_4, window_bounds = array<i64: 1, 8, 256>}, {transform_indices = @transform_5, window_bounds = array<i64: 1, 64, 192>}, {transform_indices = @transform_6, window_bounds = array<i64: 1, 64, 64>}, {transform_indices = @transform_7, window_bounds = array<i64: 1, 64, 256>}, {transform_indices = @transform_8, window_bounds = array<i64: 1, 256, 64>}, {pipeline_mode = #tpu.pipeline_mode<synchronous>, transform_indices = @transform_9, window_bounds = array<i64: 64, 32>}, {pipeline_mode = #tpu.pipeline_mode<synchronous>, transform_indices = @transform_10, window_bounds = array<i64: 2, 32>}]} {
    %c0_i32 = arith.constant 0 : i32
    %0 = arith.cmpi eq, %arg0, %c0_i32 : i32
    %1 = arith.extui %0 : i1 to i32
    %c0_i32_0 = arith.constant 0 : i32
    %2 = arith.cmpi ne, %1, %c0_i32_0 : i32
    scf.if %2 {
      %c0_84 = arith.constant 0 : index
      %c0_85 = arith.constant 0 : index
      %265 = vector.load %arg1[%c0_84, %c0_85] : memref<48x192xbf16, #tpu.memory_space<vmem>>, vector<48x192xbf16>
      %c0_86 = arith.constant 0 : index
      %c0_87 = arith.constant 0 : index
      %266 = vector.load %arg3[%c0_86, %c0_87] : memref<192x64xbf16, #tpu.memory_space<vmem>>, vector<192x64xbf16>
      %cst_88 = arith.constant dense<0.000000e+00> : vector<48x64xf32>
      %267 = tpu.matmul %265, %266, %cst_88 {dimension_numbers = #tpu.dot_dimension_numbers<[1], [0], [0], [1], [0, 0, 1, 1], [], []>} : vector<48x192xbf16>, vector<192x64xbf16>, vector<48x64xf32> -> vector<48x64xf32>
      %c0_89 = arith.constant 0 : index
      %c0_90 = arith.constant 0 : index
      %268 = vector.load %arg2[%c0_89, %c0_90] : memref<48x64xf32, #tpu.memory_space<vmem>>, vector<48x64xf32>
      %269 = arith.addf %267, %268 : vector<48x64xf32>
      %c0_91 = arith.constant 0 : index
      %c0_92 = arith.constant 0 : index
      %270 = vector.load %arg4[%c0_91, %c0_92] : memref<4x64xf32, #tpu.memory_space<vmem>>, vector<1x64xf32>
      %c1 = arith.constant 1 : index
      %c0_93 = arith.constant 0 : index
      %271 = vector.load %arg4[%c1, %c0_93] : memref<4x64xf32, #tpu.memory_space<vmem>>, vector<1x64xf32>
      %cst_94 = arith.constant dense<0.000000e+00> : vector<48xf32>
      %272 = vector.multi_reduction <add>, %269, %cst_94 [1] : vector<48x64xf32> to vector<48xf32>
      %273 = vector.shape_cast %272 : vector<48xf32> to vector<48x1xf32>
      %cst_95 = arith.constant 6.400000e+01 : f32
      %274 = vector.broadcast %cst_95 : f32 to vector<48x1xf32>
      %275 = arith.divf %273, %274 : vector<48x1xf32>
      %276 = vector.broadcast %275 : vector<48x1xf32> to vector<48x64xf32>
      %277 = arith.subf %269, %276 : vector<48x64xf32>
      %278 = arith.mulf %277, %277 : vector<48x64xf32>
      %cst_96 = arith.constant dense<0.000000e+00> : vector<48xf32>
      %279 = vector.multi_reduction <add>, %278, %cst_96 [1] : vector<48x64xf32> to vector<48xf32>
      %280 = vector.shape_cast %279 : vector<48xf32> to vector<48x1xf32>
      %cst_97 = arith.constant 6.400000e+01 : f32
      %281 = vector.broadcast %cst_97 : f32 to vector<48x1xf32>
      %282 = arith.divf %280, %281 : vector<48x1xf32>
      %283 = vector.broadcast %275 : vector<48x1xf32> to vector<48x64xf32>
      %284 = arith.subf %269, %283 : vector<48x64xf32>
      %cst_98 = arith.constant 9.99999974E-6 : f32
      %285 = vector.broadcast %cst_98 : f32 to vector<48x1xf32>
      %286 = arith.addf %282, %285 : vector<48x1xf32>
      %287 = math.rsqrt %286 : vector<48x1xf32>
      %288 = vector.broadcast %287 : vector<48x1xf32> to vector<48x64xf32>
      %289 = arith.mulf %284, %288 : vector<48x64xf32>
      %290 = vector.broadcast %270 : vector<1x64xf32> to vector<48x64xf32>
      %291 = arith.mulf %289, %290 : vector<48x64xf32>
      %292 = vector.broadcast %271 : vector<1x64xf32> to vector<48x64xf32>
      %293 = arith.addf %291, %292 : vector<48x64xf32>
      %c0_99 = arith.constant 0 : index
      %c0_100 = arith.constant 0 : index
      %294 = vector.load %arg12[%c0_99, %c0_100] : memref<48x64xf32, #tpu.memory_space<vmem>>, vector<48x64xf32>
      tpu.vector_store %arg12[%c0_99, %c0_100], %293 {strides = array<i32>} : memref<48x64xf32, #tpu.memory_space<vmem>>, vector<48x64xf32>,
    } else {
    }
    %c0 = arith.constant 0 : index
    %c0_1 = arith.constant 0 : index
    %3 = vector.load %arg12[%c0, %c0_1] : memref<48x64xf32, #tpu.memory_space<vmem>>, vector<48x64xf32>
    %c0_2 = arith.constant 0 : index
    %c0_3 = arith.constant 0 : index
    %c0_4 = arith.constant 0 : index
    %4 = vector.load %arg5[%c0_2, %c0_3, %c0_4] : memref<1x8x256xf32, #tpu.memory_space<vmem>>, vector<1x8x256xf32>
    %5 = vector.shape_cast %4 : vector<1x8x256xf32> to vector<8x256xf32>
    %6 = vector.extract_strided_slice %5 {offsets = [0, 0], sizes = [1, 64], strides = [1, 1]} : vector<8x256xf32> to vector<1x64xf32>
    %7 = vector.extract_strided_slice %5 {offsets = [1, 0], sizes = [1, 64], strides = [1, 1]} : vector<8x256xf32> to vector<1x64xf32>
    %8 = vector.extract_strided_slice %5 {offsets = [2, 0], sizes = [1, 192], strides = [1, 1]} : vector<8x256xf32> to vector<1x192xf32>
    %9 = vector.extract_strided_slice %5 {offsets = [3, 0], sizes = [1, 64], strides = [1, 1]} : vector<8x256xf32> to vector<1x64xf32>
    %10 = vector.extract_strided_slice %5 {offsets = [4, 0], sizes = [1, 64], strides = [1, 1]} : vector<8x256xf32> to vector<1x64xf32>
    %11 = vector.extract_strided_slice %5 {offsets = [5, 0], sizes = [1, 64], strides = [1, 1]} : vector<8x256xf32> to vector<1x64xf32>
    %12 = vector.extract_strided_slice %5 {offsets = [6, 0], sizes = [1, 256], strides = [1, 1]} : vector<8x256xf32> to vector<1x256xf32>
    %13 = vector.extract_strided_slice %5 {offsets = [7, 0], sizes = [1, 64], strides = [1, 1]} : vector<8x256xf32> to vector<1x64xf32>
    %cst = arith.constant dense<0.000000e+00> : vector<48xf32>
    %14 = vector.multi_reduction <add>, %3, %cst [1] : vector<48x64xf32> to vector<48xf32>
    %15 = vector.shape_cast %14 : vector<48xf32> to vector<48x1xf32>
    %cst_5 = arith.constant 6.400000e+01 : f32
    %16 = vector.broadcast %cst_5 : f32 to vector<48x1xf32>
    %17 = arith.divf %15, %16 : vector<48x1xf32>
    %18 = vector.broadcast %17 : vector<48x1xf32> to vector<48x64xf32>
    %19 = arith.subf %3, %18 : vector<48x64xf32>
    %20 = arith.mulf %19, %19 : vector<48x64xf32>
    %cst_6 = arith.constant dense<0.000000e+00> : vector<48xf32>
    %21 = vector.multi_reduction <add>, %20, %cst_6 [1] : vector<48x64xf32> to vector<48xf32>
    %22 = vector.shape_cast %21 : vector<48xf32> to vector<48x1xf32>
    %cst_7 = arith.constant 6.400000e+01 : f32
    %23 = vector.broadcast %cst_7 : f32 to vector<48x1xf32>
    %24 = arith.divf %22, %23 : vector<48x1xf32>
    %25 = vector.broadcast %17 : vector<48x1xf32> to vector<48x64xf32>
    %26 = arith.subf %3, %25 : vector<48x64xf32>
    %cst_8 = arith.constant 9.99999974E-6 : f32
    %27 = vector.broadcast %cst_8 : f32 to vector<48x1xf32>
    %28 = arith.addf %24, %27 : vector<48x1xf32>
    %29 = math.rsqrt %28 : vector<48x1xf32>
    %30 = vector.broadcast %29 : vector<48x1xf32> to vector<48x64xf32>
    %31 = arith.mulf %26, %30 : vector<48x64xf32>
    %32 = vector.broadcast %6 : vector<1x64xf32> to vector<48x64xf32>
    %33 = arith.mulf %31, %32 : vector<48x64xf32>
    %34 = vector.broadcast %7 : vector<1x64xf32> to vector<48x64xf32>
    %35 = arith.addf %33, %34 : vector<48x64xf32>
    %36 = arith.truncf %35 : vector<48x64xf32> to vector<48x64xbf16>
    %c0_9 = arith.constant 0 : index
    %c0_10 = arith.constant 0 : index
    %c0_11 = arith.constant 0 : index
    %37 = vector.load %arg6[%c0_9, %c0_10, %c0_11] : memref<1x64x192xbf16, #tpu.memory_space<vmem>>, vector<1x64x192xbf16>
    %38 = vector.shape_cast %37 : vector<1x64x192xbf16> to vector<64x192xbf16>
    %cst_12 = arith.constant dense<0.000000e+00> : vector<48x192xf32>
    %39 = tpu.matmul %36, %38, %cst_12 {dimension_numbers = #tpu.dot_dimension_numbers<[1], [0], [0], [1], [0, 0, 1, 1], [], []>} : vector<48x64xbf16>, vector<64x192xbf16>, vector<48x192xf32> -> vector<48x192xf32>
    %40 = vector.broadcast %8 : vector<1x192xf32> to vector<48x192xf32>
    %41 = arith.addf %39, %40 : vector<48x192xf32>
    %42 = arith.truncf %41 : vector<48x192xf32> to vector<48x192xbf16>
    %43 = tpu.iota {dimensions = array<i32: 1>} : vector<24x24xi32>
    %c17_i32 = arith.constant 17 : i32
    %44 = vector.broadcast %c17_i32 : i32 to vector<24x24xi32>
    %45 = arith.cmpi slt, %43, %44 : vector<24x24xi32>
    %46 = vector.extract_strided_slice %42 {offsets = [0, 0], sizes = [24, 192], strides = [1, 1]} : vector<48x192xbf16> to vector<24x192xbf16>
    %47 = vector.extract_strided_slice %46 {offsets = [0, 0], sizes = [24, 16], strides = [1, 1]} : vector<24x192xbf16> to vector<24x16xbf16>
    %48 = vector.extract_strided_slice %46 {offsets = [0, 64], sizes = [24, 16], strides = [1, 1]} : vector<24x192xbf16> to vector<24x16xbf16>
    %49 = vector.extract_strided_slice %46 {offsets = [0, 128], sizes = [24, 16], strides = [1, 1]} : vector<24x192xbf16> to vector<24x16xbf16>
    %cst_13 = arith.constant dense<0.000000e+00> : vector<24x24xf32>
    %50 = tpu.matmul %47, %48, %cst_13 {dimension_numbers = #tpu.dot_dimension_numbers<[1], [1], [0], [0], [0, 0, 1, 0], [], []>} : vector<24x16xbf16>, vector<24x16xbf16>, vector<24x24xf32> -> vector<24x24xf32>
    %cst_14 = arith.constant 2.500000e-01 : f32
    %51 = vector.broadcast %cst_14 : f32 to vector<24x24xf32>
    %52 = arith.mulf %50, %51 : vector<24x24xf32>
    %cst_15 = arith.constant -1.000000e+30 : f32
    %53 = vector.broadcast %cst_15 : f32 to vector<24x24xf32>
    %54 = arith.select %45, %52, %53 : vector<24x24xi1>, vector<24x24xf32>
    %cst_16 = arith.constant dense<0xFF800000> : vector<24xf32>
    %55 = vector.multi_reduction <maximumf>, %54, %cst_16 [1] : vector<24x24xf32> to vector<24xf32>
    %56 = vector.shape_cast %55 : vector<24xf32> to vector<24x1xf32>
    %57 = vector.broadcast %56 : vector<24x1xf32> to vector<24x24xf32>
    %58 = arith.subf %54, %57 : vector<24x24xf32>
    %59 = math.exp %58 : vector<24x24xf32>
    %cst_17 = arith.constant dense<0.000000e+00> : vector<24xf32>
    %60 = vector.multi_reduction <add>, %59, %cst_17 [1] : vector<24x24xf32> to vector<24xf32>
    %61 = vector.shape_cast %60 : vector<24xf32> to vector<24x1xf32>
    %62 = tpu.reciprocal %61 : vector<24x1xf32> -> vector<24x1xf32>
    %63 = vector.broadcast %62 : vector<24x1xf32> to vector<24x24xf32>
    %64 = arith.mulf %59, %63 : vector<24x24xf32>
    %65 = arith.truncf %64 : vector<24x24xf32> to vector<24x24xbf16>
    %cst_18 = arith.constant dense<0.000000e+00> : vector<24x16xf32>
    %66 = tpu.matmul %65, %49, %cst_18 {dimension_numbers = #tpu.dot_dimension_numbers<[1], [0], [0], [1], [0, 0, 1, 1], [], []>} : vector<24x24xbf16>, vector<24x16xbf16>, vector<24x16xf32> -> vector<24x16xf32>
    %67 = vector.extract_strided_slice %46 {offsets = [0, 16], sizes = [24, 16], strides = [1, 1]} : vector<24x192xbf16> to vector<24x16xbf16>
    %68 = vector.extract_strided_slice %46 {offsets = [0, 80], sizes = [24, 16], strides = [1, 1]} : vector<24x192xbf16> to vector<24x16xbf16>
    %69 = vector.extract_strided_slice %46 {offsets = [0, 144], sizes = [24, 16], strides = [1, 1]} : vector<24x192xbf16> to vector<24x16xbf16>
    %cst_19 = arith.constant dense<0.000000e+00> : vector<24x24xf32>
    %70 = tpu.matmul %67, %68, %cst_19 {dimension_numbers = #tpu.dot_dimension_numbers<[1], [1], [0], [0], [0, 0, 1, 0], [], []>} : vector<24x16xbf16>, vector<24x16xbf16>, vector<24x24xf32> -> vector<24x24xf32>
    %cst_20 = arith.constant 2.500000e-01 : f32
    %71 = vector.broadcast %cst_20 : f32 to vector<24x24xf32>
    %72 = arith.mulf %70, %71 : vector<24x24xf32>
    %cst_21 = arith.constant -1.000000e+30 : f32
    %73 = vector.broadcast %cst_21 : f32 to vector<24x24xf32>
    %74 = arith.select %45, %72, %73 : vector<24x24xi1>, vector<24x24xf32>
    %cst_22 = arith.constant dense<0xFF800000> : vector<24xf32>
    %75 = vector.multi_reduction <maximumf>, %74, %cst_22 [1] : vector<24x24xf32> to vector<24xf32>
    %76 = vector.shape_cast %75 : vector<24xf32> to vector<24x1xf32>
    %77 = vector.broadcast %76 : vector<24x1xf32> to vector<24x24xf32>
    %78 = arith.subf %74, %77 : vector<24x24xf32>
    %79 = math.exp %78 : vector<24x24xf32>
    %cst_23 = arith.constant dense<0.000000e+00> : vector<24xf32>
    %80 = vector.multi_reduction <add>, %79, %cst_23 [1] : vector<24x24xf32> to vector<24xf32>
    %81 = vector.shape_cast %80 : vector<24xf32> to vector<24x1xf32>
    %82 = tpu.reciprocal %81 : vector<24x1xf32> -> vector<24x1xf32>
    %83 = vector.broadcast %82 : vector<24x1xf32> to vector<24x24xf32>
    %84 = arith.mulf %79, %83 : vector<24x24xf32>
    %85 = arith.truncf %84 : vector<24x24xf32> to vector<24x24xbf16>
    %cst_24 = arith.constant dense<0.000000e+00> : vector<24x16xf32>
    %86 = tpu.matmul %85, %69, %cst_24 {dimension_numbers = #tpu.dot_dimension_numbers<[1], [0], [0], [1], [0, 0, 1, 1], [], []>} : vector<24x24xbf16>, vector<24x16xbf16>, vector<24x16xf32> -> vector<24x16xf32>
    %87 = vector.extract_strided_slice %46 {offsets = [0, 32], sizes = [24, 16], strides = [1, 1]} : vector<24x192xbf16> to vector<24x16xbf16>
    %88 = vector.extract_strided_slice %46 {offsets = [0, 96], sizes = [24, 16], strides = [1, 1]} : vector<24x192xbf16> to vector<24x16xbf16>
    %89 = vector.extract_strided_slice %46 {offsets = [0, 160], sizes = [24, 16], strides = [1, 1]} : vector<24x192xbf16> to vector<24x16xbf16>
    %cst_25 = arith.constant dense<0.000000e+00> : vector<24x24xf32>
    %90 = tpu.matmul %87, %88, %cst_25 {dimension_numbers = #tpu.dot_dimension_numbers<[1], [1], [0], [0], [0, 0, 1, 0], [], []>} : vector<24x16xbf16>, vector<24x16xbf16>, vector<24x24xf32> -> vector<24x24xf32>
    %cst_26 = arith.constant 2.500000e-01 : f32
    %91 = vector.broadcast %cst_26 : f32 to vector<24x24xf32>
    %92 = arith.mulf %90, %91 : vector<24x24xf32>
    %cst_27 = arith.constant -1.000000e+30 : f32
    %93 = vector.broadcast %cst_27 : f32 to vector<24x24xf32>
    %94 = arith.select %45, %92, %93 : vector<24x24xi1>, vector<24x24xf32>
    %cst_28 = arith.constant dense<0xFF800000> : vector<24xf32>
    %95 = vector.multi_reduction <maximumf>, %94, %cst_28 [1] : vector<24x24xf32> to vector<24xf32>
    %96 = vector.shape_cast %95 : vector<24xf32> to vector<24x1xf32>
    %97 = vector.broadcast %96 : vector<24x1xf32> to vector<24x24xf32>
    %98 = arith.subf %94, %97 : vector<24x24xf32>
    %99 = math.exp %98 : vector<24x24xf32>
    %cst_29 = arith.constant dense<0.000000e+00> : vector<24xf32>
    %100 = vector.multi_reduction <add>, %99, %cst_29 [1] : vector<24x24xf32> to vector<24xf32>
    %101 = vector.shape_cast %100 : vector<24xf32> to vector<24x1xf32>
    %102 = tpu.reciprocal %101 : vector<24x1xf32> -> vector<24x1xf32>
    %103 = vector.broadcast %102 : vector<24x1xf32> to vector<24x24xf32>
    %104 = arith.mulf %99, %103 : vector<24x24xf32>
    %105 = arith.truncf %104 : vector<24x24xf32> to vector<24x24xbf16>
    %cst_30 = arith.constant dense<0.000000e+00> : vector<24x16xf32>
    %106 = tpu.matmul %105, %89, %cst_30 {dimension_numbers = #tpu.dot_dimension_numbers<[1], [0], [0], [1], [0, 0, 1, 1], [], []>} : vector<24x24xbf16>, vector<24x16xbf16>, vector<24x16xf32> -> vector<24x16xf32>
    %107 = vector.extract_strided_slice %46 {offsets = [0, 48], sizes = [24, 16], strides = [1, 1]} : vector<24x192xbf16> to vector<24x16xbf16>
    %108 = vector.extract_strided_slice %46 {offsets = [0, 112], sizes = [24, 16], strides = [1, 1]} : vector<24x192xbf16> to vector<24x16xbf16>
    %109 = vector.extract_strided_slice %46 {offsets = [0, 176], sizes = [24, 16], strides = [1, 1]} : vector<24x192xbf16> to vector<24x16xbf16>
    %cst_31 = arith.constant dense<0.000000e+00> : vector<24x24xf32>
    %110 = tpu.matmul %107, %108, %cst_31 {dimension_numbers = #tpu.dot_dimension_numbers<[1], [1], [0], [0], [0, 0, 1, 0], [], []>} : vector<24x16xbf16>, vector<24x16xbf16>, vector<24x24xf32> -> vector<24x24xf32>
    %cst_32 = arith.constant 2.500000e-01 : f32
    %111 = vector.broadcast %cst_32 : f32 to vector<24x24xf32>
    %112 = arith.mulf %110, %111 : vector<24x24xf32>
    %cst_33 = arith.constant -1.000000e+30 : f32
    %113 = vector.broadcast %cst_33 : f32 to vector<24x24xf32>
    %114 = arith.select %45, %112, %113 : vector<24x24xi1>, vector<24x24xf32>
    %cst_34 = arith.constant dense<0xFF800000> : vector<24xf32>
    %115 = vector.multi_reduction <maximumf>, %114, %cst_34 [1] : vector<24x24xf32> to vector<24xf32>
    %116 = vector.shape_cast %115 : vector<24xf32> to vector<24x1xf32>
    %117 = vector.broadcast %116 : vector<24x1xf32> to vector<24x24xf32>
    %118 = arith.subf %114, %117 : vector<24x24xf32>
    %119 = math.exp %118 : vector<24x24xf32>
    %cst_35 = arith.constant dense<0.000000e+00> : vector<24xf32>
    %120 = vector.multi_reduction <add>, %119, %cst_35 [1] : vector<24x24xf32> to vector<24xf32>
    %121 = vector.shape_cast %120 : vector<24xf32> to vector<24x1xf32>
    %122 = tpu.reciprocal %121 : vector<24x1xf32> -> vector<24x1xf32>
    %123 = vector.broadcast %122 : vector<24x1xf32> to vector<24x24xf32>
    %124 = arith.mulf %119, %123 : vector<24x24xf32>
    %125 = arith.truncf %124 : vector<24x24xf32> to vector<24x24xbf16>
    %cst_36 = arith.constant dense<0.000000e+00> : vector<24x16xf32>
    %126 = tpu.matmul %125, %109, %cst_36 {dimension_numbers = #tpu.dot_dimension_numbers<[1], [0], [0], [1], [0, 0, 1, 1], [], []>} : vector<24x24xbf16>, vector<24x16xbf16>, vector<24x16xf32> -> vector<24x16xf32>
    %127 = tpu.concatenate %66, %86, %106, %126 in 1 : vector<24x16xf32>, vector<24x16xf32>, vector<24x16xf32>, vector<24x16xf32> -> vector<24x64xf32>
    %128 = vector.extract_strided_slice %42 {offsets = [24, 0], sizes = [24, 192], strides = [1, 1]} : vector<48x192xbf16> to vector<24x192xbf16>
    %129 = vector.extract_strided_slice %128 {offsets = [0, 0], sizes = [24, 16], strides = [1, 1]} : vector<24x192xbf16> to vector<24x16xbf16>
    %130 = vector.extract_strided_slice %128 {offsets = [0, 64], sizes = [24, 16], strides = [1, 1]} : vector<24x192xbf16> to vector<24x16xbf16>
    %131 = vector.extract_strided_slice %128 {offsets = [0, 128], sizes = [24, 16], strides = [1, 1]} : vector<24x192xbf16> to vector<24x16xbf16>
    %cst_37 = arith.constant dense<0.000000e+00> : vector<24x24xf32>
    %132 = tpu.matmul %129, %130, %cst_37 {dimension_numbers = #tpu.dot_dimension_numbers<[1], [1], [0], [0], [0, 0, 1, 0], [], []>} : vector<24x16xbf16>, vector<24x16xbf16>, vector<24x24xf32> -> vector<24x24xf32>
    %cst_38 = arith.constant 2.500000e-01 : f32
    %133 = vector.broadcast %cst_38 : f32 to vector<24x24xf32>
    %134 = arith.mulf %132, %133 : vector<24x24xf32>
    %cst_39 = arith.constant -1.000000e+30 : f32
    %135 = vector.broadcast %cst_39 : f32 to vector<24x24xf32>
    %136 = arith.select %45, %134, %135 : vector<24x24xi1>, vector<24x24xf32>
    %cst_40 = arith.constant dense<0xFF800000> : vector<24xf32>
    %137 = vector.multi_reduction <maximumf>, %136, %cst_40 [1] : vector<24x24xf32> to vector<24xf32>
    %138 = vector.shape_cast %137 : vector<24xf32> to vector<24x1xf32>
    %139 = vector.broadcast %138 : vector<24x1xf32> to vector<24x24xf32>
    %140 = arith.subf %136, %139 : vector<24x24xf32>
    %141 = math.exp %140 : vector<24x24xf32>
    %cst_41 = arith.constant dense<0.000000e+00> : vector<24xf32>
    %142 = vector.multi_reduction <add>, %141, %cst_41 [1] : vector<24x24xf32> to vector<24xf32>
    %143 = vector.shape_cast %142 : vector<24xf32> to vector<24x1xf32>
    %144 = tpu.reciprocal %143 : vector<24x1xf32> -> vector<24x1xf32>
    %145 = vector.broadcast %144 : vector<24x1xf32> to vector<24x24xf32>
    %146 = arith.mulf %141, %145 : vector<24x24xf32>
    %147 = arith.truncf %146 : vector<24x24xf32> to vector<24x24xbf16>
    %cst_42 = arith.constant dense<0.000000e+00> : vector<24x16xf32>
    %148 = tpu.matmul %147, %131, %cst_42 {dimension_numbers = #tpu.dot_dimension_numbers<[1], [0], [0], [1], [0, 0, 1, 1], [], []>} : vector<24x24xbf16>, vector<24x16xbf16>, vector<24x16xf32> -> vector<24x16xf32>
    %149 = vector.extract_strided_slice %128 {offsets = [0, 16], sizes = [24, 16], strides = [1, 1]} : vector<24x192xbf16> to vector<24x16xbf16>
    %150 = vector.extract_strided_slice %128 {offsets = [0, 80], sizes = [24, 16], strides = [1, 1]} : vector<24x192xbf16> to vector<24x16xbf16>
    %151 = vector.extract_strided_slice %128 {offsets = [0, 144], sizes = [24, 16], strides = [1, 1]} : vector<24x192xbf16> to vector<24x16xbf16>
    %cst_43 = arith.constant dense<0.000000e+00> : vector<24x24xf32>
    %152 = tpu.matmul %149, %150, %cst_43 {dimension_numbers = #tpu.dot_dimension_numbers<[1], [1], [0], [0], [0, 0, 1, 0], [], []>} : vector<24x16xbf16>, vector<24x16xbf16>, vector<24x24xf32> -> vector<24x24xf32>
    %cst_44 = arith.constant 2.500000e-01 : f32
    %153 = vector.broadcast %cst_44 : f32 to vector<24x24xf32>
    %154 = arith.mulf %152, %153 : vector<24x24xf32>
    %cst_45 = arith.constant -1.000000e+30 : f32
    %155 = vector.broadcast %cst_45 : f32 to vector<24x24xf32>
    %156 = arith.select %45, %154, %155 : vector<24x24xi1>, vector<24x24xf32>
    %cst_46 = arith.constant dense<0xFF800000> : vector<24xf32>
    %157 = vector.multi_reduction <maximumf>, %156, %cst_46 [1] : vector<24x24xf32> to vector<24xf32>
    %158 = vector.shape_cast %157 : vector<24xf32> to vector<24x1xf32>
    %159 = vector.broadcast %158 : vector<24x1xf32> to vector<24x24xf32>
    %160 = arith.subf %156, %159 : vector<24x24xf32>
    %161 = math.exp %160 : vector<24x24xf32>
    %cst_47 = arith.constant dense<0.000000e+00> : vector<24xf32>
    %162 = vector.multi_reduction <add>, %161, %cst_47 [1] : vector<24x24xf32> to vector<24xf32>
    %163 = vector.shape_cast %162 : vector<24xf32> to vector<24x1xf32>
    %164 = tpu.reciprocal %163 : vector<24x1xf32> -> vector<24x1xf32>
    %165 = vector.broadcast %164 : vector<24x1xf32> to vector<24x24xf32>
    %166 = arith.mulf %161, %165 : vector<24x24xf32>
    %167 = arith.truncf %166 : vector<24x24xf32> to vector<24x24xbf16>
    %cst_48 = arith.constant dense<0.000000e+00> : vector<24x16xf32>
    %168 = tpu.matmul %167, %151, %cst_48 {dimension_numbers = #tpu.dot_dimension_numbers<[1], [0], [0], [1], [0, 0, 1, 1], [], []>} : vector<24x24xbf16>, vector<24x16xbf16>, vector<24x16xf32> -> vector<24x16xf32>
    %169 = vector.extract_strided_slice %128 {offsets = [0, 32], sizes = [24, 16], strides = [1, 1]} : vector<24x192xbf16> to vector<24x16xbf16>
    %170 = vector.extract_strided_slice %128 {offsets = [0, 96], sizes = [24, 16], strides = [1, 1]} : vector<24x192xbf16> to vector<24x16xbf16>
    %171 = vector.extract_strided_slice %128 {offsets = [0, 160], sizes = [24, 16], strides = [1, 1]} : vector<24x192xbf16> to vector<24x16xbf16>
    %cst_49 = arith.constant dense<0.000000e+00> : vector<24x24xf32>
    %172 = tpu.matmul %169, %170, %cst_49 {dimension_numbers = #tpu.dot_dimension_numbers<[1], [1], [0], [0], [0, 0, 1, 0], [], []>} : vector<24x16xbf16>, vector<24x16xbf16>, vector<24x24xf32> -> vector<24x24xf32>
    %cst_50 = arith.constant 2.500000e-01 : f32
    %173 = vector.broadcast %cst_50 : f32 to vector<24x24xf32>
    %174 = arith.mulf %172, %173 : vector<24x24xf32>
    %cst_51 = arith.constant -1.000000e+30 : f32
    %175 = vector.broadcast %cst_51 : f32 to vector<24x24xf32>
    %176 = arith.select %45, %174, %175 : vector<24x24xi1>, vector<24x24xf32>
    %cst_52 = arith.constant dense<0xFF800000> : vector<24xf32>
    %177 = vector.multi_reduction <maximumf>, %176, %cst_52 [1] : vector<24x24xf32> to vector<24xf32>
    %178 = vector.shape_cast %177 : vector<24xf32> to vector<24x1xf32>
    %179 = vector.broadcast %178 : vector<24x1xf32> to vector<24x24xf32>
    %180 = arith.subf %176, %179 : vector<24x24xf32>
    %181 = math.exp %180 : vector<24x24xf32>
    %cst_53 = arith.constant dense<0.000000e+00> : vector<24xf32>
    %182 = vector.multi_reduction <add>, %181, %cst_53 [1] : vector<24x24xf32> to vector<24xf32>
    %183 = vector.shape_cast %182 : vector<24xf32> to vector<24x1xf32>
    %184 = tpu.reciprocal %183 : vector<24x1xf32> -> vector<24x1xf32>
    %185 = vector.broadcast %184 : vector<24x1xf32> to vector<24x24xf32>
    %186 = arith.mulf %181, %185 : vector<24x24xf32>
    %187 = arith.truncf %186 : vector<24x24xf32> to vector<24x24xbf16>
    %cst_54 = arith.constant dense<0.000000e+00> : vector<24x16xf32>
    %188 = tpu.matmul %187, %171, %cst_54 {dimension_numbers = #tpu.dot_dimension_numbers<[1], [0], [0], [1], [0, 0, 1, 1], [], []>} : vector<24x24xbf16>, vector<24x16xbf16>, vector<24x16xf32> -> vector<24x16xf32>
    %189 = vector.extract_strided_slice %128 {offsets = [0, 48], sizes = [24, 16], strides = [1, 1]} : vector<24x192xbf16> to vector<24x16xbf16>
    %190 = vector.extract_strided_slice %128 {offsets = [0, 112], sizes = [24, 16], strides = [1, 1]} : vector<24x192xbf16> to vector<24x16xbf16>
    %191 = vector.extract_strided_slice %128 {offsets = [0, 176], sizes = [24, 16], strides = [1, 1]} : vector<24x192xbf16> to vector<24x16xbf16>
    %cst_55 = arith.constant dense<0.000000e+00> : vector<24x24xf32>
    %192 = tpu.matmul %189, %190, %cst_55 {dimension_numbers = #tpu.dot_dimension_numbers<[1], [1], [0], [0], [0, 0, 1, 0], [], []>} : vector<24x16xbf16>, vector<24x16xbf16>, vector<24x24xf32> -> vector<24x24xf32>
    %cst_56 = arith.constant 2.500000e-01 : f32
    %193 = vector.broadcast %cst_56 : f32 to vector<24x24xf32>
    %194 = arith.mulf %192, %193 : vector<24x24xf32>
    %cst_57 = arith.constant -1.000000e+30 : f32
    %195 = vector.broadcast %cst_57 : f32 to vector<24x24xf32>
    %196 = arith.select %45, %194, %195 : vector<24x24xi1>, vector<24x24xf32>
    %cst_58 = arith.constant dense<0xFF800000> : vector<24xf32>
    %197 = vector.multi_reduction <maximumf>, %196, %cst_58 [1] : vector<24x24xf32> to vector<24xf32>
    %198 = vector.shape_cast %197 : vector<24xf32> to vector<24x1xf32>
    %199 = vector.broadcast %198 : vector<24x1xf32> to vector<24x24xf32>
    %200 = arith.subf %196, %199 : vector<24x24xf32>
    %201 = math.exp %200 : vector<24x24xf32>
    %cst_59 = arith.constant dense<0.000000e+00> : vector<24xf32>
    %202 = vector.multi_reduction <add>, %201, %cst_59 [1] : vector<24x24xf32> to vector<24xf32>
    %203 = vector.shape_cast %202 : vector<24xf32> to vector<24x1xf32>
    %204 = tpu.reciprocal %203 : vector<24x1xf32> -> vector<24x1xf32>
    %205 = vector.broadcast %204 : vector<24x1xf32> to vector<24x24xf32>
    %206 = arith.mulf %201, %205 : vector<24x24xf32>
    %207 = arith.truncf %206 : vector<24x24xf32> to vector<24x24xbf16>
    %cst_60 = arith.constant dense<0.000000e+00> : vector<24x16xf32>
    %208 = tpu.matmul %207, %191, %cst_60 {dimension_numbers = #tpu.dot_dimension_numbers<[1], [0], [0], [1], [0, 0, 1, 1], [], []>} : vector<24x24xbf16>, vector<24x16xbf16>, vector<24x16xf32> -> vector<24x16xf32>
    %209 = tpu.concatenate %148, %168, %188, %208 in 1 : vector<24x16xf32>, vector<24x16xf32>, vector<24x16xf32>, vector<24x16xf32> -> vector<24x64xf32>
    %210 = tpu.concatenate %127, %209 in 0 : vector<24x64xf32>, vector<24x64xf32> -> vector<48x64xf32>
    %211 = arith.truncf %210 : vector<48x64xf32> to vector<48x64xbf16>
    %c0_61 = arith.constant 0 : index
    %c0_62 = arith.constant 0 : index
    %c0_63 = arith.constant 0 : index
    %212 = vector.load %arg7[%c0_61, %c0_62, %c0_63] : memref<1x64x64xbf16, #tpu.memory_space<vmem>>, vector<1x64x64xbf16>
    %213 = vector.shape_cast %212 : vector<1x64x64xbf16> to vector<64x64xbf16>
    %cst_64 = arith.constant dense<0.000000e+00> : vector<48x64xf32>
    %214 = tpu.matmul %211, %213, %cst_64 {dimension_numbers = #tpu.dot_dimension_numbers<[1], [0], [0], [1], [0, 0, 1, 1], [], []>} : vector<48x64xbf16>, vector<64x64xbf16>, vector<48x64xf32> -> vector<48x64xf32>
    %215 = vector.broadcast %9 : vector<1x64xf32> to vector<48x64xf32>
    %216 = arith.addf %214, %215 : vector<48x64xf32>
    %217 = arith.addf %3, %216 : vector<48x64xf32>
    %cst_65 = arith.constant dense<0.000000e+00> : vector<48xf32>
    %218 = vector.multi_reduction <add>, %217, %cst_65 [1] : vector<48x64xf32> to vector<48xf32>
    %219 = vector.shape_cast %218 : vector<48xf32> to vector<48x1xf32>
    %cst_66 = arith.constant 6.400000e+01 : f32
    %220 = vector.broadcast %cst_66 : f32 to vector<48x1xf32>
    %221 = arith.divf %219, %220 : vector<48x1xf32>
    %222 = vector.broadcast %221 : vector<48x1xf32> to vector<48x64xf32>
    %223 = arith.subf %217, %222 : vector<48x64xf32>
    %224 = arith.mulf %223, %223 : vector<48x64xf32>
    %cst_67 = arith.constant dense<0.000000e+00> : vector<48xf32>
    %225 = vector.multi_reduction <add>, %224, %cst_67 [1] : vector<48x64xf32> to vector<48xf32>
    %226 = vector.shape_cast %225 : vector<48xf32> to vector<48x1xf32>
    %cst_68 = arith.constant 6.400000e+01 : f32
    %227 = vector.broadcast %cst_68 : f32 to vector<48x1xf32>
    %228 = arith.divf %226, %227 : vector<48x1xf32>
    %229 = vector.broadcast %221 : vector<48x1xf32> to vector<48x64xf32>
    %230 = arith.subf %217, %229 : vector<48x64xf32>
    %cst_69 = arith.constant 9.99999974E-6 : f32
    %231 = vector.broadcast %cst_69 : f32 to vector<48x1xf32>
    %232 = arith.addf %228, %231 : vector<48x1xf32>
    %233 = math.rsqrt %232 : vector<48x1xf32>
    %234 = vector.broadcast %233 : vector<48x1xf32> to vector<48x64xf32>
    %235 = arith.mulf %230, %234 : vector<48x64xf32>
    %236 = vector.broadcast %10 : vector<1x64xf32> to vector<48x64xf32>
    %237 = arith.mulf %235, %236 : vector<48x64xf32>
    %238 = vector.broadcast %11 : vector<1x64xf32> to vector<48x64xf32>
    %239 = arith.addf %237, %238 : vector<48x64xf32>
    %240 = arith.truncf %239 : vector<48x64xf32> to vector<48x64xbf16>
    %c0_70 = arith.constant 0 : index
    %c0_71 = arith.constant 0 : index
    %c0_72 = arith.constant 0 : index
    %241 = vector.load %arg8[%c0_70, %c0_71, %c0_72] : memref<1x64x256xbf16, #tpu.memory_space<vmem>>, vector<1x64x256xbf16>
    %242 = vector.shape_cast %241 : vector<1x64x256xbf16> to vector<64x256xbf16>
    %cst_73 = arith.constant dense<0.000000e+00> : vector<48x256xf32>
    %243 = tpu.matmul %240, %242, %cst_73 {dimension_numbers = #tpu.dot_dimension_numbers<[1], [0], [0], [1], [0, 0, 1, 1], [], []>} : vector<48x64xbf16>, vector<64x256xbf16>, vector<48x256xf32> -> vector<48x256xf32>
    %244 = vector.broadcast %12 : vector<1x256xf32> to vector<48x256xf32>
    %245 = arith.addf %243, %244 : vector<48x256xf32>
    %cst_74 = arith.constant 8.510000e-01 : f32
    %246 = vector.broadcast %cst_74 : f32 to vector<48x256xf32>
    %247 = arith.mulf %246, %245 : vector<48x256xf32>
    %248 = math.tanh %247 : vector<48x256xf32>
    %cst_75 = arith.constant 1.000000e+00 : f32
    %249 = vector.broadcast %cst_75 : f32 to vector<48x256xf32>
    %250 = arith.addf %248, %249 : vector<48x256xf32>
    %cst_76 = arith.constant 5.000000e-01 : f32
    %251 = vector.broadcast %cst_76 : f32 to vector<48x256xf32>
    %252 = arith.mulf %251, %250 : vector<48x256xf32>
    %253 = arith.mulf %245, %252 : vector<48x256xf32>
    %254 = arith.truncf %253 : vector<48x256xf32> to vector<48x256xbf16>
    %c0_77 = arith.constant 0 : index
    %c0_78 = arith.constant 0 : index
    %c0_79 = arith.constant 0 : index
    %255 = vector.load %arg9[%c0_77, %c0_78, %c0_79] : memref<1x256x64xbf16, #tpu.memory_space<vmem>>, vector<1x256x64xbf16>
    %256 = vector.shape_cast %255 : vector<1x256x64xbf16> to vector<256x64xbf16>
    %cst_80 = arith.constant dense<0.000000e+00> : vector<48x64xf32>
    %257 = tpu.matmul %254, %256, %cst_80 {dimension_numbers = #tpu.dot_dimension_numbers<[1], [0], [0], [1], [0, 0, 1, 1], [], []>} : vector<48x256xbf16>, vector<256x64xbf16>, vector<48x64xf32> -> vector<48x64xf32>
    %258 = arith.addf %217, %257 : vector<48x64xf32>
    %259 = vector.broadcast %13 : vector<1x64xf32> to vector<48x64xf32>
    %260 = arith.addf %258, %259 : vector<48x64xf32>
    %c0_81 = arith.constant 0 : index
    %c0_82 = arith.constant 0 : index
    %261 = vector.load %arg12[%c0_81, %c0_82] : memref<48x64xf32, #tpu.memory_space<vmem>>, vector<48x64xf32>
    tpu.vector_store %arg12[%c0_81, %c0_82], %260 {strides = array<i32>} : memref<48x64xf32, #tpu.memory_space<vmem>>, vector<48x64xf32>,
    %c1_i32 = arith.constant 1 : i32
    %262 = arith.cmpi eq, %arg0, %c1_i32 : i32
    %263 = arith.extui %262 : i1 to i32
    %c0_i32_83 = arith.constant 0 : i32
    %264 = arith.cmpi ne, %263, %c0_i32_83 : i32
    scf.if %264 {
      %265 = vector.extract_strided_slice %260 {offsets = [0, 0], sizes = [1, 64], strides = [1, 1]} : vector<48x64xf32> to vector<1x64xf32>
      %266 = vector.extract_strided_slice %260 {offsets = [24, 0], sizes = [1, 64], strides = [1, 1]} : vector<48x64xf32> to vector<1x64xf32>
      %267 = tpu.concatenate %265, %266 in 0 : vector<1x64xf32>, vector<1x64xf32> -> vector<2x64xf32>
      %c2 = arith.constant 2 : index
      %c0_84 = arith.constant 0 : index
      %268 = vector.load %arg4[%c2, %c0_84] : memref<4x64xf32, #tpu.memory_space<vmem>>, vector<1x64xf32>
      %c3 = arith.constant 3 : index
      %c0_85 = arith.constant 0 : index
      %269 = vector.load %arg4[%c3, %c0_85] : memref<4x64xf32, #tpu.memory_space<vmem>>, vector<1x64xf32>
      %cst_86 = arith.constant dense<0.000000e+00> : vector<2xf32>
      %270 = vector.multi_reduction <add>, %267, %cst_86 [1] : vector<2x64xf32> to vector<2xf32>
      %271 = vector.shape_cast %270 : vector<2xf32> to vector<2x1xf32>
      %cst_87 = arith.constant 6.400000e+01 : f32
      %272 = vector.broadcast %cst_87 : f32 to vector<2x1xf32>
      %273 = arith.divf %271, %272 : vector<2x1xf32>
      %274 = vector.broadcast %273 : vector<2x1xf32> to vector<2x64xf32>
      %275 = arith.subf %267, %274 : vector<2x64xf32>
      %276 = arith.mulf %275, %275 : vector<2x64xf32>
      %cst_88 = arith.constant dense<0.000000e+00> : vector<2xf32>
      %277 = vector.multi_reduction <add>, %276, %cst_88 [1] : vector<2x64xf32> to vector<2xf32>
      %278 = vector.shape_cast %277 : vector<2xf32> to vector<2x1xf32>
      %cst_89 = arith.constant 6.400000e+01 : f32
      %279 = vector.broadcast %cst_89 : f32 to vector<2x1xf32>
      %280 = arith.divf %278, %279 : vector<2x1xf32>
      %281 = vector.broadcast %273 : vector<2x1xf32> to vector<2x64xf32>
      %282 = arith.subf %267, %281 : vector<2x64xf32>
      %cst_90 = arith.constant 9.99999974E-6 : f32
      %283 = vector.broadcast %cst_90 : f32 to vector<2x1xf32>
      %284 = arith.addf %280, %283 : vector<2x1xf32>
      %285 = math.rsqrt %284 : vector<2x1xf32>
      %286 = vector.broadcast %285 : vector<2x1xf32> to vector<2x64xf32>
      %287 = arith.mulf %282, %286 : vector<2x64xf32>
      %288 = vector.broadcast %268 : vector<1x64xf32> to vector<2x64xf32>
      %289 = arith.mulf %287, %288 : vector<2x64xf32>
      %290 = vector.broadcast %269 : vector<1x64xf32> to vector<2x64xf32>
      %291 = arith.addf %289, %290 : vector<2x64xf32>
      %292 = arith.truncf %291 : vector<2x64xf32> to vector<2x64xbf16>
      %c0_91 = arith.constant 0 : index
      %c0_92 = arith.constant 0 : index
      %293 = vector.load %arg10[%c0_91, %c0_92] : memref<64x32xbf16, #tpu.memory_space<vmem>>, vector<64x32xbf16>
      %cst_93 = arith.constant dense<0.000000e+00> : vector<2x32xf32>
      %294 = tpu.matmul %292, %293, %cst_93 {dimension_numbers = #tpu.dot_dimension_numbers<[1], [0], [0], [1], [0, 0, 1, 1], [], []>} : vector<2x64xbf16>, vector<64x32xbf16>, vector<2x32xf32> -> vector<2x32xf32>
      %c0_94 = arith.constant 0 : index
      %c0_95 = arith.constant 0 : index
      %295 = vector.load %arg11[%c0_94, %c0_95] : memref<2x32xf32, #tpu.memory_space<vmem>>, vector<2x32xf32>
      tpu.vector_store %arg11[%c0_94, %c0_95], %294 {strides = array<i32>} : memref<2x32xf32, #tpu.memory_space<vmem>>, vector<2x32xf32>,
    } else {
    }
    return
  }
  func.func @transform_0(%arg0: i32) -> (i32, i32) {
    %c0_i32 = arith.constant 0 : i32
    %c0_i32_0 = arith.constant 0 : i32
    %c0_i32_1 = arith.constant 0 : i32
    return %c0_i32, %c0_i32_0 : i32, i32
  }
  func.func @transform_1(%arg0: i32) -> (i32, i32) {
    %c0_i32 = arith.constant 0 : i32
    %c0_i32_0 = arith.constant 0 : i32
    %c0_i32_1 = arith.constant 0 : i32
    return %c0_i32, %c0_i32_0 : i32, i32
  }
  func.func @transform_2(%arg0: i32) -> (i32, i32) {
    %c0_i32 = arith.constant 0 : i32
    %c0_i32_0 = arith.constant 0 : i32
    %c0_i32_1 = arith.constant 0 : i32
    return %c0_i32, %c0_i32_0 : i32, i32
  }
  func.func @transform_3(%arg0: i32) -> (i32, i32) {
    %c0_i32 = arith.constant 0 : i32
    %c0_i32_0 = arith.constant 0 : i32
    %c0_i32_1 = arith.constant 0 : i32
    return %c0_i32, %c0_i32_0 : i32, i32
  }
  func.func @transform_4(%arg0: i32) -> (i32, i32, i32) {
    %c0_i32 = arith.constant 0 : i32
    %c0_i32_0 = arith.constant 0 : i32
    %c0_i32_1 = arith.constant 0 : i32
    return %arg0, %c0_i32, %c0_i32_0 : i32, i32, i32
  }
  func.func @transform_5(%arg0: i32) -> (i32, i32, i32) {
    %c0_i32 = arith.constant 0 : i32
    %c0_i32_0 = arith.constant 0 : i32
    %c0_i32_1 = arith.constant 0 : i32
    return %arg0, %c0_i32, %c0_i32_0 : i32, i32, i32
  }
  func.func @transform_6(%arg0: i32) -> (i32, i32, i32) {
    %c0_i32 = arith.constant 0 : i32
    %c0_i32_0 = arith.constant 0 : i32
    %c0_i32_1 = arith.constant 0 : i32
    return %arg0, %c0_i32, %c0_i32_0 : i32, i32, i32
  }
  func.func @transform_7(%arg0: i32) -> (i32, i32, i32) {
    %c0_i32 = arith.constant 0 : i32
    %c0_i32_0 = arith.constant 0 : i32
    %c0_i32_1 = arith.constant 0 : i32
    return %arg0, %c0_i32, %c0_i32_0 : i32, i32, i32
  }
  func.func @transform_8(%arg0: i32) -> (i32, i32, i32) {
    %c0_i32 = arith.constant 0 : i32
    %c0_i32_0 = arith.constant 0 : i32
    %c0_i32_1 = arith.constant 0 : i32
    return %arg0, %c0_i32, %c0_i32_0 : i32, i32, i32
  }
  func.func @transform_9(%arg0: i32) -> (i32, i32) {
    %c0_i32 = arith.constant 0 : i32
    %c0_i32_0 = arith.constant 0 : i32
    %c0_i32_1 = arith.constant 0 : i32
    return %c0_i32, %c0_i32_0 : i32, i32
  }
  func.func @transform_10(%arg0: i32) -> (i32, i32) {
    %c0_i32 = arith.constant 0 : i32
    %c0_i32_0 = arith.constant 0 : i32
    %c0_i32_1 = arith.constant 0 : i32
    return %c0_i32, %c0_i32_0 : i32, i32
  }
}

</mosaic_0001>

<llo_original>
// kernel: tpu_custom_call.1
$region0: #{tpu_custom_call.1}
  #allocation0 [shape = 'u32[]', space=smem, size = 0x4, offset = 0x4, fixed_abs, tag = 'smem constant byte address 0x4 - core index']
  #allocation1 [shape = 'u32[72,128]{1,0:T(1,128)}', space=vmem, size = 0x9000, scoped, tag = 'internal scratch']
  #allocation2 [shape = 'f32[48,64]{1,0:T(8,128)}', space=vmem, size = 0x6000, scoped, tag = 'scratch operand']
  %s0 = inlined_call_operand.vmem [shape: bf16[48,192], index: 0, kind: input, shape index: {}]
  %s1 = inlined_call_operand.vmem [shape: f32[48,64], index: 1, kind: input, shape index: {}]
  %s2 = inlined_call_operand.vmem [shape: bf16[192,64], index: 2, kind: input, shape index: {}]
  %s3 = inlined_call_operand.vmem [shape: f32[4,64], index: 3, kind: input, shape index: {}]
  %s4 = inlined_call_operand.vmem [shape: f32[2,8,256], index: 4, kind: input, shape index: {}]
  %s5 = inlined_call_operand.vmem [shape: bf16[2,64,192], index: 5, kind: input, shape index: {}]
  %s6 = inlined_call_operand.vmem [shape: bf16[2,64,64], index: 6, kind: input, shape index: {}]
  %s7 = inlined_call_operand.vmem [shape: bf16[2,64,256], index: 7, kind: input, shape index: {}]
  %s8 = inlined_call_operand.vmem [shape: bf16[2,256,64], index: 8, kind: input, shape index: {}]
  %s9 = inlined_call_operand.vmem [shape: bf16[64,32], index: 9, kind: input, shape index: {}]
  %s10 = inlined_call_operand.hbm [shape: f32[2,32], index: 10, kind: output, shape index: {}]
  %s11 = sld [smem:[#allocation0]]
  $region81: #{tpu_custom_call.1} parent=0
    _
  %s13 = ssub.s32 1, %s11
  %s14 = scalar_select 0, %s13, %s11
  $region1: #{tpu_custom_call.1} parent=0
    #allocation3 [shape = 'u8[1024]{0}', space=vmem, size = 0x400, scoped, tag = 'output window, operand 0, single buffered']
    #allocation4 [shape = 's32[2]{0}', space=sflag, size = 0x8, scoped, tag = 'scoped memory for tpu_custom_call.1']
    %15 = vsyncpa [#allocation4], 0
    loop: start=0, step=1, limit=4
    $region2: #{tpu_custom_call.1} parent=1 // loop_pre_header
      _
    $region3: #{tpu_custom_call.1} parent=1 // loop_header
      %s17 = sphi 0, %s21
      %p18 = scmp.ge.s32.totalorder %s17, 4
      %s25 = sphi 0, %s25
      %s27 = sphi 0, %s25
      %s28 = sphi 0, %s27
      %s42 = sphi 0, %s28
      %s46 = sphi 0, %s46
      %s48 = sphi 0, %s46
      %s49 = sphi 0, %s48
      %s63 = sphi 0, %s49
      %s67 = sphi 0, %s67
      %s69 = sphi 0, %s67
      %s70 = sphi 0, %s69
      %s84 = sphi 0, %s70
      %s88 = sphi 0, %s88
      %s90 = sphi 0, %s88
      %s91 = sphi 0, %s90
      %s105 = sphi 0, %s91
      %s111 = sphi 0, %s113
      %s114 = sphi 0, %s111
      %s115 = sphi 0, %s114
      %s131 = sphi 0, %s115
      %s137 = sphi 0, %s139
      %s140 = sphi 0, %s137
      %s141 = sphi 0, %s140
      %s157 = sphi 0, %s141
      %s163 = sphi 0, %s165
      %s166 = sphi 0, %s163
      %s167 = sphi 0, %s166
      %s183 = sphi 0, %s167
      %s189 = sphi 0, %s191
      %s192 = sphi 0, %s189
      %s193 = sphi 0, %s192
      %s209 = sphi 0, %s193
      %s215 = sphi 0, %s217
      %s218 = sphi 0, %s215
      %s219 = sphi 0, %s218
      %s235 = sphi 0, %s219
      %s239 = sphi 0, %s239
      %s241 = sphi 0, %s239
      %s242 = sphi 0, %s241
      %s256 = sphi 0, %s242
      %s260 = sphi 0, %s260
      %s262 = sphi 0, %s260
      %s263 = sphi 0, %s262
      %s277 = sphi 0, %s263
    $region4: #{tpu_custom_call.1} parent=1 // loop_header_branch
      %20 = sbr.rel (%p18) target = $region8
    $region5: #{tpu_custom_call.1} parent=1 // loop_body
      %s22 = ssub.s32 %s17, 1
      %s23 = ssub.s32 %s17, 2
      %s24 = sadd.s32 %s17, 1
      %s26 = sadd.s32 %s25, 1
      %p29 = scmp.eq.s32.totalorder %s17, 1
      %p30 = scmp.ne.s32.totalorder %s25, %s27
      %p31 = scmp.eq.s32.totalorder %s17, 0
      %p32 = por %p30, %p31
      %p33 = scmp.ne.s32.totalorder %s25, %s27
      %p34 = scmp.eq.s32.totalorder %s22, 1
      %p35 = por %p33, %p34
      %p36 = scmp.ne.s32.totalorder %s27, %s28
      %p37 = scmp.eq.s32.totalorder %s22, 0
      %p38 = por %p36, %p37
      %p39 = scmp.ne.s32.totalorder %s27, %s28
      %p40 = scmp.eq.s32.totalorder %s23, 1
      %p41 = por %p39, %p40
      %p43 = scmp.ne.s32.totalorder %s28, %s42
      %p44 = scmp.eq.s32.totalorder %s23, 0
      %p45 = por %p43, %p44
      %s47 = sadd.s32 %s46, 1
      %p50 = scmp.eq.s32.totalorder %s17, 1
      %p51 = scmp.ne.s32.totalorder %s46, %s48
      %p52 = scmp.eq.s32.totalorder %s17, 0
      %p53 = por %p51, %p52
      %p54 = scmp.ne.s32.totalorder %s46, %s48
      %p55 = scmp.eq.s32.totalorder %s22, 1
      %p56 = por %p54, %p55
      %p57 = scmp.ne.s32.totalorder %s48, %s49
      %p58 = scmp.eq.s32.totalorder %s22, 0
      %p59 = por %p57, %p58
      %p60 = scmp.ne.s32.totalorder %s48, %s49
      %p61 = scmp.eq.s32.totalorder %s23, 1
      %p62 = por %p60, %p61
      %p64 = scmp.ne.s32.totalorder %s49, %s63
      %p65 = scmp.eq.s32.totalorder %s23, 0
      %p66 = por %p64, %p65
      %s68 = sadd.s32 %s67, 1
      %p71 = scmp.eq.s32.totalorder %s17, 1
      %p72 = scmp.ne.s32.totalorder %s67, %s69
      %p73 = scmp.eq.s32.totalorder %s17, 0
      %p74 = por %p72, %p73
      %p75 = scmp.ne.s32.totalorder %s67, %s69
      %p76 = scmp.eq.s32.totalorder %s22, 1
      %p77 = por %p75, %p76
      %p78 = scmp.ne.s32.totalorder %s69, %s70
      %p79 = scmp.eq.s32.totalorder %s22, 0
      %p80 = por %p78, %p79
      %p81 = scmp.ne.s32.totalorder %s69, %s70
      %p82 = scmp.eq.s32.totalorder %s23, 1
      %p83 = por %p81, %p82
      %p85 = scmp.ne.s32.totalorder %s70, %s84
      %p86 = scmp.eq.s32.totalorder %s23, 0
      %p87 = por %p85, %p86
      %s89 = sadd.s32 %s88, 1
      %p92 = scmp.eq.s32.totalorder %s17, 1
      %p93 = scmp.ne.s32.totalorder %s88, %s90
      %p94 = scmp.eq.s32.totalorder %s17, 0
      %p95 = por %p93, %p94
      %p96 = scmp.ne.s32.totalorder %s88, %s90
      %p97 = scmp.eq.s32.totalorder %s22, 1
      %p98 = por %p96, %p97
      %p99 = scmp.ne.s32.totalorder %s90, %s91
      %p100 = scmp.eq.s32.totalorder %s22, 0
      %p101 = por %p99, %p100
      %p102 = scmp.ne.s32.totalorder %s90, %s91
      %p103 = scmp.eq.s32.totalorder %s23, 1
      %p104 = por %p102, %p103
      %p106 = scmp.ne.s32.totalorder %s91, %s105
      %p107 = scmp.eq.s32.totalorder %s23, 0
      %p108 = por %p106, %p107
      %s109 = ssub.s32 %s17, %s24
      %p110 = scmp.eq.s32.totalorder %s109, 0
      %s112 = sadd.s32 %s111, 1
      %s113 = scalar_select %p110, %s111, %s112
      %p116 = pneg %p110
      %p117 = scmp.eq.s32.totalorder %s17, 1
      %p118 = por %p116, %p117
      %p119 = scmp.ne.s32.totalorder %s111, %s114
      %p120 = scmp.eq.s32.totalorder %s17, 0
      %p121 = por %p119, %p120
      %p122 = scmp.ne.s32.totalorder %s111, %s114
      %p123 = scmp.eq.s32.totalorder %s22, 1
      %p124 = por %p122, %p123
      %p125 = scmp.ne.s32.totalorder %s114, %s115
      %p126 = scmp.eq.s32.totalorder %s22, 0
      %p127 = por %p125, %p126
      %p128 = scmp.ne.s32.totalorder %s114, %s115
      %p129 = scmp.eq.s32.totalorder %s23, 1
      %p130 = por %p128, %p129
      %p132 = scmp.ne.s32.totalorder %s115, %s131
      %p133 = scmp.eq.s32.totalorder %s23, 0
      %p134 = por %p132, %p133
      %s135 = ssub.s32 %s17, %s24
      %p136 = scmp.eq.s32.totalorder %s135, 0
      %s138 = sadd.s32 %s137, 1
      %s139 = scalar_select %p136, %s137, %s138
      %p142 = pneg %p136
      %p143 = scmp.eq.s32.totalorder %s17, 1
      %p144 = por %p142, %p143
      %p145 = scmp.ne.s32.totalorder %s137, %s140
      %p146 = scmp.eq.s32.totalorder %s17, 0
      %p147 = por %p145, %p146
      %p148 = scmp.ne.s32.totalorder %s137, %s140
      %p149 = scmp.eq.s32.totalorder %s22, 1
      %p150 = por %p148, %p149
      %p151 = scmp.ne.s32.totalorder %s140, %s141
      %p152 = scmp.eq.s32.totalorder %s22, 0
      %p153 = por %p151, %p152
      %p154 = scmp.ne.s32.totalorder %s140, %s141
      %p155 = scmp.eq.s32.totalorder %s23, 1
      %p156 = por %p154, %p155
      %p158 = scmp.ne.s32.totalorder %s141, %s157
      %p159 = scmp.eq.s32.totalorder %s23, 0
      %p160 = por %p158, %p159
      %s161 = ssub.s32 %s17, %s24
      %p162 = scmp.eq.s32.totalorder %s161, 0
      %s164 = sadd.s32 %s163, 1
      %s165 = scalar_select %p162, %s163, %s164
      %p168 = pneg %p162
      %p169 = scmp.eq.s32.totalorder %s17, 1
      %p170 = por %p168, %p169
      %p171 = scmp.ne.s32.totalorder %s163, %s166
      %p172 = scmp.eq.s32.totalorder %s17, 0
      %p173 = por %p171, %p172
      %p174 = scmp.ne.s32.totalorder %s163, %s166
      %p175 = scmp.eq.s32.totalorder %s22, 1
      %p176 = por %p174, %p175
      %p177 = scmp.ne.s32.totalorder %s166, %s167
      %p178 = scmp.eq.s32.totalorder %s22, 0
      %p179 = por %p177, %p178
      %p180 = scmp.ne.s32.totalorder %s166, %s167
      %p181 = scmp.eq.s32.totalorder %s23, 1
      %p182 = por %p180, %p181
      %p184 = scmp.ne.s32.totalorder %s167, %s183
      %p185 = scmp.eq.s32.totalorder %s23, 0
      %p186 = por %p184, %p185
      %s187 = ssub.s32 %s17, %s24
      %p188 = scmp.eq.s32.totalorder %s187, 0
      %s190 = sadd.s32 %s189, 1
      %s191 = scalar_select %p188, %s189, %s190
      %p194 = pneg %p188
      %p195 = scmp.eq.s32.totalorder %s17, 1
      %p196 = por %p194, %p195
      %p197 = scmp.ne.s32.totalorder %s189, %s192
      %p198 = scmp.eq.s32.totalorder %s17, 0
      %p199 = por %p197, %p198
      %p200 = scmp.ne.s32.totalorder %s189, %s192
      %p201 = scmp.eq.s32.totalorder %s22, 1
      %p202 = por %p200, %p201
      %p203 = scmp.ne.s32.totalorder %s192, %s193
      %p204 = scmp.eq.s32.totalorder %s22, 0
      %p205 = por %p203, %p204
      %p206 = scmp.ne.s32.totalorder %s192, %s193
      %p207 = scmp.eq.s32.totalorder %s23, 1
      %p208 = por %p206, %p207
      %p210 = scmp.ne.s32.totalorder %s193, %s209
      %p211 = scmp.eq.s32.totalorder %s23, 0
      %p212 = por %p210, %p211
      %s213 = ssub.s32 %s17, %s24
      %p214 = scmp.eq.s32.totalorder %s213, 0
      %s216 = sadd.s32 %s215, 1
      %s217 = scalar_select %p214, %s215, %s216
      %p220 = pneg %p214
      %p221 = scmp.eq.s32.totalorder %s17, 1
      %p222 = por %p220, %p221
      %p223 = scmp.ne.s32.totalorder %s215, %s218
      %p224 = scmp.eq.s32.totalorder %s17, 0
      %p225 = por %p223, %p224
      %p226 = scmp.ne.s32.totalorder %s215, %s218
      %p227 = scmp.eq.s32.totalorder %s22, 1
      %p228 = por %p226, %p227
      %p229 = scmp.ne.s32.totalorder %s218, %s219
      %p230 = scmp.eq.s32.totalorder %s22, 0
      %p231 = por %p229, %p230
      %p232 = scmp.ne.s32.totalorder %s218, %s219
      %p233 = scmp.eq.s32.totalorder %s23, 1
      %p234 = por %p232, %p233
      %p236 = scmp.ne.s32.totalorder %s219, %s235
      %p237 = scmp.eq.s32.totalorder %s23, 0
      %p238 = por %p236, %p237
      %s240 = sadd.s32 %s239, 1
      %p243 = scmp.eq.s32.totalorder %s17, 1
      %p244 = scmp.ne.s32.totalorder %s239, %s241
      %p245 = scmp.eq.s32.totalorder %s17, 0
      %p246 = por %p244, %p245
      %p247 = scmp.ne.s32.totalorder %s239, %s241
      %p248 = scmp.eq.s32.totalorder %s22, 1
      %p249 = por %p247, %p248
      %p250 = scmp.ne.s32.totalorder %s241, %s242
      %p251 = scmp.eq.s32.totalorder %s22, 0
      %p252 = por %p250, %p251
      %p253 = scmp.ne.s32.totalorder %s241, %s242
      %p254 = scmp.eq.s32.totalorder %s23, 1
      %p255 = por %p253, %p254
      %p257 = scmp.ne.s32.totalorder %s242, %s256
      %p258 = scmp.eq.s32.totalorder %s23, 0
      %p259 = por %p257, %p258
      %s261 = sadd.s32 %s260, 1
      %p264 = scmp.eq.s32.totalorder %s17, 1
      %p265 = scmp.ne.s32.totalorder %s260, %s262
      %p266 = scmp.eq.s32.totalorder %s17, 0
      %p267 = por %p265, %p266
      %p268 = scmp.ne.s32.totalorder %s260, %s262
      %p269 = scmp.eq.s32.totalorder %s22, 1
      %p270 = por %p268, %p269
      %p271 = scmp.ne.s32.totalorder %s262, %s263
      %p272 = scmp.eq.s32.totalorder %s22, 0
      %p273 = por %p271, %p272
      %p274 = scmp.ne.s32.totalorder %s262, %s263
      %p275 = scmp.eq.s32.totalorder %s23, 1
      %p276 = por %p274, %p275
      %p278 = scmp.ne.s32.totalorder %s263, %s277
      %p279 = scmp.eq.s32.totalorder %s23, 0
      %p280 = por %p278, %p279
      %p281 = scmp.le.s32.totalorder 1, %s17
      %p282 = scmp.lt.s32.totalorder %s17, 3
      %p283 = pnand %p281, %p282
      %p284 = pneg %p283
      // Predicated region
      $region9: #{tpu_custom_call.1} parent=5 // pred_check
        _
      $region10: #{tpu_custom_call.1} parent=5 // pred_check_branch
        %286 = sbr.rel (%p283) target = $region12
      $region11: #{tpu_custom_call.1} parent=5 // pred_region
        %s287 = ssub.s32 %s17, 1
        // Predicated region
        $region13: #{tpu_custom_call.1} parent=11 // pred_check
          %p288 = pneg %p38
        $region14: #{tpu_custom_call.1} parent=11 // pred_check_branch
          %290 = sbr.rel (%p288) target = $region16
        $region15: #{tpu_custom_call.1} parent=11 // pred_region
          _
        $region16: #{tpu_custom_call.1} parent=11 // pred_fallthru
          _
        // Predicated region
        $region17: #{tpu_custom_call.1} parent=11 // pred_check
          %p291 = pneg %p59
        $region18: #{tpu_custom_call.1} parent=11 // pred_check_branch
          %293 = sbr.rel (%p291) target = $region20
        $region19: #{tpu_custom_call.1} parent=11 // pred_region
          _
        $region20: #{tpu_custom_call.1} parent=11 // pred_fallthru
          _
        // Predicated region
        $region21: #{tpu_custom_call.1} parent=11 // pred_check
          %p294 = pneg %p80
        $region22: #{tpu_custom_call.1} parent=11 // pred_check_branch
          %296 = sbr.rel (%p294) target = $region24
        $region23: #{tpu_custom_call.1} parent=11 // pred_region
          _
        $region24: #{tpu_custom_call.1} parent=11 // pred_fallthru
          _
        // Predicated region
        $region25: #{tpu_custom_call.1} parent=11 // pred_check
          %p297 = pneg %p101
        $region26: #{tpu_custom_call.1} parent=11 // pred_check_branch
          %299 = sbr.rel (%p297) target = $region28
        $region27: #{tpu_custom_call.1} parent=11 // pred_region
          _
        $region28: #{tpu_custom_call.1} parent=11 // pred_fallthru
          _
        // Predicated region
        $region29: #{tpu_custom_call.1} parent=11 // pred_check
          %p300 = pneg %p252
        $region30: #{tpu_custom_call.1} parent=11 // pred_check_branch
          %302 = sbr.rel (%p300) target = $region32
        $region31: #{tpu_custom_call.1} parent=11 // pred_region
          _
        $region32: #{tpu_custom_call.1} parent=11 // pred_fallthru
          _
      $region12: #{tpu_custom_call.1} parent=5 // pred_fallthru
        _
      %p303 = scmp.lt.s32.totalorder %s17, 2
      // Predicated region
      $region33: #{tpu_custom_call.1} parent=5 // pred_check
        %p304 = pneg %p303
      $region34: #{tpu_custom_call.1} parent=5 // pred_check_branch
        %306 = sbr.rel (%p304) target = $region36
      $region35: #{tpu_custom_call.1} parent=5 // pred_region
        // Predicated region
        $region37: #{tpu_custom_call.1} parent=35 // pred_check
          %p307 = pneg %p121
        $region38: #{tpu_custom_call.1} parent=35 // pred_check_branch
          %309 = sbr.rel (%p307) target = $region40
        $region39: #{tpu_custom_call.1} parent=35 // pred_region
          %p310 = scmp.lt.s32.totalorder %s17, 1
          %s311 = scalar_select %p310, %s17, 1
          %s312 = smul.addr %s311, 2
          %s313 = smul.addr %s312, 8
          %s314 = scalar_lea.vmem %s4, %s313
        $region40: #{tpu_custom_call.1} parent=35 // pred_fallthru
          _
        // Predicated region
        $region41: #{tpu_custom_call.1} parent=35 // pred_check
          %p315 = pneg %p147
        $region42: #{tpu_custom_call.1} parent=35 // pred_check_branch
          %317 = sbr.rel (%p315) target = $region44
        $region43: #{tpu_custom_call.1} parent=35 // pred_region
          %p318 = scmp.lt.s32.totalorder %s17, 1
          %s319 = scalar_select %p318, %s17, 1
          %s320 = smul.addr %s319, 16
          %s321 = smul.addr %s320, 4
          %s322 = scalar_lea.vmem %s5, %s321
        $region44: #{tpu_custom_call.1} parent=35 // pred_fallthru
          _
        // Predicated region
        $region45: #{tpu_custom_call.1} parent=35 // pred_check
          %p323 = pneg %p173
        $region46: #{tpu_custom_call.1} parent=35 // pred_check_branch
          %325 = sbr.rel (%p323) target = $region48
        $region47: #{tpu_custom_call.1} parent=35 // pred_region
          %p326 = scmp.lt.s32.totalorder %s17, 1
          %s327 = scalar_select %p326, %s17, 1
          %s328 = smul.addr %s327, 8
          %s329 = smul.addr %s328, 4
          %s330 = scalar_lea.vmem %s6, %s329
        $region48: #{tpu_custom_call.1} parent=35 // pred_fallthru
          _
        // Predicated region
        $region49: #{tpu_custom_call.1} parent=35 // pred_check
          %p331 = pneg %p199
        $region50: #{tpu_custom_call.1} parent=35 // pred_check_branch
          %333 = sbr.rel (%p331) target = $region52
        $region51: #{tpu_custom_call.1} parent=35 // pred_region
          %p334 = scmp.lt.s32.totalorder %s17, 1
          %s335 = scalar_select %p334, %s17, 1
          %s336 = smul.addr %s335, 16
          %s337 = smul.addr %s336, 4
          %s338 = scalar_lea.vmem %s7, %s337
        $region52: #{tpu_custom_call.1} parent=35 // pred_fallthru
          _
        // Predicated region
        $region53: #{tpu_custom_call.1} parent=35 // pred_check
          %p339 = pneg %p225
        $region54: #{tpu_custom_call.1} parent=35 // pred_check_branch
          %341 = sbr.rel (%p339) target = $region56
        $region55: #{tpu_custom_call.1} parent=35 // pred_region
          %p342 = scmp.lt.s32.totalorder %s17, 1
          %s343 = scalar_select %p342, %s17, 1
          %s344 = smul.addr %s343, 32
          %s345 = smul.addr %s344, 4
          %s346 = scalar_lea.vmem %s8, %s345
        $region56: #{tpu_custom_call.1} parent=35 // pred_fallthru
          _
      $region36: #{tpu_custom_call.1} parent=5 // pred_fallthru
        _
      %p347 = scmp.le.s32.totalorder 1, %s17
      %p348 = scmp.lt.s32.totalorder %s17, 3
      %p349 = pnand %p347, %p348
      %p350 = pneg %p349
      // Predicated region
      $region57: #{tpu_custom_call.1} parent=5 // pred_check
        _
      $region58: #{tpu_custom_call.1} parent=5 // pred_check_branch
        %352 = sbr.rel (%p349) target = $region60
      $region59: #{tpu_custom_call.1} parent=5 // pred_region
        %s353 = ssub.s32 %s17, 1
        %p354 = pneg %p38
        %p355 = pneg %p35
        %p356 = pneg %p59
        %p357 = pneg %p56
        %p358 = pneg %p80
        %p359 = pneg %p77
        %p360 = pneg %p101
        %p361 = pneg %p98
        %p362 = scmp.lt.s32.totalorder %s22, 1
        %s363 = scalar_select %p362, %s22, 1
        %s364 = smul.addr %s363, 2
        %s365 = smul.addr %s364, 8
        %s366 = scalar_lea.vmem %s4, %s365
        %p367 = pneg %p127
        %p368 = pneg %p124
        %p369 = scmp.lt.s32.totalorder %s22, 1
        %s370 = scalar_select %p369, %s22, 1
        %s371 = smul.addr %s370, 16
        %s372 = smul.addr %s371, 4
        %s373 = scalar_lea.vmem %s5, %s372
        %p374 = pneg %p153
        %p375 = pneg %p150
        %p376 = scmp.lt.s32.totalorder %s22, 1
        %s377 = scalar_select %p376, %s22, 1
        %s378 = smul.addr %s377, 8
        %s379 = smul.addr %s378, 4
        %s380 = scalar_lea.vmem %s6, %s379
        %p381 = pneg %p179
        %p382 = pneg %p176
        %p383 = scmp.lt.s32.totalorder %s22, 1
        %s384 = scalar_select %p383, %s22, 1
        %s385 = smul.addr %s384, 16
        %s386 = smul.addr %s385, 4
        %s387 = scalar_lea.vmem %s7, %s386
        %p388 = pneg %p205
        %p389 = pneg %p202
        %p390 = scmp.lt.s32.totalorder %s22, 1
        %s391 = scalar_select %p390, %s22, 1
        %s392 = smul.addr %s391, 32
        %s393 = smul.addr %s392, 4
        %s394 = scalar_lea.vmem %s8, %s393
        %p395 = pneg %p231
        %p396 = pneg %p228
        %p397 = pneg %p252
        %p398 = pneg %p249
        %p399 = pneg %p273
        %p400 = pneg %p270
        %p401 = scmp.lt.s32.totalorder %s22, 1
        %s402 = scalar_select %p401, %s22, 1
        %s403 = smul.addr %s402, 2
        %s404 = smul.addr %s403, 8
        %s405 = scalar_lea.vmem %s4, %s404
        %p406 = scmp.lt.s32.totalorder %s22, 1
        %s407 = scalar_select %p406, %s22, 1
        %s408 = smul.addr %s407, 16
        %s409 = smul.addr %s408, 4
        %s410 = scalar_lea.vmem %s5, %s409
        %p411 = scmp.lt.s32.totalorder %s22, 1
        %s412 = scalar_select %p411, %s22, 1
        %s413 = smul.addr %s412, 8
        %s414 = smul.addr %s413, 4
        %s415 = scalar_lea.vmem %s6, %s414
        %p416 = scmp.lt.s32.totalorder %s22, 1
        %s417 = scalar_select %p416, %s22, 1
        %s418 = smul.addr %s417, 16
        %s419 = smul.addr %s418, 4
        %s420 = scalar_lea.vmem %s7, %s419
        %p421 = scmp.lt.s32.totalorder %s22, 1
        %s422 = scalar_select %p421, %s22, 1
        %s423 = smul.addr %s422, 32
        %s424 = smul.addr %s423, 4
        %s425 = scalar_lea.vmem %s8, %s424
        %p427 = scmp.eq.s32.totalorder %s22, 0
        // Predicated region
        $region61: #{tpu_custom_call.1} parent=59 // pred_check
          %p428 = pneg %p427
        $region62: #{tpu_custom_call.1} parent=59 // pred_check_branch
          %430 = sbr.rel (%p428) target = $region64
        $region63: #{tpu_custom_call.1} parent=59 // pred_region
          %v431 = vld [vmem:[%s0] sm:$0xff]
          %v432 = vld [vmem:[%s0 + $0x8] sm:$0xff]
          %v433 = vld [vmem:[%s0 + $0x10] sm:$0xff]
          %v434 = vld [vmem:[%s0 + $0x18] sm:$0xff]
          %v435 = vld [vmem:[%s0 + $0x20] sm:$0xff]
          %v436 = vld [vmem:[%s0 + $0x28] sm:$0xff]
          %v437 = vld [vmem:[%s2] sm:$0xf]
          %v438 = vld [vmem:[%s2 + $0x4] sm:$0xf]
          %v439 = vld [vmem:[%s2 + $0x8] sm:$0xf]
          %v440 = vld [vmem:[%s2 + $0xc] sm:$0xf]
          %v441 = vld [vmem:[%s2 + $0x10] sm:$0xf]
          %v442 = vld [vmem:[%s2 + $0x14] sm:$0xf]
          %v443 = vld [vmem:[%s2 + $0x18] sm:$0xf]
          %v444 = vld [vmem:[%s2 + $0x1c] sm:$0xf]
          %v445 = vld [vmem:[%s2 + $0x20] sm:$0xf]
          %v446 = vld [vmem:[%s2 + $0x24] sm:$0xf]
          %v447 = vld [vmem:[%s2 + $0x28] sm:$0xf]
          %v448 = vld [vmem:[%s2 + $0x2c] sm:$0xf]
          %v449 = vld [vmem:[%s2 + $0x30] sm:$0xf]
          %v450 = vld [vmem:[%s2 + $0x34] sm:$0xf]
          %v451 = vld [vmem:[%s2 + $0x38] sm:$0xf]
          %v452 = vld [vmem:[%s2 + $0x3c] sm:$0xf]
          %v453 = vld [vmem:[%s2 + $0x40] sm:$0xf]
          %v454 = vld [vmem:[%s2 + $0x44] sm:$0xf]
          %v455 = vld [vmem:[%s2 + $0x48] sm:$0xf]
          %v456 = vld [vmem:[%s2 + $0x4c] sm:$0xf]
          %v457 = vld [vmem:[%s2 + $0x50] sm:$0xf]
          %v458 = vld [vmem:[%s2 + $0x54] sm:$0xf]
          %v459 = vld [vmem:[%s2 + $0x58] sm:$0xf]
          %v460 = vld [vmem:[%s2 + $0x5c] sm:$0xf]
          %v461 = vld [vmem:[%s1] sm:$0xff]
          %v462 = vld [vmem:[%s1 + $0x8] sm:$0xff]
          %v463 = vld [vmem:[%s1 + $0x10] sm:$0xff]
          %v464 = vld [vmem:[%s1 + $0x18] sm:$0xff]
          %v465 = vld [vmem:[%s1 + $0x20] sm:$0xff]
          %v466 = vld [vmem:[%s1 + $0x28] sm:$0xff]
          %v473 = vunpack.c.l.b16 %v431
          %v474 = vunpack.c.h.b16 %v431
          %v475 = vunpack.c.l.b16 %v432
          %v476 = vunpack.c.h.b16 %v432
          %v477 = vunpack.c.l.b16 %v433
          %v478 = vunpack.c.h.b16 %v433
          %v479 = vunpack.c.l.b16 %v434
          %v480 = vunpack.c.h.b16 %v434
          %v481 = vunpack.c.l.b16 %v435
          %v482 = vunpack.c.h.b16 %v435
          %v483 = vunpack.c.l.b16 %v436
          %v484 = vunpack.c.h.b16 %v436
          %v485 = vpack.c.b16 %v475, %v473
          %v486 = vpack.c.b16 %v476, %v474
          %v487 = vpack.c.b16 %v479, %v477
          %v488 = vpack.c.b16 %v480, %v478
          %v489 = vpack.c.b16 %v483, %v481
          %v490 = vpack.c.b16 %v484, %v482
          %v518 = vunpack.c.l.b16 %v437
          %v519 = vunpack.c.l.b16 %v438
          %v520 = vunpack.c.l.b16 %v439
          %v521 = vunpack.c.l.b16 %v440
          %v522 = vunpack.c.l.b16 %v441
          %v523 = vunpack.c.l.b16 %v442
          %v524 = vunpack.c.l.b16 %v443
          %v525 = vunpack.c.l.b16 %v444
          %v526 = vunpack.c.l.b16 %v445
          %v527 = vunpack.c.l.b16 %v446
          %v528 = vunpack.c.l.b16 %v447
          %v529 = vunpack.c.l.b16 %v448
          %v530 = vunpack.c.l.b16 %v449
          %v531 = vunpack.c.l.b16 %v450
          %v532 = vunpack.c.l.b16 %v451
          %v533 = vunpack.c.l.b16 %v452
          %v534 = vunpack.c.l.b16 %v453
          %v535 = vunpack.c.l.b16 %v454
          %v536 = vunpack.c.l.b16 %v455
          %v537 = vunpack.c.l.b16 %v456
          %v538 = vunpack.c.l.b16 %v457
          %v539 = vunpack.c.l.b16 %v458
          %v540 = vunpack.c.l.b16 %v459
          %v541 = vunpack.c.l.b16 %v460
          %v542 = vpack.c.b16 %v519, %v518
          %v543 = vpack.c.b16 %v521, %v520
          %v544 = vpack.c.b16 %v523, %v522
          %v545 = vpack.c.b16 %v525, %v524
          %v546 = vpack.c.b16 %v527, %v526
          %v547 = vpack.c.b16 %v529, %v528
          %v548 = vpack.c.b16 %v531, %v530
          %v549 = vpack.c.b16 %v533, %v532
          %v550 = vpack.c.b16 %v535, %v534
          %v551 = vpack.c.b16 %v537, %v536
          %v552 = vpack.c.b16 %v539, %v538
          %v553 = vpack.c.b16 %v541, %v540
          %vm566 = vcmask 523264
          %v568 = vsel %vm566, %v486, 0
          %v571 = vsel %vm566, %v488, 0
          %v574 = vsel %vm566, %v490, 0
          %576 = vmatpush.bf16.msra.mxu0 %v549
          %577 = vmatpush.bf16.msra.mxu0 %v548
          %578 = vmatpush.bf16.msra.mxu0 %v547
          %579 = vmatpush.bf16.msra.mxu0 %v546
          %580 = vmatpush.bf16.msra.mxu0 %v545
          %581 = vmatpush.bf16.msra.mxu0 %v544
          %582 = vmatpush.bf16.msra.mxu0 %v543
          %583 = vmatpush.bf16.msra.mxu0 %v542
          %584 = vmatmul.bf16.gmra.mxu0 %v485
          %v585 = vpop.f32.mrf.mxu0
          %v586 = vadd.f32 %v461, %v585
          %v587 = vpop.f32.mrf.mxu0
          %v588 = vadd.f32 %v462, %v587
          %589 = vmatmul.bf16.gmra.mxu0 %v487
          %v590 = vpop.f32.mrf.mxu0
          %v591 = vadd.f32 %v463, %v590
          %v592 = vpop.f32.mrf.mxu0
          %v593 = vadd.f32 %v464, %v592
          %594 = vmatmul.bf16.gmra.mxu0 %v489
          %v595 = vpop.f32.mrf.mxu0
          %v596 = vadd.f32 %v465, %v595
          %v597 = vpop.f32.mrf.mxu0
          %v598 = vadd.f32 %v466, %v597
          %599 = vdwg.mxu0
          %600 = vmatpush.bf16.msra.mxu0 0
          %601 = vmatpush.bf16.msra.mxu0 0
          %602 = vmatpush.bf16.msra.mxu0 0
          %603 = vmatpush.bf16.msra.mxu0 0
          %604 = vmatpush.bf16.msra.mxu0 %v553
          %605 = vmatpush.bf16.msra.mxu0 %v552
          %606 = vmatpush.bf16.msra.mxu0 %v551
          %607 = vmatpush.bf16.msra.mxu0 %v550
          %608 = vmatmul.bf16.gmra.mxu0 %v568
          %v609 = vpop.f32.mrf.mxu0
          %v610 = vadd.f32 %v586, %v609
          %v611 = vpop.f32.mrf.mxu0
          %v612 = vadd.f32 %v588, %v611
          %613 = vmatmul.bf16.gmra.mxu0 %v571
          %v614 = vpop.f32.mrf.mxu0
          %v615 = vadd.f32 %v591, %v614
          %v616 = vpop.f32.mrf.mxu0
          %v617 = vadd.f32 %v593, %v616
          %618 = vmatmul.bf16.gmra.mxu0 %v574
          %v619 = vpop.f32.mrf.mxu0
          %v620 = vadd.f32 %v596, %v619
          %v621 = vpop.f32.mrf.mxu0
          %v622 = vadd.f32 %v598, %v621
          %623 = vdwg.mxu0
          %v624 = vld [vmem:[%s3] sm:$0x1]
          %v625 = vld [vmem:[%s3 + $0x1] sm:$0x1]
          %v626 = vsel %vm566, %v610, 0.0
          %627 = vadd.xlane.f32.xlu0 %v626
          %v628 = vpop.xlane.xlu0 %627
          %v629 = vsel %vm566, %v612, 0.0
          %630 = vadd.xlane.f32.xlu0 %v629
          %v631 = vpop.xlane.xlu0 %630
          %v632 = vsel %vm566, %v615, 0.0
          %633 = vadd.xlane.f32.xlu0 %v632
          %v634 = vpop.xlane.xlu0 %633
          %v635 = vsel %vm566, %v617, 0.0
          %636 = vadd.xlane.f32.xlu0 %v635
          %v637 = vpop.xlane.xlu0 %636
          %v638 = vsel %vm566, %v620, 0.0
          %639 = vadd.xlane.f32.xlu0 %v638
          %v640 = vpop.xlane.xlu0 %639
          %v641 = vsel %vm566, %v622, 0.0
          %642 = vadd.xlane.f32.xlu0 %v641
          %v643 = vpop.xlane.xlu0 %642
          %v644 = vrcp.pop 64.0
          %v645 = vmul.f32 64.0, %v644
          %v646 = vsub.f32 1.0, %v645
          %v647 = vmul.f32 %v644, %v646
          %v648 = vadd.f32 %v644, %v647
          %vm649 = vweird.f32 %v644
          %v650 = vsel %vm649, %v644, %v648
          %v651 = vmul.f32 %v628, %v650
          %v652 = vmul.f32 %v631, %v650
          %v653 = vmul.f32 %v634, %v650
          %v654 = vmul.f32 %v637, %v650
          %v655 = vmul.f32 %v640, %v650
          %v656 = vmul.f32 %v643, %v650
          %v657 = vsub.f32 %v610, %v651
          %v658 = vsub.f32 %v612, %v652
          %v659 = vsub.f32 %v615, %v653
          %v660 = vsub.f32 %v617, %v654
          %v661 = vsub.f32 %v620, %v655
          %v662 = vsub.f32 %v622, %v656
          %v663 = vmul.f32 %v657, %v657
          %v664 = vmul.f32 %v658, %v658
          %v665 = vmul.f32 %v659, %v659
          %v666 = vmul.f32 %v660, %v660
          %v667 = vmul.f32 %v661, %v661
          %v668 = vmul.f32 %v662, %v662
          %v669 = vsel %vm566, %v663, 0.0
          %670 = vadd.xlane.f32.xlu0 %v669
          %v671 = vpop.xlane.xlu0 %670
          %v672 = vsel %vm566, %v664, 0.0
          %673 = vadd.xlane.f32.xlu0 %v672
          %v674 = vpop.xlane.xlu0 %673
          %v675 = vsel %vm566, %v665, 0.0
          %676 = vadd.xlane.f32.xlu0 %v675
          %v677 = vpop.xlane.xlu0 %676
          %v678 = vsel %vm566, %v666, 0.0
          %679 = vadd.xlane.f32.xlu0 %v678
          %v680 = vpop.xlane.xlu0 %679
          %v681 = vsel %vm566, %v667, 0.0
          %682 = vadd.xlane.f32.xlu0 %v681
          %v683 = vpop.xlane.xlu0 %682
          %v684 = vsel %vm566, %v668, 0.0
          %685 = vadd.xlane.f32.xlu0 %v684
          %v686 = vpop.xlane.xlu0 %685
          %v687 = vmul.f32 %v671, %v650
          %v688 = vmul.f32 %v674, %v650
          %v689 = vmul.f32 %v677, %v650
          %v690 = vmul.f32 %v680, %v650
          %v691 = vmul.f32 %v683, %v650
          %v692 = vmul.f32 %v686, %v650
          %v693 = vadd.f32 %v687, 1e-05
          %v694 = vadd.f32 %v688, 1e-05
          %v695 = vadd.f32 %v689, 1e-05
          %v696 = vadd.f32 %v690, 1e-05
          %v697 = vadd.f32 %v691, 1e-05
          %v698 = vadd.f32 %v692, 1e-05
          %v699 = vrsqrt.pop %v693
          %v700 = vmul.f32 %v699, %v693
          %v701 = vmul.f32 %v700, %v699
          %v702 = vmul.f32 0.5, %v701
          %v703 = vsub.f32 1.5, %v702
          %v704 = vmul.f32 %v699, %v703
          %vm705 = vweird.f32 %v693
          %vm706 = vweird.f32 %v699
          %vm707 = vmor %vm705, %vm706
          %v708 = vsel %vm707, %v699, %v704
          %v709 = vrsqrt.pop %v694
          %v710 = vmul.f32 %v709, %v694
          %v711 = vmul.f32 %v710, %v709
          %v712 = vmul.f32 0.5, %v711
          %v713 = vsub.f32 1.5, %v712
          %v714 = vmul.f32 %v709, %v713
          %vm715 = vweird.f32 %v694
          %vm716 = vweird.f32 %v709
          %vm717 = vmor %vm715, %vm716
          %v718 = vsel %vm717, %v709, %v714
          %v719 = vrsqrt.pop %v695
          %v720 = vmul.f32 %v719, %v695
          %v721 = vmul.f32 %v720, %v719
          %v722 = vmul.f32 0.5, %v721
          %v723 = vsub.f32 1.5, %v722
          %v724 = vmul.f32 %v719, %v723
          %vm725 = vweird.f32 %v695
          %vm726 = vweird.f32 %v719
          %vm727 = vmor %vm725, %vm726
          %v728 = vsel %vm727, %v719, %v724
          %v729 = vrsqrt.pop %v696
          %v730 = vmul.f32 %v729, %v696
          %v731 = vmul.f32 %v730, %v729
          %v732 = vmul.f32 0.5, %v731
          %v733 = vsub.f32 1.5, %v732
          %v734 = vmul.f32 %v729, %v733
          %vm735 = vweird.f32 %v696
          %vm736 = vweird.f32 %v729
          %vm737 = vmor %vm735, %vm736
          %v738 = vsel %vm737, %v729, %v734
          %v739 = vrsqrt.pop %v697
          %v740 = vmul.f32 %v739, %v697
          %v741 = vmul.f32 %v740, %v739
          %v742 = vmul.f32 0.5, %v741
          %v743 = vsub.f32 1.5, %v742
          %v744 = vmul.f32 %v739, %v743
          %vm745 = vweird.f32 %v697
          %vm746 = vweird.f32 %v739
          %vm747 = vmor %vm745, %vm746
          %v748 = vsel %vm747, %v739, %v744
          %v749 = vrsqrt.pop %v698
          %v750 = vmul.f32 %v749, %v698
          %v751 = vmul.f32 %v750, %v749
          %v752 = vmul.f32 0.5, %v751
          %v753 = vsub.f32 1.5, %v752
          %v754 = vmul.f32 %v749, %v753
          %vm755 = vweird.f32 %v698
          %vm756 = vweird.f32 %v749
          %vm757 = vmor %vm755, %vm756
          %v758 = vsel %vm757, %v749, %v754
          %v759 = vmul.f32 %v657, %v708
          %v760 = vmul.f32 %v658, %v718
          %v761 = vmul.f32 %v659, %v728
          %v762 = vmul.f32 %v660, %v738
          %v763 = vmul.f32 %v661, %v748
          %v764 = vmul.f32 %v662, %v758
          %v765 = vperm.slane %v624, 0
          %v766 = vmul.f32 %v759, %v765
          %v767 = vmul.f32 %v760, %v765
          %v768 = vmul.f32 %v761, %v765
          %v769 = vmul.f32 %v762, %v765
          %v770 = vmul.f32 %v763, %v765
          %v771 = vmul.f32 %v764, %v765
          %v772 = vperm.slane %v625, 0
          %v773 = vadd.f32 %v766, %v772
          %v774 = vadd.f32 %v767, %v772
          %v775 = vadd.f32 %v768, %v772
          %v776 = vadd.f32 %v769, %v772
          %v777 = vadd.f32 %v770, %v772
          %v778 = vadd.f32 %v771, %v772
          %779 = vst.msk [vmem:[#allocation2] sm:$0xff] %vm566, %v773
          %780 = vst.msk [vmem:[#allocation2 + $0x8] sm:$0xff] %vm566, %v774
          %781 = vst.msk [vmem:[#allocation2 + $0x10] sm:$0xff] %vm566, %v775
          %782 = vst.msk [vmem:[#allocation2 + $0x18] sm:$0xff] %vm566, %v776
          %783 = vst.msk [vmem:[#allocation2 + $0x20] sm:$0xff] %vm566, %v777
          %784 = vst.msk [vmem:[#allocation2 + $0x28] sm:$0xff] %vm566, %v778
        $region64: #{tpu_custom_call.1} parent=59 // pred_fallthru
          _
        %v785 = vld [vmem:[#allocation2] sm:$0xff]
        %v786 = vld [vmem:[#allocation2 + $0x8] sm:$0xff]
        %v787 = vld [vmem:[#allocation2 + $0x10] sm:$0xff]
        %v788 = vld [vmem:[#allocation2 + $0x18] sm:$0xff]
        %v789 = vld [vmem:[#allocation2 + $0x20] sm:$0xff]
        %v790 = vld [vmem:[#allocation2 + $0x28] sm:$0xff]
        %v791 = vld [vmem:[%s405] sm:$0xff]
        %v792 = vld [vmem:[%s405 + $0x8] sm:$0xff]
        %vm793 = vcmask 523264
        %v794 = vsel %vm793, %v785, 0.0
        %795 = vadd.xlane.f32.xlu0 %v794
        %v796 = vpop.xlane.xlu0 %795
        %v797 = vsel %vm793, %v786, 0.0
        %798 = vadd.xlane.f32.xlu0 %v797
        %v799 = vpop.xlane.xlu0 %798
        %v800 = vsel %vm793, %v787, 0.0
        %801 = vadd.xlane.f32.xlu0 %v800
        %v802 = vpop.xlane.xlu0 %801
        %v803 = vsel %vm793, %v788, 0.0
        %804 = vadd.xlane.f32.xlu0 %v803
        %v805 = vpop.xlane.xlu0 %804
        %v806 = vsel %vm793, %v789, 0.0
        %807 = vadd.xlane.f32.xlu0 %v806
        %v808 = vpop.xlane.xlu0 %807
        %v809 = vsel %vm793, %v790, 0.0
        %810 = vadd.xlane.f32.xlu0 %v809
        %v811 = vpop.xlane.xlu0 %810
        %v812 = vrcp.pop 64.0
        %v813 = vmul.f32 64.0, %v812
        %v814 = vsub.f32 1.0, %v813
        %v815 = vmul.f32 %v812, %v814
        %v816 = vadd.f32 %v812, %v815
        %vm817 = vweird.f32 %v812
        %v818 = vsel %vm817, %v812, %v816
        %v819 = vmul.f32 %v796, %v818
        %v820 = vmul.f32 %v799, %v818
        %v821 = vmul.f32 %v802, %v818
        %v822 = vmul.f32 %v805, %v818
        %v823 = vmul.f32 %v808, %v818
        %v824 = vmul.f32 %v811, %v818
        %v825 = vsub.f32 %v785, %v819
        %v826 = vsub.f32 %v786, %v820
        %v827 = vsub.f32 %v787, %v821
        %v828 = vsub.f32 %v788, %v822
        %v829 = vsub.f32 %v789, %v823
        %v830 = vsub.f32 %v790, %v824
        %v831 = vmul.f32 %v825, %v825
        %v832 = vmul.f32 %v826, %v826
        %v833 = vmul.f32 %v827, %v827
        %v834 = vmul.f32 %v828, %v828
        %v835 = vmul.f32 %v829, %v829
        %v836 = vmul.f32 %v830, %v830
        %v837 = vsel %vm793, %v831, 0.0
        %838 = vadd.xlane.f32.xlu0 %v837
        %v839 = vpop.xlane.xlu0 %838
        %v840 = vsel %vm793, %v832, 0.0
        %841 = vadd.xlane.f32.xlu0 %v840
        %v842 = vpop.xlane.xlu0 %841
        %v843 = vsel %vm793, %v833, 0.0
        %844 = vadd.xlane.f32.xlu0 %v843
        %v845 = vpop.xlane.xlu0 %844
        %v846 = vsel %vm793, %v834, 0.0
        %847 = vadd.xlane.f32.xlu0 %v846
        %v848 = vpop.xlane.xlu0 %847
        %v849 = vsel %vm793, %v835, 0.0
        %850 = vadd.xlane.f32.xlu0 %v849
        %v851 = vpop.xlane.xlu0 %850
        %v852 = vsel %vm793, %v836, 0.0
        %853 = vadd.xlane.f32.xlu0 %v852
        %v854 = vpop.xlane.xlu0 %853
        %v855 = vmul.f32 %v839, %v818
        %v856 = vmul.f32 %v842, %v818
        %v857 = vmul.f32 %v845, %v818
        %v858 = vmul.f32 %v848, %v818
        %v859 = vmul.f32 %v851, %v818
        %v860 = vmul.f32 %v854, %v818
        %v861 = vadd.f32 %v855, 1e-05
        %v862 = vadd.f32 %v856, 1e-05
        %v863 = vadd.f32 %v857, 1e-05
        %v864 = vadd.f32 %v858, 1e-05
        %v865 = vadd.f32 %v859, 1e-05
        %v866 = vadd.f32 %v860, 1e-05
        %v867 = vrsqrt.pop %v861
        %v868 = vmul.f32 %v867, %v861
        %v869 = vmul.f32 %v868, %v867
        %v870 = vmul.f32 0.5, %v869
        %v871 = vsub.f32 1.5, %v870
        %v872 = vmul.f32 %v867, %v871
        %vm873 = vweird.f32 %v861
        %vm874 = vweird.f32 %v867
        %vm875 = vmor %vm873, %vm874
        %v876 = vsel %vm875, %v867, %v872
        %v877 = vrsqrt.pop %v862
        %v878 = vmul.f32 %v877, %v862
        %v879 = vmul.f32 %v878, %v877
        %v880 = vmul.f32 0.5, %v879
        %v881 = vsub.f32 1.5, %v880
        %v882 = vmul.f32 %v877, %v881
        %vm883 = vweird.f32 %v862
        %vm884 = vweird.f32 %v877
        %vm885 = vmor %vm883, %vm884
        %v886 = vsel %vm885, %v877, %v882
        %v887 = vrsqrt.pop %v863
        %v888 = vmul.f32 %v887, %v863
        %v889 = vmul.f32 %v888, %v887
        %v890 = vmul.f32 0.5, %v889
        %v891 = vsub.f32 1.5, %v890
        %v892 = vmul.f32 %v887, %v891
        %vm893 = vweird.f32 %v863
        %vm894 = vweird.f32 %v887
        %vm895 = vmor %vm893, %vm894
        %v896 = vsel %vm895, %v887, %v892
        %v897 = vrsqrt.pop %v864
        %v898 = vmul.f32 %v897, %v864
        %v899 = vmul.f32 %v898, %v897
        %v900 = vmul.f32 0.5, %v899
        %v901 = vsub.f32 1.5, %v900
        %v902 = vmul.f32 %v897, %v901
        %vm903 = vweird.f32 %v864
        %vm904 = vweird.f32 %v897
        %vm905 = vmor %vm903, %vm904
        %v906 = vsel %vm905, %v897, %v902
        %v907 = vrsqrt.pop %v865
        %v908 = vmul.f32 %v907, %v865
        %v909 = vmul.f32 %v908, %v907
        %v910 = vmul.f32 0.5, %v909
        %v911 = vsub.f32 1.5, %v910
        %v912 = vmul.f32 %v907, %v911
        %vm913 = vweird.f32 %v865
        %vm914 = vweird.f32 %v907
        %vm915 = vmor %vm913, %vm914
        %v916 = vsel %vm915, %v907, %v912
        %v917 = vrsqrt.pop %v866
        %v918 = vmul.f32 %v917, %v866
        %v919 = vmul.f32 %v918, %v917
        %v920 = vmul.f32 0.5, %v919
        %v921 = vsub.f32 1.5, %v920
        %v922 = vmul.f32 %v917, %v921
        %vm923 = vweird.f32 %v866
        %vm924 = vweird.f32 %v917
        %vm925 = vmor %vm923, %vm924
        %v926 = vsel %vm925, %v917, %v922
        %v927 = vmul.f32 %v825, %v876
        %v928 = vmul.f32 %v826, %v886
        %v929 = vmul.f32 %v827, %v896
        %v930 = vmul.f32 %v828, %v906
        %v931 = vmul.f32 %v829, %v916
        %v932 = vmul.f32 %v830, %v926
        %v933 = vperm.slane %v791, 0
        %v934 = vmul.f32 %v927, %v933
        %v935 = vmul.f32 %v928, %v933
        %v936 = vmul.f32 %v929, %v933
        %v937 = vmul.f32 %v930, %v933
        %v938 = vmul.f32 %v931, %v933
        %v939 = vmul.f32 %v932, %v933
        %v940 = vperm.slane %v791, 1
        %v941 = vadd.f32 %v934, %v940
        %v942 = vadd.f32 %v935, %v940
        %v943 = vadd.f32 %v936, %v940
        %v944 = vadd.f32 %v937, %v940
        %v945 = vadd.f32 %v938, %v940
        %v946 = vadd.f32 %v939, %v940
        %v947 = vpack.c.bf16 %v942, %v941
        %v948 = vpack.c.bf16 %v944, %v943
        %v949 = vpack.c.bf16 %v946, %v945
        %v950 = vld [vmem:[%s410] sm:$0xff]
        %v951 = vld [vmem:[%s410 + $0x8] sm:$0xff]
        %v952 = vld [vmem:[%s410 + $0x10] sm:$0xff]
        %v953 = vld [vmem:[%s410 + $0x18] sm:$0xff]
        %v954 = vld [vmem:[%s410 + $0x20] sm:$0xff]
        %v955 = vld [vmem:[%s410 + $0x28] sm:$0xff]
        %v956 = vld [vmem:[%s410 + $0x30] sm:$0xff]
        %v957 = vld [vmem:[%s410 + $0x38] sm:$0xff]
        %v958 = vperm.slane %v791, 2
        %v959 = vperm.slane %v792, 2
        %v968 = vunpack.c.l.b16 %v950
        %v969 = vunpack.c.h.b16 %v950
        %v970 = vunpack.c.l.b16 %v951
        %v971 = vunpack.c.h.b16 %v951
        %v972 = vunpack.c.l.b16 %v952
        %v973 = vunpack.c.h.b16 %v952
        %v974 = vunpack.c.l.b16 %v953
        %v975 = vunpack.c.h.b16 %v953
        %v976 = vunpack.c.l.b16 %v954
        %v977 = vunpack.c.h.b16 %v954
        %v978 = vunpack.c.l.b16 %v955
        %v979 = vunpack.c.h.b16 %v955
        %v980 = vunpack.c.l.b16 %v956
        %v981 = vunpack.c.h.b16 %v956
        %v982 = vunpack.c.l.b16 %v957
        %v983 = vunpack.c.h.b16 %v957
        %v984 = vpack.c.b16 %v970, %v968
        %v985 = vpack.c.b16 %v971, %v969
        %v986 = vpack.c.b16 %v974, %v972
        %v987 = vpack.c.b16 %v975, %v973
        %v988 = vpack.c.b16 %v978, %v976
        %v989 = vpack.c.b16 %v979, %v977
        %v990 = vpack.c.b16 %v982, %v980
        %v991 = vpack.c.b16 %v983, %v981
        %v1001 = vsel %vm793, %v947, 0
        %v1004 = vsel %vm793, %v948, 0
        %v1007 = vsel %vm793, %v949, 0
        %1009 = vmatpush.bf16.msra.mxu0 0
        %1010 = vmatpush.bf16.msra.mxu0 0
        %1011 = vmatpush.bf16.msra.mxu0 0
        %1012 = vmatpush.bf16.msra.mxu0 0
        %1013 = vmatpush.bf16.msra.mxu0 %v990
        %1014 = vmatpush.bf16.msra.mxu0 %v988
        %1015 = vmatpush.bf16.msra.mxu0 %v986
        %1016 = vmatpush.bf16.msra.mxu0 %v984
        %1017 = vmatmul.bf16.gmra.mxu0 %v1001
        %v1018 = vpop.f32.mrf.mxu0
        %v1019 = vadd.f32 %v958, %v1018
        %v1020 = vpop.f32.mrf.mxu0
        %v1021 = vadd.f32 %v958, %v1020
        %1022 = vmatmul.bf16.gmra.mxu0 %v1004
        %v1023 = vpop.f32.mrf.mxu0
        %v1024 = vadd.f32 %v958, %v1023
        %v1025 = vpop.f32.mrf.mxu0
        %v1026 = vadd.f32 %v958, %v1025
        %1027 = vmatmul.bf16.gmra.mxu0 %v1007
        %v1028 = vpop.f32.mrf.mxu0
        %v1029 = vadd.f32 %v958, %v1028
        %v1030 = vpop.f32.mrf.mxu0
        %v1031 = vadd.f32 %v958, %v1030
        %1032 = vdwg.mxu0
        %1033 = vmatpush.bf16.msra.mxu0 0
        %1034 = vmatpush.bf16.msra.mxu0 0
        %1035 = vmatpush.bf16.msra.mxu0 0
        %1036 = vmatpush.bf16.msra.mxu0 0
        %1037 = vmatpush.bf16.msra.mxu0 %v991
        %1038 = vmatpush.bf16.msra.mxu0 %v989
        %1039 = vmatpush.bf16.msra.mxu0 %v987
        %1040 = vmatpush.bf16.msra.mxu0 %v985
        %1041 = vmatmul.bf16.gmra.mxu0 %v1001
        %v1042 = vpop.f32.mrf.mxu0
        %v1043 = vadd.f32 %v959, %v1042
        %v1044 = vpop.f32.mrf.mxu0
        %v1045 = vadd.f32 %v959, %v1044
        %1046 = vmatmul.bf16.gmra.mxu0 %v1004
        %v1047 = vpop.f32.mrf.mxu0
        %v1048 = vadd.f32 %v959, %v1047
        %v1049 = vpop.f32.mrf.mxu0
        %v1050 = vadd.f32 %v959, %v1049
        %1051 = vmatmul.bf16.gmra.mxu0 %v1007
        %v1052 = vpop.f32.mrf.mxu0
        %v1053 = vadd.f32 %v959, %v1052
        %v1054 = vpop.f32.mrf.mxu0
        %v1055 = vadd.f32 %v959, %v1054
        %1056 = vdwg.mxu0
        %v1057 = vpack.c.bf16 %v1043, %v1019
        %v1058 = vpack.c.bf16 %v1045, %v1021
        %v1059 = vpack.c.bf16 %v1048, %v1024
        %v1060 = vpack.c.bf16 %v1050, %v1026
        %v1061 = vpack.c.bf16 %v1053, %v1029
        %v1062 = vpack.c.bf16 %v1055, %v1031
        %v1063 = vlaneseq
        %v1064 = vand.u32 %v1063, 127
        %vm1065 = vcmp.lt.s32.totalorder %v1064, 17
        %v1069 = vunpack.c.l.b16 %v1057
        %v1070 = vunpack.c.l.b16 %v1058
        %v1071 = vunpack.c.l.b16 %v1059
        %v1072 = vpack.c.b16 %v1070, %v1069
        %v1073 = vpack.c.b16 %v1071, %v1071
        %1074 = vrot.lane.b32.xlu0 %v1072, 64
        %v1075 = vpop.permute.xlu0 %1074
        %1076 = vrot.lane.b32.xlu0 %v1073, 64
        %v1077 = vpop.permute.xlu0 %1076
        %vm1078 = vcmask 130048
        %v1080 = vsel %vm1078, %v1072, 0
        %v1083 = vsel %vm1078, %v1073, 0
        %v1086 = vsel %vm1078, %v1075, 0
        %v1089 = vsel %vm1078, %v1077, 0
        %1091 = vmatpush.bf16.xpose.msra.mxu0 0
        %1092 = vmatpush.bf16.xpose.msra.mxu0 0
        %1093 = vmatpush.bf16.xpose.msra.mxu0 0
        %1094 = vmatpush.bf16.xpose.msra.mxu0 0
        %1095 = vmatpush.bf16.xpose.msra.mxu0 0
        %1096 = vmatpush.bf16.xpose.msra.mxu0 0
        %1097 = vmatpush.bf16.xpose.msra.mxu0 %v1089
        %1098 = vmatpush.bf16.xpose.msra.mxu0 %v1086
        %1099 = vmatmul.bf16.gmra.mxu0 %v1080
        %v1100 = vpop.f32.mrf.mxu0
        %v1101 = vadd.f32 0.0, %v1100
        %v1102 = vpop.f32.mrf.mxu0
        %v1103 = vadd.f32 0.0, %v1102
        %1104 = vmatmul.bf16.gmra.mxu0 %v1083
        %v1105 = vpop.f32.mrf.mxu0
        %v1106 = vadd.f32 0.0, %v1105
        %v1107 = vpop.f32.mrf.mxu0
        %1108 = vdwg.mxu0
        %v1109 = vmul.f32 %v1101, 0.25
        %v1110 = vmul.f32 %v1103, 0.25
        %v1111 = vmul.f32 %v1106, 0.25
        %v1112 = vsel %vm1065, %v1109, -1e+30
        %v1113 = vsel %vm1065, %v1110, -1e+30
        %v1114 = vsel %vm1065, %v1111, -1e+30
        %vm1115 = vcmask 195584
        %v1116 = vsel %vm1115, %v1112, -inf
        %1117 = vmax.xlane.f32.xlu0 %v1116
        %v1118 = vpop.xlane.xlu0 %1117
        %v1119 = vsel %vm1115, %v1113, -inf
        %1120 = vmax.xlane.f32.xlu0 %v1119
        %v1121 = vpop.xlane.xlu0 %1120
        %v1122 = vsel %vm1115, %v1114, -inf
        %1123 = vmax.xlane.f32.xlu0 %v1122
        %v1124 = vpop.xlane.xlu0 %1123
        %v1125 = vsub.f32 %v1112, %v1118
        %v1126 = vsub.f32 %v1113, %v1121
        %v1127 = vsub.f32 %v1114, %v1124
        %v1128 = vmul.f32 %v1125, 1.442695
        %v1129 = vpow.pop %v1128
        %v1130 = vmul.f32 %v1126, 1.442695
        %v1131 = vpow.pop %v1130
        %v1132 = vmul.f32 %v1127, 1.442695
        %v1133 = vpow.pop %v1132
        %v1134 = vsel %vm1115, %v1129, 0.0
        %1135 = vadd.xlane.f32.xlu0 %v1134
        %v1136 = vpop.xlane.xlu0 %1135
        %v1137 = vsel %vm1115, %v1131, 0.0
        %1138 = vadd.xlane.f32.xlu0 %v1137
        %v1139 = vpop.xlane.xlu0 %1138
        %v1140 = vsel %vm1115, %v1133, 0.0
        %1141 = vadd.xlane.f32.xlu0 %v1140
        %v1142 = vpop.xlane.xlu0 %1141
        %v1143 = vrcp.pop %v1136
        %v1144 = vmul.f32 %v1136, %v1143
        %v1145 = vsub.f32 1.0, %v1144
        %v1146 = vmul.f32 %v1143, %v1145
        %v1147 = vadd.f32 %v1143, %v1146
        %vm1148 = vweird.f32 %v1136
        %vm1149 = vweird.f32 %v1143
        %vm1150 = vmor %vm1148, %vm1149
        %v1151 = vsel %vm1150, %v1143, %v1147
        %v1152 = vand.u32 2147483647, %v1136
        %vm1153 = vcmp.eq.f32.partialorder %v1152, 8.507059e+37
        %v1154 = vand.u32 %v1136, 2147483648
        %v1155 = vor.u32 1.1754944e-38, %v1154
        %v1156 = vsel %vm1153, %v1155, %v1151
        %v1157 = vrcp.pop %v1139
        %v1158 = vmul.f32 %v1139, %v1157
        %v1159 = vsub.f32 1.0, %v1158
        %v1160 = vmul.f32 %v1157, %v1159
        %v1161 = vadd.f32 %v1157, %v1160
        %vm1162 = vweird.f32 %v1139
        %vm1163 = vweird.f32 %v1157
        %vm1164 = vmor %vm1162, %vm1163
        %v1165 = vsel %vm1164, %v1157, %v1161
        %v1166 = vand.u32 2147483647, %v1139
        %vm1167 = vcmp.eq.f32.partialorder %v1166, 8.507059e+37
        %v1168 = vand.u32 %v1139, 2147483648
        %v1169 = vor.u32 1.1754944e-38, %v1168
        %v1170 = vsel %vm1167, %v1169, %v1165
        %v1171 = vrcp.pop %v1142
        %v1172 = vmul.f32 %v1142, %v1171
        %v1173 = vsub.f32 1.0, %v1172
        %v1174 = vmul.f32 %v1171, %v1173
        %v1175 = vadd.f32 %v1171, %v1174
        %vm1176 = vweird.f32 %v1142
        %vm1177 = vweird.f32 %v1171
        %vm1178 = vmor %vm1176, %vm1177
        %v1179 = vsel %vm1178, %v1171, %v1175
        %v1180 = vand.u32 2147483647, %v1142
        %vm1181 = vcmp.eq.f32.partialorder %v1180, 8.507059e+37
        %v1182 = vand.u32 %v1142, 2147483648
        %v1183 = vor.u32 1.1754944e-38, %v1182
        %v1184 = vsel %vm1181, %v1183, %v1179
        %v1185 = vmul.f32 %v1129, %v1156
        %v1186 = vmul.f32 %v1131, %v1170
        %v1187 = vmul.f32 %v1133, %v1184
        %v1188 = vpack.c.bf16 %v1186, %v1185
        %v1189 = vpack.c.bf16 %v1187, %v1187
        %v1190 = vunpack.c.h.b16 %v1057
        %v1191 = vunpack.c.h.b16 %v1058
        %v1192 = vunpack.c.h.b16 %v1059
        %v1193 = vpack.c.b16 %v1191, %v1190
        %v1194 = vpack.c.b16 %v1192, %v1192
        %v1197 = vsel %vm1115, %v1188, 0
        %v1200 = vsel %vm1115, %v1189, 0
        %vm1202 = vcmask 1043456
        %v1204 = vsel %vm1202, %v1194, 0
        %1206 = vmatpush.bf16.msra.mxu0 0
        %1207 = vmatpush.bf16.msra.mxu0 0
        %1208 = vmatpush.bf16.msra.mxu0 0
        %1209 = vmatpush.bf16.msra.mxu0 0
        %1210 = vmatpush.bf16.msra.mxu0 0
        %1211 = vmatpush.bf16.msra.mxu0 0
        %1212 = vmatpush.bf16.msra.mxu0 %v1204
        %1213 = vmatpush.bf16.msra.mxu0 %v1193
        %1214 = vmatmul.bf16.gmra.mxu0 %v1197
        %v1215 = vpop.f32.mrf.mxu0
        %v1216 = vadd.f32 0.0, %v1215
        %v1217 = vpop.f32.mrf.mxu0
        %v1218 = vadd.f32 0.0, %v1217
        %1219 = vmatmul.bf16.gmra.mxu0 %v1200
        %v1220 = vpop.f32.mrf.mxu0
        %v1221 = vadd.f32 0.0, %v1220
        %v1222 = vpop.f32.mrf.mxu0
        %1223 = vdwg.mxu0
        %1224 = vrot.lane.b32.xlu0 %v1072, 112
        %v1225 = vpop.permute.xlu0 %1224
        %1226 = vrot.lane.b32.xlu0 %v1073, 112
        %v1227 = vpop.permute.xlu0 %1226
        %1228 = vrot.lane.b32.xlu0 %v1072, 48
        %v1229 = vpop.permute.xlu0 %1228
        %1230 = vrot.lane.b32.xlu0 %v1073, 48
        %v1231 = vpop.permute.xlu0 %1230
        %v1233 = vsel %vm1078, %v1225, 0
        %v1236 = vsel %vm1078, %v1227, 0
        %v1239 = vsel %vm1078, %v1229, 0
        %v1242 = vsel %vm1078, %v1231, 0
        %1244 = vmatpush.bf16.xpose.msra.mxu0 0
        %1245 = vmatpush.bf16.xpose.msra.mxu0 0
        %1246 = vmatpush.bf16.xpose.msra.mxu0 0
        %1247 = vmatpush.bf16.xpose.msra.mxu0 0
        %1248 = vmatpush.bf16.xpose.msra.mxu0 0
        %1249 = vmatpush.bf16.xpose.msra.mxu0 0
        %1250 = vmatpush.bf16.xpose.msra.mxu0 %v1242
        %1251 = vmatpush.bf16.xpose.msra.mxu0 %v1239
        %1252 = vmatmul.bf16.gmra.mxu0 %v1233
        %v1253 = vpop.f32.mrf.mxu0
        %v1254 = vadd.f32 0.0, %v1253
        %v1255 = vpop.f32.mrf.mxu0
        %v1256 = vadd.f32 0.0, %v1255
        %1257 = vmatmul.bf16.gmra.mxu0 %v1236
        %v1258 = vpop.f32.mrf.mxu0
        %v1259 = vadd.f32 0.0, %v1258
        %v1260 = vpop.f32.mrf.mxu0
        %1261 = vdwg.mxu0
        %v1262 = vmul.f32 %v1254, 0.25
        %v1263 = vmul.f32 %v1256, 0.25
        %v1264 = vmul.f32 %v1259, 0.25
        %v1265 = vsel %vm1065, %v1262, -1e+30
        %v1266 = vsel %vm1065, %v1263, -1e+30
        %v1267 = vsel %vm1065, %v1264, -1e+30
        %v1268 = vsel %vm1115, %v1265, -inf
        %1269 = vmax.xlane.f32.xlu0 %v1268
        %v1270 = vpop.xlane.xlu0 %1269
        %v1271 = vsel %vm1115, %v1266, -inf
        %1272 = vmax.xlane.f32.xlu0 %v1271
        %v1273 = vpop.xlane.xlu0 %1272
        %v1274 = vsel %vm1115, %v1267, -inf
        %1275 = vmax.xlane.f32.xlu0 %v1274
        %v1276 = vpop.xlane.xlu0 %1275
        %v1277 = vsub.f32 %v1265, %v1270
        %v1278 = vsub.f32 %v1266, %v1273
        %v1279 = vsub.f32 %v1267, %v1276
        %v1280 = vmul.f32 %v1277, 1.442695
        %v1281 = vpow.pop %v1280
        %v1282 = vmul.f32 %v1278, 1.442695
        %v1283 = vpow.pop %v1282
        %v1284 = vmul.f32 %v1279, 1.442695
        %v1285 = vpow.pop %v1284
        %v1286 = vsel %vm1115, %v1281, 0.0
        %1287 = vadd.xlane.f32.xlu0 %v1286
        %v1288 = vpop.xlane.xlu0 %1287
        %v1289 = vsel %vm1115, %v1283, 0.0
        %1290 = vadd.xlane.f32.xlu0 %v1289
        %v1291 = vpop.xlane.xlu0 %1290
        %v1292 = vsel %vm1115, %v1285, 0.0
        %1293 = vadd.xlane.f32.xlu0 %v1292
        %v1294 = vpop.xlane.xlu0 %1293
        %v1295 = vrcp.pop %v1288
        %v1296 = vmul.f32 %v1288, %v1295
        %v1297 = vsub.f32 1.0, %v1296
        %v1298 = vmul.f32 %v1295, %v1297
        %v1299 = vadd.f32 %v1295, %v1298
        %vm1300 = vweird.f32 %v1288
        %vm1301 = vweird.f32 %v1295
        %vm1302 = vmor %vm1300, %vm1301
        %v1303 = vsel %vm1302, %v1295, %v1299
        %v1304 = vand.u32 2147483647, %v1288
        %vm1305 = vcmp.eq.f32.partialorder %v1304, 8.507059e+37
        %v1306 = vand.u32 %v1288, 2147483648
        %v1307 = vor.u32 1.1754944e-38, %v1306
        %v1308 = vsel %vm1305, %v1307, %v1303
        %v1309 = vrcp.pop %v1291
        %v1310 = vmul.f32 %v1291, %v1309
        %v1311 = vsub.f32 1.0, %v1310
        %v1312 = vmul.f32 %v1309, %v1311
        %v1313 = vadd.f32 %v1309, %v1312
        %vm1314 = vweird.f32 %v1291
        %vm1315 = vweird.f32 %v1309
        %vm1316 = vmor %vm1314, %vm1315
        %v1317 = vsel %vm1316, %v1309, %v1313
        %v1318 = vand.u32 2147483647, %v1291
        %vm1319 = vcmp.eq.f32.partialorder %v1318, 8.507059e+37
        %v1320 = vand.u32 %v1291, 2147483648
        %v1321 = vor.u32 1.1754944e-38, %v1320
        %v1322 = vsel %vm1319, %v1321, %v1317
        %v1323 = vrcp.pop %v1294
        %v1324 = vmul.f32 %v1294, %v1323
        %v1325 = vsub.f32 1.0, %v1324
        %v1326 = vmul.f32 %v1323, %v1325
        %v1327 = vadd.f32 %v1323, %v1326
        %vm1328 = vweird.f32 %v1294
        %vm1329 = vweird.f32 %v1323
        %vm1330 = vmor %vm1328, %vm1329
        %v1331 = vsel %vm1330, %v1323, %v1327
        %v1332 = vand.u32 2147483647, %v1294
        %vm1333 = vcmp.eq.f32.partialorder %v1332, 8.507059e+37
        %v1334 = vand.u32 %v1294, 2147483648
        %v1335 = vor.u32 1.1754944e-38, %v1334
        %v1336 = vsel %vm1333, %v1335, %v1331
        %v1337 = vmul.f32 %v1281, %v1308
        %v1338 = vmul.f32 %v1283, %v1322
        %v1339 = vmul.f32 %v1285, %v1336
        %v1340 = vpack.c.bf16 %v1338, %v1337
        %v1341 = vpack.c.bf16 %v1339, %v1339
        %1342 = vrot.lane.b32.xlu0 %v1193, 112
        %v1343 = vpop.permute.xlu0 %1342
        %1344 = vrot.lane.b32.xlu0 %v1194, 112
        %v1345 = vpop.permute.xlu0 %1344
        %v1348 = vsel %vm1115, %v1340, 0
        %v1351 = vsel %vm1115, %v1341, 0
        %v1354 = vsel %vm1202, %v1345, 0
        %1356 = vmatpush.bf16.msra.mxu0 0
        %1357 = vmatpush.bf16.msra.mxu0 0
        %1358 = vmatpush.bf16.msra.mxu0 0
        %1359 = vmatpush.bf16.msra.mxu0 0
        %1360 = vmatpush.bf16.msra.mxu0 0
        %1361 = vmatpush.bf16.msra.mxu0 0
        %1362 = vmatpush.bf16.msra.mxu0 %v1354
        %1363 = vmatpush.bf16.msra.mxu0 %v1343
        %1364 = vmatmul.bf16.gmra.mxu0 %v1348
        %v1365 = vpop.f32.mrf.mxu0
        %v1366 = vadd.f32 0.0, %v1365
        %v1367 = vpop.f32.mrf.mxu0
        %v1368 = vadd.f32 0.0, %v1367
        %1369 = vmatmul.bf16.gmra.mxu0 %v1351
        %v1370 = vpop.f32.mrf.mxu0
        %v1371 = vadd.f32 0.0, %v1370
        %v1372 = vpop.f32.mrf.mxu0
        %1373 = vdwg.mxu0
        %1374 = vrot.lane.b32.xlu0 %v1072, 96
        %v1375 = vpop.permute.xlu0 %1374
        %1376 = vrot.lane.b32.xlu0 %v1073, 96
        %v1377 = vpop.permute.xlu0 %1376
        %1378 = vrot.lane.b32.xlu0 %v1072, 32
        %v1379 = vpop.permute.xlu0 %1378
        %1380 = vrot.lane.b32.xlu0 %v1073, 32
        %v1381 = vpop.permute.xlu0 %1380
        %v1383 = vsel %vm1078, %v1375, 0
        %v1386 = vsel %vm1078, %v1377, 0
        %v1389 = vsel %vm1078, %v1379, 0
        %v1392 = vsel %vm1078, %v1381, 0
        %1394 = vmatpush.bf16.xpose.msra.mxu0 0
        %1395 = vmatpush.bf16.xpose.msra.mxu0 0
        %1396 = vmatpush.bf16.xpose.msra.mxu0 0
        %1397 = vmatpush.bf16.xpose.msra.mxu0 0
        %1398 = vmatpush.bf16.xpose.msra.mxu0 0
        %1399 = vmatpush.bf16.xpose.msra.mxu0 0
        %1400 = vmatpush.bf16.xpose.msra.mxu0 %v1392
        %1401 = vmatpush.bf16.xpose.msra.mxu0 %v1389
        %1402 = vmatmul.bf16.gmra.mxu0 %v1383
        %v1403 = vpop.f32.mrf.mxu0
        %v1404 = vadd.f32 0.0, %v1403
        %v1405 = vpop.f32.mrf.mxu0
        %v1406 = vadd.f32 0.0, %v1405
        %1407 = vmatmul.bf16.gmra.mxu0 %v1386
        %v1408 = vpop.f32.mrf.mxu0
        %v1409 = vadd.f32 0.0, %v1408
        %v1410 = vpop.f32.mrf.mxu0
        %1411 = vdwg.mxu0
        %v1412 = vmul.f32 %v1404, 0.25
        %v1413 = vmul.f32 %v1406, 0.25
        %v1414 = vmul.f32 %v1409, 0.25
        %v1415 = vsel %vm1065, %v1412, -1e+30
        %v1416 = vsel %vm1065, %v1413, -1e+30
        %v1417 = vsel %vm1065, %v1414, -1e+30
        %v1418 = vsel %vm1115, %v1415, -inf
        %1419 = vmax.xlane.f32.xlu0 %v1418
        %v1420 = vpop.xlane.xlu0 %1419
        %v1421 = vsel %vm1115, %v1416, -inf
        %1422 = vmax.xlane.f32.xlu0 %v1421
        %v1423 = vpop.xlane.xlu0 %1422
        %v1424 = vsel %vm1115, %v1417, -inf
        %1425 = vmax.xlane.f32.xlu0 %v1424
        %v1426 = vpop.xlane.xlu0 %1425
        %v1427 = vsub.f32 %v1415, %v1420
        %v1428 = vsub.f32 %v1416, %v1423
        %v1429 = vsub.f32 %v1417, %v1426
        %v1430 = vmul.f32 %v1427, 1.442695
        %v1431 = vpow.pop %v1430
        %v1432 = vmul.f32 %v1428, 1.442695
        %v1433 = vpow.pop %v1432
        %v1434 = vmul.f32 %v1429, 1.442695
        %v1435 = vpow.pop %v1434
        %v1436 = vsel %vm1115, %v1431, 0.0
        %1437 = vadd.xlane.f32.xlu0 %v1436
        %v1438 = vpop.xlane.xlu0 %1437
        %v1439 = vsel %vm1115, %v1433, 0.0
        %1440 = vadd.xlane.f32.xlu0 %v1439
        %v1441 = vpop.xlane.xlu0 %1440
        %v1442 = vsel %vm1115, %v1435, 0.0
        %1443 = vadd.xlane.f32.xlu0 %v1442
        %v1444 = vpop.xlane.xlu0 %1443
        %v1445 = vrcp.pop %v1438
        %v1446 = vmul.f32 %v1438, %v1445
        %v1447 = vsub.f32 1.0, %v1446
        %v1448 = vmul.f32 %v1445, %v1447
        %v1449 = vadd.f32 %v1445, %v1448
        %vm1450 = vweird.f32 %v1438
        %vm1451 = vweird.f32 %v1445
        %vm1452 = vmor %vm1450, %vm1451
        %v1453 = vsel %vm1452, %v1445, %v1449
        %v1454 = vand.u32 2147483647, %v1438
        %vm1455 = vcmp.eq.f32.partialorder %v1454, 8.507059e+37
        %v1456 = vand.u32 %v1438, 2147483648
        %v1457 = vor.u32 1.1754944e-38, %v1456
        %v1458 = vsel %vm1455, %v1457, %v1453
        %v1459 = vrcp.pop %v1441
        %v1460 = vmul.f32 %v1441, %v1459
        %v1461 = vsub.f32 1.0, %v1460
        %v1462 = vmul.f32 %v1459, %v1461
        %v1463 = vadd.f32 %v1459, %v1462
        %vm1464 = vweird.f32 %v1441
        %vm1465 = vweird.f32 %v1459
        %vm1466 = vmor %vm1464, %vm1465
        %v1467 = vsel %vm1466, %v1459, %v1463
        %v1468 = vand.u32 2147483647, %v1441
        %vm1469 = vcmp.eq.f32.partialorder %v1468, 8.507059e+37
        %v1470 = vand.u32 %v1441, 2147483648
        %v1471 = vor.u32 1.1754944e-38, %v1470
        %v1472 = vsel %vm1469, %v1471, %v1467
        %v1473 = vrcp.pop %v1444
        %v1474 = vmul.f32 %v1444, %v1473
        %v1475 = vsub.f32 1.0, %v1474
        %v1476 = vmul.f32 %v1473, %v1475
        %v1477 = vadd.f32 %v1473, %v1476
        %vm1478 = vweird.f32 %v1444
        %vm1479 = vweird.f32 %v1473
        %vm1480 = vmor %vm1478, %vm1479
        %v1481 = vsel %vm1480, %v1473, %v1477
        %v1482 = vand.u32 2147483647, %v1444
        %vm1483 = vcmp.eq.f32.partialorder %v1482, 8.507059e+37
        %v1484 = vand.u32 %v1444, 2147483648
        %v1485 = vor.u32 1.1754944e-38, %v1484
        %v1486 = vsel %vm1483, %v1485, %v1481
        %v1487 = vmul.f32 %v1431, %v1458
        %v1488 = vmul.f32 %v1433, %v1472
        %v1489 = vmul.f32 %v1435, %v1486
        %v1490 = vpack.c.bf16 %v1488, %v1487
        %v1491 = vpack.c.bf16 %v1489, %v1489
        %1492 = vrot.lane.b32.xlu0 %v1193, 96
        %v1493 = vpop.permute.xlu0 %1492
        %1494 = vrot.lane.b32.xlu0 %v1194, 96
        %v1495 = vpop.permute.xlu0 %1494
        %v1498 = vsel %vm1115, %v1490, 0
        %v1501 = vsel %vm1115, %v1491, 0
        %v1504 = vsel %vm1202, %v1495, 0
        %1506 = vmatpush.bf16.msra.mxu0 0
        %1507 = vmatpush.bf16.msra.mxu0 0
        %1508 = vmatpush.bf16.msra.mxu0 0
        %1509 = vmatpush.bf16.msra.mxu0 0
        %1510 = vmatpush.bf16.msra.mxu0 0
        %1511 = vmatpush.bf16.msra.mxu0 0
        %1512 = vmatpush.bf16.msra.mxu0 %v1504
        %1513 = vmatpush.bf16.msra.mxu0 %v1493
        %1514 = vmatmul.bf16.gmra.mxu0 %v1498
        %v1515 = vpop.f32.mrf.mxu0
        %v1516 = vadd.f32 0.0, %v1515
        %v1517 = vpop.f32.mrf.mxu0
        %v1518 = vadd.f32 0.0, %v1517
        %1519 = vmatmul.bf16.gmra.mxu0 %v1501
        %v1520 = vpop.f32.mrf.mxu0
        %v1521 = vadd.f32 0.0, %v1520
        %v1522 = vpop.f32.mrf.mxu0
        %1523 = vdwg.mxu0
        %1524 = vrot.lane.b32.xlu0 %v1072, 80
        %v1525 = vpop.permute.xlu0 %1524
        %1526 = vrot.lane.b32.xlu0 %v1073, 80
        %v1527 = vpop.permute.xlu0 %1526
        %1528 = vrot.lane.b32.xlu0 %v1072, 16
        %v1529 = vpop.permute.xlu0 %1528
        %1530 = vrot.lane.b32.xlu0 %v1073, 16
        %v1531 = vpop.permute.xlu0 %1530
        %v1533 = vsel %vm1078, %v1525, 0
        %v1536 = vsel %vm1078, %v1527, 0
        %v1539 = vsel %vm1078, %v1529, 0
        %v1542 = vsel %vm1078, %v1531, 0
        %1544 = vmatpush.bf16.xpose.msra.mxu0 0
        %1545 = vmatpush.bf16.xpose.msra.mxu0 0
        %1546 = vmatpush.bf16.xpose.msra.mxu0 0
        %1547 = vmatpush.bf16.xpose.msra.mxu0 0
        %1548 = vmatpush.bf16.xpose.msra.mxu0 0
        %1549 = vmatpush.bf16.xpose.msra.mxu0 0
        %1550 = vmatpush.bf16.xpose.msra.mxu0 %v1542
        %1551 = vmatpush.bf16.xpose.msra.mxu0 %v1539
        %1552 = vmatmul.bf16.gmra.mxu0 %v1533
        %v1553 = vpop.f32.mrf.mxu0
        %v1554 = vadd.f32 0.0, %v1553
        %v1555 = vpop.f32.mrf.mxu0
        %v1556 = vadd.f32 0.0, %v1555
        %1557 = vmatmul.bf16.gmra.mxu0 %v1536
        %v1558 = vpop.f32.mrf.mxu0
        %v1559 = vadd.f32 0.0, %v1558
        %v1560 = vpop.f32.mrf.mxu0
        %1561 = vdwg.mxu0
        %v1562 = vmul.f32 %v1554, 0.25
        %v1563 = vmul.f32 %v1556, 0.25
        %v1564 = vmul.f32 %v1559, 0.25
        %v1565 = vsel %vm1065, %v1562, -1e+30
        %v1566 = vsel %vm1065, %v1563, -1e+30
        %v1567 = vsel %vm1065, %v1564, -1e+30
        %v1568 = vsel %vm1115, %v1565, -inf
        %1569 = vmax.xlane.f32.xlu0 %v1568
        %v1570 = vpop.xlane.xlu0 %1569
        %v1571 = vsel %vm1115, %v1566, -inf
        %1572 = vmax.xlane.f32.xlu0 %v1571
        %v1573 = vpop.xlane.xlu0 %1572
        %v1574 = vsel %vm1115, %v1567, -inf
        %1575 = vmax.xlane.f32.xlu0 %v1574
        %v1576 = vpop.xlane.xlu0 %1575
        %v1577 = vsub.f32 %v1565, %v1570
        %v1578 = vsub.f32 %v1566, %v1573
        %v1579 = vsub.f32 %v1567, %v1576
        %v1580 = vmul.f32 %v1577, 1.442695
        %v1581 = vpow.pop %v1580
        %v1582 = vmul.f32 %v1578, 1.442695
        %v1583 = vpow.pop %v1582
        %v1584 = vmul.f32 %v1579, 1.442695
        %v1585 = vpow.pop %v1584
        %v1586 = vsel %vm1115, %v1581, 0.0
        %1587 = vadd.xlane.f32.xlu0 %v1586
        %v1588 = vpop.xlane.xlu0 %1587
        %v1589 = vsel %vm1115, %v1583, 0.0
        %1590 = vadd.xlane.f32.xlu0 %v1589
        %v1591 = vpop.xlane.xlu0 %1590
        %v1592 = vsel %vm1115, %v1585, 0.0
        %1593 = vadd.xlane.f32.xlu0 %v1592
        %v1594 = vpop.xlane.xlu0 %1593
        %v1595 = vrcp.pop %v1588
        %v1596 = vmul.f32 %v1588, %v1595
        %v1597 = vsub.f32 1.0, %v1596
        %v1598 = vmul.f32 %v1595, %v1597
        %v1599 = vadd.f32 %v1595, %v1598
        %vm1600 = vweird.f32 %v1588
        %vm1601 = vweird.f32 %v1595
        %vm1602 = vmor %vm1600, %vm1601
        %v1603 = vsel %vm1602, %v1595, %v1599
        %v1604 = vand.u32 2147483647, %v1588
        %vm1605 = vcmp.eq.f32.partialorder %v1604, 8.507059e+37
        %v1606 = vand.u32 %v1588, 2147483648
        %v1607 = vor.u32 1.1754944e-38, %v1606
        %v1608 = vsel %vm1605, %v1607, %v1603
        %v1609 = vrcp.pop %v1591
        %v1610 = vmul.f32 %v1591, %v1609
        %v1611 = vsub.f32 1.0, %v1610
        %v1612 = vmul.f32 %v1609, %v1611
        %v1613 = vadd.f32 %v1609, %v1612
        %vm1614 = vweird.f32 %v1591
        %vm1615 = vweird.f32 %v1609
        %vm1616 = vmor %vm1614, %vm1615
        %v1617 = vsel %vm1616, %v1609, %v1613
        %v1618 = vand.u32 2147483647, %v1591
        %vm1619 = vcmp.eq.f32.partialorder %v1618, 8.507059e+37
        %v1620 = vand.u32 %v1591, 2147483648
        %v1621 = vor.u32 1.1754944e-38, %v1620
        %v1622 = vsel %vm1619, %v1621, %v1617
        %v1623 = vrcp.pop %v1594
        %v1624 = vmul.f32 %v1594, %v1623
        %v1625 = vsub.f32 1.0, %v1624
        %v1626 = vmul.f32 %v1623, %v1625
        %v1627 = vadd.f32 %v1623, %v1626
        %vm1628 = vweird.f32 %v1594
        %vm1629 = vweird.f32 %v1623
        %vm1630 = vmor %vm1628, %vm1629
        %v1631 = vsel %vm1630, %v1623, %v1627
        %v1632 = vand.u32 2147483647, %v1594
        %vm1633 = vcmp.eq.f32.partialorder %v1632, 8.507059e+37
        %v1634 = vand.u32 %v1594, 2147483648
        %v1635 = vor.u32 1.1754944e-38, %v1634
        %v1636 = vsel %vm1633, %v1635, %v1631
        %v1637 = vmul.f32 %v1581, %v1608
        %v1638 = vmul.f32 %v1583, %v1622
        %v1639 = vmul.f32 %v1585, %v1636
        %v1640 = vpack.c.bf16 %v1638, %v1637
        %v1641 = vpack.c.bf16 %v1639, %v1639
        %1642 = vrot.lane.b32.xlu0 %v1193, 80
        %v1643 = vpop.permute.xlu0 %1642
        %1644 = vrot.lane.b32.xlu0 %v1194, 80
        %v1645 = vpop.permute.xlu0 %1644
        %v1648 = vsel %vm1115, %v1640, 0
        %v1651 = vsel %vm1115, %v1641, 0
        %v1654 = vsel %vm1202, %v1645, 0
        %1656 = vmatpush.bf16.msra.mxu0 0
        %1657 = vmatpush.bf16.msra.mxu0 0
        %1658 = vmatpush.bf16.msra.mxu0 0
        %1659 = vmatpush.bf16.msra.mxu0 0
        %1660 = vmatpush.bf16.msra.mxu0 0
        %1661 = vmatpush.bf16.msra.mxu0 0
        %1662 = vmatpush.bf16.msra.mxu0 %v1654
        %1663 = vmatpush.bf16.msra.mxu0 %v1643
        %1664 = vmatmul.bf16.gmra.mxu0 %v1648
        %v1665 = vpop.f32.mrf.mxu0
        %v1666 = vadd.f32 0.0, %v1665
        %v1667 = vpop.f32.mrf.mxu0
        %v1668 = vadd.f32 0.0, %v1667
        %1669 = vmatmul.bf16.gmra.mxu0 %v1651
        %v1670 = vpop.f32.mrf.mxu0
        %v1671 = vadd.f32 0.0, %v1670
        %v1672 = vpop.f32.mrf.mxu0
        %1673 = vdwg.mxu0
        %1677 = vrot.lane.b32.xlu0 %v1366, 16
        %v1678 = vpop.permute.xlu0 %1677
        %1679 = vrot.lane.b32.xlu0 %v1368, 16
        %v1680 = vpop.permute.xlu0 %1679
        %1681 = vrot.lane.b32.xlu0 %v1371, 16
        %v1682 = vpop.permute.xlu0 %1681
        %1689 = vrot.lane.b32.xlu0 %v1516, 32
        %v1690 = vpop.permute.xlu0 %1689
        %1691 = vrot.lane.b32.xlu0 %v1518, 32
        %v1692 = vpop.permute.xlu0 %1691
        %1693 = vrot.lane.b32.xlu0 %v1521, 32
        %v1694 = vpop.permute.xlu0 %1693
        %1701 = vrot.lane.b32.xlu0 %v1666, 48
        %v1702 = vpop.permute.xlu0 %1701
        %1703 = vrot.lane.b32.xlu0 %v1668, 48
        %v1704 = vpop.permute.xlu0 %1703
        %1705 = vrot.lane.b32.xlu0 %v1671, 48
        %v1706 = vpop.permute.xlu0 %1705
        %v1710 = vsel %vm1078, %v1216, %v1678
        %v1711 = vsel %vm1078, %v1218, %v1680
        %v1712 = vsel %vm1078, %v1221, %v1682
        %vm1713 = vcmask 261120
        %v1714 = vsel %vm1713, %v1710, %v1690
        %v1715 = vsel %vm1713, %v1711, %v1692
        %v1716 = vsel %vm1713, %v1712, %v1694
        %vm1717 = vcmask 392192
        %v1718 = vsel %vm1717, %v1714, %v1702
        %v1719 = vsel %vm1717, %v1715, %v1704
        %v1720 = vsel %vm1717, %v1716, %v1706
        %v1724 = vunpack.c.l.b16 %v1060
        %v1725 = vunpack.c.l.b16 %v1061
        %v1726 = vunpack.c.l.b16 %v1062
        %v1727 = vpack.c.b16 %v1725, %v1724
        %v1728 = vpack.c.b16 %v1726, %v1726
        %1729 = vrot.lane.b32.xlu0 %v1727, 64
        %v1730 = vpop.permute.xlu0 %1729
        %1731 = vrot.lane.b32.xlu0 %v1728, 64
        %v1732 = vpop.permute.xlu0 %1731
        %v1734 = vsel %vm1078, %v1727, 0
        %v1737 = vsel %vm1078, %v1728, 0
        %v1740 = vsel %vm1078, %v1730, 0
        %v1743 = vsel %vm1078, %v1732, 0
        %1745 = vmatpush.bf16.xpose.msra.mxu0 0
        %1746 = vmatpush.bf16.xpose.msra.mxu0 0
        %1747 = vmatpush.bf16.xpose.msra.mxu0 0
        %1748 = vmatpush.bf16.xpose.msra.mxu0 0
        %1749 = vmatpush.bf16.xpose.msra.mxu0 0
        %1750 = vmatpush.bf16.xpose.msra.mxu0 0
        %1751 = vmatpush.bf16.xpose.msra.mxu0 %v1743
        %1752 = vmatpush.bf16.xpose.msra.mxu0 %v1740
        %1753 = vmatmul.bf16.gmra.mxu0 %v1734
        %v1754 = vpop.f32.mrf.mxu0
        %v1755 = vadd.f32 0.0, %v1754
        %v1756 = vpop.f32.mrf.mxu0
        %v1757 = vadd.f32 0.0, %v1756
        %1758 = vmatmul.bf16.gmra.mxu0 %v1737
        %v1759 = vpop.f32.mrf.mxu0
        %v1760 = vadd.f32 0.0, %v1759
        %v1761 = vpop.f32.mrf.mxu0
        %1762 = vdwg.mxu0
        %v1763 = vmul.f32 %v1755, 0.25
        %v1764 = vmul.f32 %v1757, 0.25
        %v1765 = vmul.f32 %v1760, 0.25
        %v1766 = vsel %vm1065, %v1763, -1e+30
        %v1767 = vsel %vm1065, %v1764, -1e+30
        %v1768 = vsel %vm1065, %v1765, -1e+30
        %v1769 = vsel %vm1115, %v1766, -inf
        %1770 = vmax.xlane.f32.xlu0 %v1769
        %v1771 = vpop.xlane.xlu0 %1770
        %v1772 = vsel %vm1115, %v1767, -inf
        %1773 = vmax.xlane.f32.xlu0 %v1772
        %v1774 = vpop.xlane.xlu0 %1773
        %v1775 = vsel %vm1115, %v1768, -inf
        %1776 = vmax.xlane.f32.xlu0 %v1775
        %v1777 = vpop.xlane.xlu0 %1776
        %v1778 = vsub.f32 %v1766, %v1771
        %v1779 = vsub.f32 %v1767, %v1774
        %v1780 = vsub.f32 %v1768, %v1777
        %v1781 = vmul.f32 %v1778, 1.442695
        %v1782 = vpow.pop %v1781
        %v1783 = vmul.f32 %v1779, 1.442695
        %v1784 = vpow.pop %v1783
        %v1785 = vmul.f32 %v1780, 1.442695
        %v1786 = vpow.pop %v1785
        %v1787 = vsel %vm1115, %v1782, 0.0
        %1788 = vadd.xlane.f32.xlu0 %v1787
        %v1789 = vpop.xlane.xlu0 %1788
        %v1790 = vsel %vm1115, %v1784, 0.0
        %1791 = vadd.xlane.f32.xlu0 %v1790
        %v1792 = vpop.xlane.xlu0 %1791
        %v1793 = vsel %vm1115, %v1786, 0.0
        %1794 = vadd.xlane.f32.xlu0 %v1793
        %v1795 = vpop.xlane.xlu0 %1794
        %v1796 = vrcp.pop %v1789
        %v1797 = vmul.f32 %v1789, %v1796
        %v1798 = vsub.f32 1.0, %v1797
        %v1799 = vmul.f32 %v1796, %v1798
        %v1800 = vadd.f32 %v1796, %v1799
        %vm1801 = vweird.f32 %v1789
        %vm1802 = vweird.f32 %v1796
        %vm1803 = vmor %vm1801, %vm1802
        %v1804 = vsel %vm1803, %v1796, %v1800
        %v1805 = vand.u32 2147483647, %v1789
        %vm1806 = vcmp.eq.f32.partialorder %v1805, 8.507059e+37
        %v1807 = vand.u32 %v1789, 2147483648
        %v1808 = vor.u32 1.1754944e-38, %v1807
        %v1809 = vsel %vm1806, %v1808, %v1804
        %v1810 = vrcp.pop %v1792
        %v1811 = vmul.f32 %v1792, %v1810
        %v1812 = vsub.f32 1.0, %v1811
        %v1813 = vmul.f32 %v1810, %v1812
        %v1814 = vadd.f32 %v1810, %v1813
        %vm1815 = vweird.f32 %v1792
        %vm1816 = vweird.f32 %v1810
        %vm1817 = vmor %vm1815, %vm1816
        %v1818 = vsel %vm1817, %v1810, %v1814
        %v1819 = vand.u32 2147483647, %v1792
        %vm1820 = vcmp.eq.f32.partialorder %v1819, 8.507059e+37
        %v1821 = vand.u32 %v1792, 2147483648
        %v1822 = vor.u32 1.1754944e-38, %v1821
        %v1823 = vsel %vm1820, %v1822, %v1818
        %v1824 = vrcp.pop %v1795
        %v1825 = vmul.f32 %v1795, %v1824
        %v1826 = vsub.f32 1.0, %v1825
        %v1827 = vmul.f32 %v1824, %v1826
        %v1828 = vadd.f32 %v1824, %v1827
        %vm1829 = vweird.f32 %v1795
        %vm1830 = vweird.f32 %v1824
        %vm1831 = vmor %vm1829, %vm1830
        %v1832 = vsel %vm1831, %v1824, %v1828
        %v1833 = vand.u32 2147483647, %v1795
        %vm1834 = vcmp.eq.f32.partialorder %v1833, 8.507059e+37
        %v1835 = vand.u32 %v1795, 2147483648
        %v1836 = vor.u32 1.1754944e-38, %v1835
        %v1837 = vsel %vm1834, %v1836, %v1832
        %v1838 = vmul.f32 %v1782, %v1809
        %v1839 = vmul.f32 %v1784, %v1823
        %v1840 = vmul.f32 %v1786, %v1837
        %v1841 = vpack.c.bf16 %v1839, %v1838
        %v1842 = vpack.c.bf16 %v1840, %v1840
        %v1843 = vunpack.c.h.b16 %v1060
        %v1844 = vunpack.c.h.b16 %v1061
        %v1845 = vunpack.c.h.b16 %v1062
        %v1846 = vpack.c.b16 %v1844, %v1843
        %v1847 = vpack.c.b16 %v1845, %v1845
        %v1850 = vsel %vm1115, %v1841, 0
        %v1853 = vsel %vm1115, %v1842, 0
        %v1856 = vsel %vm1202, %v1847, 0
        %1858 = vmatpush.bf16.msra.mxu0 0
        %1859 = vmatpush.bf16.msra.mxu0 0
        %1860 = vmatpush.bf16.msra.mxu0 0
        %1861 = vmatpush.bf16.msra.mxu0 0
        %1862 = vmatpush.bf16.msra.mxu0 0
        %1863 = vmatpush.bf16.msra.mxu0 0
        %1864 = vmatpush.bf16.msra.mxu0 %v1856
        %1865 = vmatpush.bf16.msra.mxu0 %v1846
        %1866 = vmatmul.bf16.gmra.mxu0 %v1850
        %v1867 = vpop.f32.mrf.mxu0
        %v1868 = vadd.f32 0.0, %v1867
        %v1869 = vpop.f32.mrf.mxu0
        %v1870 = vadd.f32 0.0, %v1869
        %1871 = vmatmul.bf16.gmra.mxu0 %v1853
        %v1872 = vpop.f32.mrf.mxu0
        %v1873 = vadd.f32 0.0, %v1872
        %v1874 = vpop.f32.mrf.mxu0
        %1875 = vdwg.mxu0
        %1876 = vrot.lane.b32.xlu0 %v1727, 112
        %v1877 = vpop.permute.xlu0 %1876
        %1878 = vrot.lane.b32.xlu0 %v1728, 112
        %v1879 = vpop.permute.xlu0 %1878
        %1880 = vrot.lane.b32.xlu0 %v1727, 48
        %v1881 = vpop.permute.xlu0 %1880
        %1882 = vrot.lane.b32.xlu0 %v1728, 48
        %v1883 = vpop.permute.xlu0 %1882
        %v1885 = vsel %vm1078, %v1877, 0
        %v1888 = vsel %vm1078, %v1879, 0
        %v1891 = vsel %vm1078, %v1881, 0
        %v1894 = vsel %vm1078, %v1883, 0
        %1896 = vmatpush.bf16.xpose.msra.mxu0 0
        %1897 = vmatpush.bf16.xpose.msra.mxu0 0
        %1898 = vmatpush.bf16.xpose.msra.mxu0 0
        %1899 = vmatpush.bf16.xpose.msra.mxu0 0
        %1900 = vmatpush.bf16.xpose.msra.mxu0 0
        %1901 = vmatpush.bf16.xpose.msra.mxu0 0
        %1902 = vmatpush.bf16.xpose.msra.mxu0 %v1894
        %1903 = vmatpush.bf16.xpose.msra.mxu0 %v1891
        %1904 = vmatmul.bf16.gmra.mxu0 %v1885
        %v1905 = vpop.f32.mrf.mxu0
        %v1906 = vadd.f32 0.0, %v1905
        %v1907 = vpop.f32.mrf.mxu0
        %v1908 = vadd.f32 0.0, %v1907
        %1909 = vmatmul.bf16.gmra.mxu0 %v1888
        %v1910 = vpop.f32.mrf.mxu0
        %v1911 = vadd.f32 0.0, %v1910
        %v1912 = vpop.f32.mrf.mxu0
        %1913 = vdwg.mxu0
        %v1914 = vmul.f32 %v1906, 0.25
        %v1915 = vmul.f32 %v1908, 0.25
        %v1916 = vmul.f32 %v1911, 0.25
        %v1917 = vsel %vm1065, %v1914, -1e+30
        %v1918 = vsel %vm1065, %v1915, -1e+30
        %v1919 = vsel %vm1065, %v1916, -1e+30
        %v1920 = vsel %vm1115, %v1917, -inf
        %1921 = vmax.xlane.f32.xlu0 %v1920
        %v1922 = vpop.xlane.xlu0 %1921
        %v1923 = vsel %vm1115, %v1918, -inf
        %1924 = vmax.xlane.f32.xlu0 %v1923
        %v1925 = vpop.xlane.xlu0 %1924
        %v1926 = vsel %vm1115, %v1919, -inf
        %1927 = vmax.xlane.f32.xlu0 %v1926
        %v1928 = vpop.xlane.xlu0 %1927
        %v1929 = vsub.f32 %v1917, %v1922
        %v1930 = vsub.f32 %v1918, %v1925
        %v1931 = vsub.f32 %v1919, %v1928
        %v1932 = vmul.f32 %v1929, 1.442695
        %v1933 = vpow.pop %v1932
        %v1934 = vmul.f32 %v1930, 1.442695
        %v1935 = vpow.pop %v1934
        %v1936 = vmul.f32 %v1931, 1.442695
        %v1937 = vpow.pop %v1936
        %v1938 = vsel %vm1115, %v1933, 0.0
        %1939 = vadd.xlane.f32.xlu0 %v1938
        %v1940 = vpop.xlane.xlu0 %1939
        %v1941 = vsel %vm1115, %v1935, 0.0
        %1942 = vadd.xlane.f32.xlu0 %v1941
        %v1943 = vpop.xlane.xlu0 %1942
        %v1944 = vsel %vm1115, %v1937, 0.0
        %1945 = vadd.xlane.f32.xlu0 %v1944
        %v1946 = vpop.xlane.xlu0 %1945
        %v1947 = vrcp.pop %v1940
        %v1948 = vmul.f32 %v1940, %v1947
        %v1949 = vsub.f32 1.0, %v1948
        %v1950 = vmul.f32 %v1947, %v1949
        %v1951 = vadd.f32 %v1947, %v1950
        %vm1952 = vweird.f32 %v1940
        %vm1953 = vweird.f32 %v1947
        %vm1954 = vmor %vm1952, %vm1953
        %v1955 = vsel %vm1954, %v1947, %v1951
        %v1956 = vand.u32 2147483647, %v1940
        %vm1957 = vcmp.eq.f32.partialorder %v1956, 8.507059e+37
        %v1958 = vand.u32 %v1940, 2147483648
        %v1959 = vor.u32 1.1754944e-38, %v1958
        %v1960 = vsel %vm1957, %v1959, %v1955
        %v1961 = vrcp.pop %v1943
        %v1962 = vmul.f32 %v1943, %v1961
        %v1963 = vsub.f32 1.0, %v1962
        %v1964 = vmul.f32 %v1961, %v1963
        %v1965 = vadd.f32 %v1961, %v1964
        %vm1966 = vweird.f32 %v1943
        %vm1967 = vweird.f32 %v1961
        %vm1968 = vmor %vm1966, %vm1967
        %v1969 = vsel %vm1968, %v1961, %v1965
        %v1970 = vand.u32 2147483647, %v1943
        %vm1971 = vcmp.eq.f32.partialorder %v1970, 8.507059e+37
        %v1972 = vand.u32 %v1943, 2147483648
        %v1973 = vor.u32 1.1754944e-38, %v1972
        %v1974 = vsel %vm1971, %v1973, %v1969
        %v1975 = vrcp.pop %v1946
        %v1976 = vmul.f32 %v1946, %v1975
        %v1977 = vsub.f32 1.0, %v1976
        %v1978 = vmul.f32 %v1975, %v1977
        %v1979 = vadd.f32 %v1975, %v1978
        %vm1980 = vweird.f32 %v1946
        %vm1981 = vweird.f32 %v1975
        %vm1982 = vmor %vm1980, %vm1981
        %v1983 = vsel %vm1982, %v1975, %v1979
        %v1984 = vand.u32 2147483647, %v1946
        %vm1985 = vcmp.eq.f32.partialorder %v1984, 8.507059e+37
        %v1986 = vand.u32 %v1946, 2147483648
        %v1987 = vor.u32 1.1754944e-38, %v1986
        %v1988 = vsel %vm1985, %v1987, %v1983
        %v1989 = vmul.f32 %v1933, %v1960
        %v1990 = vmul.f32 %v1935, %v1974
        %v1991 = vmul.f32 %v1937, %v1988
        %v1992 = vpack.c.bf16 %v1990, %v1989
        %v1993 = vpack.c.bf16 %v1991, %v1991
        %1994 = vrot.lane.b32.xlu0 %v1846, 112
        %v1995 = vpop.permute.xlu0 %1994
        %1996 = vrot.lane.b32.xlu0 %v1847, 112
        %v1997 = vpop.permute.xlu0 %1996
        %v2000 = vsel %vm1115, %v1992, 0
        %v2003 = vsel %vm1115, %v1993, 0
        %v2006 = vsel %vm1202, %v1997, 0
        %2008 = vmatpush.bf16.msra.mxu0 0
        %2009 = vmatpush.bf16.msra.mxu0 0
        %2010 = vmatpush.bf16.msra.mxu0 0
        %2011 = vmatpush.bf16.msra.mxu0 0
        %2012 = vmatpush.bf16.msra.mxu0 0
        %2013 = vmatpush.bf16.msra.mxu0 0
        %2014 = vmatpush.bf16.msra.mxu0 %v2006
        %2015 = vmatpush.bf16.msra.mxu0 %v1995
        %2016 = vmatmul.bf16.gmra.mxu0 %v2000
        %v2017 = vpop.f32.mrf.mxu0
        %v2018 = vadd.f32 0.0, %v2017
        %v2019 = vpop.f32.mrf.mxu0
        %v2020 = vadd.f32 0.0, %v2019
        %2021 = vmatmul.bf16.gmra.mxu0 %v2003
        %v2022 = vpop.f32.mrf.mxu0
        %v2023 = vadd.f32 0.0, %v2022
        %v2024 = vpop.f32.mrf.mxu0
        %2025 = vdwg.mxu0
        %2026 = vrot.lane.b32.xlu0 %v1727, 96
        %v2027 = vpop.permute.xlu0 %2026
        %2028 = vrot.lane.b32.xlu0 %v1728, 96
        %v2029 = vpop.permute.xlu0 %2028
        %2030 = vrot.lane.b32.xlu0 %v1727, 32
        %v2031 = vpop.permute.xlu0 %2030
        %2032 = vrot.lane.b32.xlu0 %v1728, 32
        %v2033 = vpop.permute.xlu0 %2032
        %v2035 = vsel %vm1078, %v2027, 0
        %v2038 = vsel %vm1078, %v2029, 0
        %v2041 = vsel %vm1078, %v2031, 0
        %v2044 = vsel %vm1078, %v2033, 0
        %2046 = vmatpush.bf16.xpose.msra.mxu0 0
        %2047 = vmatpush.bf16.xpose.msra.mxu0 0
        %2048 = vmatpush.bf16.xpose.msra.mxu0 0
        %2049 = vmatpush.bf16.xpose.msra.mxu0 0
        %2050 = vmatpush.bf16.xpose.msra.mxu0 0
        %2051 = vmatpush.bf16.xpose.msra.mxu0 0
        %2052 = vmatpush.bf16.xpose.msra.mxu0 %v2044
        %2053 = vmatpush.bf16.xpose.msra.mxu0 %v2041
        %2054 = vmatmul.bf16.gmra.mxu0 %v2035
        %v2055 = vpop.f32.mrf.mxu0
        %v2056 = vadd.f32 0.0, %v2055
        %v2057 = vpop.f32.mrf.mxu0
        %v2058 = vadd.f32 0.0, %v2057
        %2059 = vmatmul.bf16.gmra.mxu0 %v2038
        %v2060 = vpop.f32.mrf.mxu0
        %v2061 = vadd.f32 0.0, %v2060
        %v2062 = vpop.f32.mrf.mxu0
        %2063 = vdwg.mxu0
        %v2064 = vmul.f32 %v2056, 0.25
        %v2065 = vmul.f32 %v2058, 0.25
        %v2066 = vmul.f32 %v2061, 0.25
        %v2067 = vsel %vm1065, %v2064, -1e+30
        %v2068 = vsel %vm1065, %v2065, -1e+30
        %v2069 = vsel %vm1065, %v2066, -1e+30
        %v2070 = vsel %vm1115, %v2067, -inf
        %2071 = vmax.xlane.f32.xlu0 %v2070
        %v2072 = vpop.xlane.xlu0 %2071
        %v2073 = vsel %vm1115, %v2068, -inf
        %2074 = vmax.xlane.f32.xlu0 %v2073
        %v2075 = vpop.xlane.xlu0 %2074
        %v2076 = vsel %vm1115, %v2069, -inf
        %2077 = vmax.xlane.f32.xlu0 %v2076
        %v2078 = vpop.xlane.xlu0 %2077
        %v2079 = vsub.f32 %v2067, %v2072
        %v2080 = vsub.f32 %v2068, %v2075
        %v2081 = vsub.f32 %v2069, %v2078
        %v2082 = vmul.f32 %v2079, 1.442695
        %v2083 = vpow.pop %v2082
        %v2084 = vmul.f32 %v2080, 1.442695
        %v2085 = vpow.pop %v2084
        %v2086 = vmul.f32 %v2081, 1.442695
        %v2087 = vpow.pop %v2086
        %v2088 = vsel %vm1115, %v2083, 0.0
        %2089 = vadd.xlane.f32.xlu0 %v2088
        %v2090 = vpop.xlane.xlu0 %2089
        %v2091 = vsel %vm1115, %v2085, 0.0
        %2092 = vadd.xlane.f32.xlu0 %v2091
        %v2093 = vpop.xlane.xlu0 %2092
        %v2094 = vsel %vm1115, %v2087, 0.0
        %2095 = vadd.xlane.f32.xlu0 %v2094
        %v2096 = vpop.xlane.xlu0 %2095
        %v2097 = vrcp.pop %v2090
        %v2098 = vmul.f32 %v2090, %v2097
        %v2099 = vsub.f32 1.0, %v2098
        %v2100 = vmul.f32 %v2097, %v2099
        %v2101 = vadd.f32 %v2097, %v2100
        %vm2102 = vweird.f32 %v2090
        %vm2103 = vweird.f32 %v2097
        %vm2104 = vmor %vm2102, %vm2103
        %v2105 = vsel %vm2104, %v2097, %v2101
        %v2106 = vand.u32 2147483647, %v2090
        %vm2107 = vcmp.eq.f32.partialorder %v2106, 8.507059e+37
        %v2108 = vand.u32 %v2090, 2147483648
        %v2109 = vor.u32 1.1754944e-38, %v2108
        %v2110 = vsel %vm2107, %v2109, %v2105
        %v2111 = vrcp.pop %v2093
        %v2112 = vmul.f32 %v2093, %v2111
        %v2113 = vsub.f32 1.0, %v2112
        %v2114 = vmul.f32 %v2111, %v2113
        %v2115 = vadd.f32 %v2111, %v2114
        %vm2116 = vweird.f32 %v2093
        %vm2117 = vweird.f32 %v2111
        %vm2118 = vmor %vm2116, %vm2117
        %v2119 = vsel %vm2118, %v2111, %v2115
        %v2120 = vand.u32 2147483647, %v2093
        %vm2121 = vcmp.eq.f32.partialorder %v2120, 8.507059e+37
        %v2122 = vand.u32 %v2093, 2147483648
        %v2123 = vor.u32 1.1754944e-38, %v2122
        %v2124 = vsel %vm2121, %v2123, %v2119
        %v2125 = vrcp.pop %v2096
        %v2126 = vmul.f32 %v2096, %v2125
        %v2127 = vsub.f32 1.0, %v2126
        %v2128 = vmul.f32 %v2125, %v2127
        %v2129 = vadd.f32 %v2125, %v2128
        %vm2130 = vweird.f32 %v2096
        %vm2131 = vweird.f32 %v2125
        %vm2132 = vmor %vm2130, %vm2131
        %v2133 = vsel %vm2132, %v2125, %v2129
        %v2134 = vand.u32 2147483647, %v2096
        %vm2135 = vcmp.eq.f32.partialorder %v2134, 8.507059e+37
        %v2136 = vand.u32 %v2096, 2147483648
        %v2137 = vor.u32 1.1754944e-38, %v2136
        %v2138 = vsel %vm2135, %v2137, %v2133
        %v2139 = vmul.f32 %v2083, %v2110
        %v2140 = vmul.f32 %v2085, %v2124
        %v2141 = vmul.f32 %v2087, %v2138
        %v2142 = vpack.c.bf16 %v2140, %v2139
        %v2143 = vpack.c.bf16 %v2141, %v2141
        %2144 = vrot.lane.b32.xlu0 %v1846, 96
        %v2145 = vpop.permute.xlu0 %2144
        %2146 = vrot.lane.b32.xlu0 %v1847, 96
        %v2147 = vpop.permute.xlu0 %2146
        %v2150 = vsel %vm1115, %v2142, 0
        %v2153 = vsel %vm1115, %v2143, 0
        %v2156 = vsel %vm1202, %v2147, 0
        %2158 = vmatpush.bf16.msra.mxu0 0
        %2159 = vmatpush.bf16.msra.mxu0 0
        %2160 = vmatpush.bf16.msra.mxu0 0
        %2161 = vmatpush.bf16.msra.mxu0 0
        %2162 = vmatpush.bf16.msra.mxu0 0
        %2163 = vmatpush.bf16.msra.mxu0 0
        %2164 = vmatpush.bf16.msra.mxu0 %v2156
        %2165 = vmatpush.bf16.msra.mxu0 %v2145
        %2166 = vmatmul.bf16.gmra.mxu0 %v2150
        %v2167 = vpop.f32.mrf.mxu0
        %v2168 = vadd.f32 0.0, %v2167
        %v2169 = vpop.f32.mrf.mxu0
        %v2170 = vadd.f32 0.0, %v2169
        %2171 = vmatmul.bf16.gmra.mxu0 %v2153
        %v2172 = vpop.f32.mrf.mxu0
        %v2173 = vadd.f32 0.0, %v2172
        %v2174 = vpop.f32.mrf.mxu0
        %2175 = vdwg.mxu0
        %2176 = vrot.lane.b32.xlu0 %v1727, 80
        %v2177 = vpop.permute.xlu0 %2176
        %2178 = vrot.lane.b32.xlu0 %v1728, 80
        %v2179 = vpop.permute.xlu0 %2178
        %2180 = vrot.lane.b32.xlu0 %v1727, 16
        %v2181 = vpop.permute.xlu0 %2180
        %2182 = vrot.lane.b32.xlu0 %v1728, 16
        %v2183 = vpop.permute.xlu0 %2182
        %v2185 = vsel %vm1078, %v2177, 0
        %v2188 = vsel %vm1078, %v2179, 0
        %v2191 = vsel %vm1078, %v2181, 0
        %v2194 = vsel %vm1078, %v2183, 0
        %2196 = vmatpush.bf16.xpose.msra.mxu0 0
        %2197 = vmatpush.bf16.xpose.msra.mxu0 0
        %2198 = vmatpush.bf16.xpose.msra.mxu0 0
        %2199 = vmatpush.bf16.xpose.msra.mxu0 0
        %2200 = vmatpush.bf16.xpose.msra.mxu0 0
        %2201 = vmatpush.bf16.xpose.msra.mxu0 0
        %2202 = vmatpush.bf16.xpose.msra.mxu0 %v2194
        %2203 = vmatpush.bf16.xpose.msra.mxu0 %v2191
        %2204 = vmatmul.bf16.gmra.mxu0 %v2185
        %v2205 = vpop.f32.mrf.mxu0
        %v2206 = vadd.f32 0.0, %v2205
        %v2207 = vpop.f32.mrf.mxu0
        %v2208 = vadd.f32 0.0, %v2207
        %2209 = vmatmul.bf16.gmra.mxu0 %v2188
        %v2210 = vpop.f32.mrf.mxu0
        %v2211 = vadd.f32 0.0, %v2210
        %v2212 = vpop.f32.mrf.mxu0
        %2213 = vdwg.mxu0
        %v2214 = vmul.f32 %v2206, 0.25
        %v2215 = vmul.f32 %v2208, 0.25
        %v2216 = vmul.f32 %v2211, 0.25
        %v2217 = vsel %vm1065, %v2214, -1e+30
        %v2218 = vsel %vm1065, %v2215, -1e+30
        %v2219 = vsel %vm1065, %v2216, -1e+30
        %v2220 = vsel %vm1115, %v2217, -inf
        %2221 = vmax.xlane.f32.xlu0 %v2220
        %v2222 = vpop.xlane.xlu0 %2221
        %v2223 = vsel %vm1115, %v2218, -inf
        %2224 = vmax.xlane.f32.xlu0 %v2223
        %v2225 = vpop.xlane.xlu0 %2224
        %v2226 = vsel %vm1115, %v2219, -inf
        %2227 = vmax.xlane.f32.xlu0 %v2226
        %v2228 = vpop.xlane.xlu0 %2227
        %v2229 = vsub.f32 %v2217, %v2222
        %v2230 = vsub.f32 %v2218, %v2225
        %v2231 = vsub.f32 %v2219, %v2228
        %v2232 = vmul.f32 %v2229, 1.442695
        %v2233 = vpow.pop %v2232
        %v2234 = vmul.f32 %v2230, 1.442695
        %v2235 = vpow.pop %v2234
        %v2236 = vmul.f32 %v2231, 1.442695
        %v2237 = vpow.pop %v2236
        %v2238 = vsel %vm1115, %v2233, 0.0
        %2239 = vadd.xlane.f32.xlu0 %v2238
        %v2240 = vpop.xlane.xlu0 %2239
        %v2241 = vsel %vm1115, %v2235, 0.0
        %2242 = vadd.xlane.f32.xlu0 %v2241
        %v2243 = vpop.xlane.xlu0 %2242
        %v2244 = vsel %vm1115, %v2237, 0.0
        %2245 = vadd.xlane.f32.xlu0 %v2244
        %v2246 = vpop.xlane.xlu0 %2245
        %v2247 = vrcp.pop %v2240
        %v2248 = vmul.f32 %v2240, %v2247
        %v2249 = vsub.f32 1.0, %v2248
        %v2250 = vmul.f32 %v2247, %v2249
        %v2251 = vadd.f32 %v2247, %v2250
        %vm2252 = vweird.f32 %v2240
        %vm2253 = vweird.f32 %v2247
        %vm2254 = vmor %vm2252, %vm2253
        %v2255 = vsel %vm2254, %v2247, %v2251
        %v2256 = vand.u32 2147483647, %v2240
        %vm2257 = vcmp.eq.f32.partialorder %v2256, 8.507059e+37
        %v2258 = vand.u32 %v2240, 2147483648
        %v2259 = vor.u32 1.1754944e-38, %v2258
        %v2260 = vsel %vm2257, %v2259, %v2255
        %v2261 = vrcp.pop %v2243
        %v2262 = vmul.f32 %v2243, %v2261
        %v2263 = vsub.f32 1.0, %v2262
        %v2264 = vmul.f32 %v2261, %v2263
        %v2265 = vadd.f32 %v2261, %v2264
        %vm2266 = vweird.f32 %v2243
        %vm2267 = vweird.f32 %v2261
        %vm2268 = vmor %vm2266, %vm2267
        %v2269 = vsel %vm2268, %v2261, %v2265
        %v2270 = vand.u32 2147483647, %v2243
        %vm2271 = vcmp.eq.f32.partialorder %v2270, 8.507059e+37
        %v2272 = vand.u32 %v2243, 2147483648
        %v2273 = vor.u32 1.1754944e-38, %v2272
        %v2274 = vsel %vm2271, %v2273, %v2269
        %v2275 = vrcp.pop %v2246
        %v2276 = vmul.f32 %v2246, %v2275
        %v2277 = vsub.f32 1.0, %v2276
        %v2278 = vmul.f32 %v2275, %v2277
        %v2279 = vadd.f32 %v2275, %v2278
        %vm2280 = vweird.f32 %v2246
        %vm2281 = vweird.f32 %v2275
        %vm2282 = vmor %vm2280, %vm2281
        %v2283 = vsel %vm2282, %v2275, %v2279
        %v2284 = vand.u32 2147483647, %v2246
        %vm2285 = vcmp.eq.f32.partialorder %v2284, 8.507059e+37
        %v2286 = vand.u32 %v2246, 2147483648
        %v2287 = vor.u32 1.1754944e-38, %v2286
        %v2288 = vsel %vm2285, %v2287, %v2283
        %v2289 = vmul.f32 %v2233, %v2260
        %v2290 = vmul.f32 %v2235, %v2274
        %v2291 = vmul.f32 %v2237, %v2288
        %v2292 = vpack.c.bf16 %v2290, %v2289
        %v2293 = vpack.c.bf16 %v2291, %v2291
        %2294 = vrot.lane.b32.xlu0 %v1846, 80
        %v2295 = vpop.permute.xlu0 %2294
        %2296 = vrot.lane.b32.xlu0 %v1847, 80
        %v2297 = vpop.permute.xlu0 %2296
        %v2300 = vsel %vm1115, %v2292, 0
        %v2303 = vsel %vm1115, %v2293, 0
        %v2306 = vsel %vm1202, %v2297, 0
        %2308 = vmatpush.bf16.msra.mxu0 0
        %2309 = vmatpush.bf16.msra.mxu0 0
        %2310 = vmatpush.bf16.msra.mxu0 0
        %2311 = vmatpush.bf16.msra.mxu0 0
        %2312 = vmatpush.bf16.msra.mxu0 0
        %2313 = vmatpush.bf16.msra.mxu0 0
        %2314 = vmatpush.bf16.msra.mxu0 %v2306
        %2315 = vmatpush.bf16.msra.mxu0 %v2295
        %2316 = vmatmul.bf16.gmra.mxu0 %v2300
        %v2317 = vpop.f32.mrf.mxu0
        %v2318 = vadd.f32 0.0, %v2317
        %v2319 = vpop.f32.mrf.mxu0
        %v2320 = vadd.f32 0.0, %v2319
        %2321 = vmatmul.bf16.gmra.mxu0 %v2303
        %v2322 = vpop.f32.mrf.mxu0
        %v2323 = vadd.f32 0.0, %v2322
        %v2324 = vpop.f32.mrf.mxu0
        %2325 = vdwg.mxu0
        %2329 = vrot.lane.b32.xlu0 %v2018, 16
        %v2330 = vpop.permute.xlu0 %2329
        %2331 = vrot.lane.b32.xlu0 %v2020, 16
        %v2332 = vpop.permute.xlu0 %2331
        %2333 = vrot.lane.b32.xlu0 %v2023, 16
        %v2334 = vpop.permute.xlu0 %2333
        %2341 = vrot.lane.b32.xlu0 %v2168, 32
        %v2342 = vpop.permute.xlu0 %2341
        %2343 = vrot.lane.b32.xlu0 %v2170, 32
        %v2344 = vpop.permute.xlu0 %2343
        %2345 = vrot.lane.b32.xlu0 %v2173, 32
        %v2346 = vpop.permute.xlu0 %2345
        %2353 = vrot.lane.b32.xlu0 %v2318, 48
        %v2354 = vpop.permute.xlu0 %2353
        %2355 = vrot.lane.b32.xlu0 %v2320, 48
        %v2356 = vpop.permute.xlu0 %2355
        %2357 = vrot.lane.b32.xlu0 %v2323, 48
        %v2358 = vpop.permute.xlu0 %2357
        %v2362 = vsel %vm1078, %v1868, %v2330
        %v2363 = vsel %vm1078, %v1870, %v2332
        %v2364 = vsel %vm1078, %v1873, %v2334
        %v2365 = vsel %vm1713, %v2362, %v2342
        %v2366 = vsel %vm1713, %v2363, %v2344
        %v2367 = vsel %vm1713, %v2364, %v2346
        %v2368 = vsel %vm1717, %v2365, %v2354
        %v2369 = vsel %vm1717, %v2366, %v2356
        %v2370 = vsel %vm1717, %v2367, %v2358
        %v2371 = vpack.c.bf16 %v1719, %v1718
        %v2372 = vpack.c.bf16 %v2368, %v1720
        %v2373 = vpack.c.bf16 %v2370, %v2369
        %v2374 = vld [vmem:[%s415] sm:$0xf]
        %v2375 = vld [vmem:[%s415 + $0x4] sm:$0xf]
        %v2376 = vld [vmem:[%s415 + $0x8] sm:$0xf]
        %v2377 = vld [vmem:[%s415 + $0xc] sm:$0xf]
        %v2378 = vld [vmem:[%s415 + $0x10] sm:$0xf]
        %v2379 = vld [vmem:[%s415 + $0x14] sm:$0xf]
        %v2380 = vld [vmem:[%s415 + $0x18] sm:$0xf]
        %v2381 = vld [vmem:[%s415 + $0x1c] sm:$0xf]
        %v2382 = vperm.slane %v791, 3
        %v2391 = vunpack.c.l.b16 %v2374
        %v2392 = vunpack.c.l.b16 %v2375
        %v2393 = vunpack.c.l.b16 %v2376
        %v2394 = vunpack.c.l.b16 %v2377
        %v2395 = vunpack.c.l.b16 %v2378
        %v2396 = vunpack.c.l.b16 %v2379
        %v2397 = vunpack.c.l.b16 %v2380
        %v2398 = vunpack.c.l.b16 %v2381
        %v2399 = vpack.c.b16 %v2392, %v2391
        %v2400 = vpack.c.b16 %v2394, %v2393
        %v2401 = vpack.c.b16 %v2396, %v2395
        %v2402 = vpack.c.b16 %v2398, %v2397
        %v2408 = vsel %vm793, %v2371, 0
        %v2411 = vsel %vm793, %v2372, 0
        %v2414 = vsel %vm793, %v2373, 0
        %2416 = vmatpush.bf16.msra.mxu0 0
        %2417 = vmatpush.bf16.msra.mxu0 0
        %2418 = vmatpush.bf16.msra.mxu0 0
        %2419 = vmatpush.bf16.msra.mxu0 0
        %2420 = vmatpush.bf16.msra.mxu0 %v2402
        %2421 = vmatpush.bf16.msra.mxu0 %v2401
        %2422 = vmatpush.bf16.msra.mxu0 %v2400
        %2423 = vmatpush.bf16.msra.mxu0 %v2399
        %2424 = vmatmul.bf16.gmra.mxu0 %v2408
        %v2425 = vpop.f32.mrf.mxu0
        %v2426 = vadd.f32 %v2382, %v2425
        %v2427 = vpop.f32.mrf.mxu0
        %v2428 = vadd.f32 %v2382, %v2427
        %2429 = vmatmul.bf16.gmra.mxu0 %v2411
        %v2430 = vpop.f32.mrf.mxu0
        %v2431 = vadd.f32 %v2382, %v2430
        %v2432 = vpop.f32.mrf.mxu0
        %v2433 = vadd.f32 %v2382, %v2432
        %2434 = vmatmul.bf16.gmra.mxu0 %v2414
        %v2435 = vpop.f32.mrf.mxu0
        %v2436 = vadd.f32 %v2382, %v2435
        %v2437 = vpop.f32.mrf.mxu0
        %v2438 = vadd.f32 %v2382, %v2437
        %2439 = vdwg.mxu0
        %v2440 = vadd.f32 %v785, %v2426
        %v2441 = vadd.f32 %v786, %v2428
        %v2442 = vadd.f32 %v787, %v2431
        %v2443 = vadd.f32 %v788, %v2433
        %v2444 = vadd.f32 %v789, %v2436
        %v2445 = vadd.f32 %v790, %v2438
        %v2446 = vsel %vm793, %v2440, 0.0
        %2447 = vadd.xlane.f32.xlu0 %v2446
        %v2448 = vpop.xlane.xlu0 %2447
        %v2449 = vsel %vm793, %v2441, 0.0
        %2450 = vadd.xlane.f32.xlu0 %v2449
        %v2451 = vpop.xlane.xlu0 %2450
        %v2452 = vsel %vm793, %v2442, 0.0
        %2453 = vadd.xlane.f32.xlu0 %v2452
        %v2454 = vpop.xlane.xlu0 %2453
        %v2455 = vsel %vm793, %v2443, 0.0
        %2456 = vadd.xlane.f32.xlu0 %v2455
        %v2457 = vpop.xlane.xlu0 %2456
        %v2458 = vsel %vm793, %v2444, 0.0
        %2459 = vadd.xlane.f32.xlu0 %v2458
        %v2460 = vpop.xlane.xlu0 %2459
        %v2461 = vsel %vm793, %v2445, 0.0
        %2462 = vadd.xlane.f32.xlu0 %v2461
        %v2463 = vpop.xlane.xlu0 %2462
        %v2464 = vmul.f32 %v2448, %v818
        %v2465 = vmul.f32 %v2451, %v818
        %v2466 = vmul.f32 %v2454, %v818
        %v2467 = vmul.f32 %v2457, %v818
        %v2468 = vmul.f32 %v2460, %v818
        %v2469 = vmul.f32 %v2463, %v818
        %v2470 = vsub.f32 %v2440, %v2464
        %v2471 = vsub.f32 %v2441, %v2465
        %v2472 = vsub.f32 %v2442, %v2466
        %v2473 = vsub.f32 %v2443, %v2467
        %v2474 = vsub.f32 %v2444, %v2468
        %v2475 = vsub.f32 %v2445, %v2469
        %v2476 = vmul.f32 %v2470, %v2470
        %v2477 = vmul.f32 %v2471, %v2471
        %v2478 = vmul.f32 %v2472, %v2472
        %v2479 = vmul.f32 %v2473, %v2473
        %v2480 = vmul.f32 %v2474, %v2474
        %v2481 = vmul.f32 %v2475, %v2475
        %v2482 = vsel %vm793, %v2476, 0.0
        %2483 = vadd.xlane.f32.xlu0 %v2482
        %v2484 = vpop.xlane.xlu0 %2483
        %v2485 = vsel %vm793, %v2477, 0.0
        %2486 = vadd.xlane.f32.xlu0 %v2485
        %v2487 = vpop.xlane.xlu0 %2486
        %v2488 = vsel %vm793, %v2478, 0.0
        %2489 = vadd.xlane.f32.xlu0 %v2488
        %v2490 = vpop.xlane.xlu0 %2489
        %v2491 = vsel %vm793, %v2479, 0.0
        %2492 = vadd.xlane.f32.xlu0 %v2491
        %v2493 = vpop.xlane.xlu0 %2492
        %v2494 = vsel %vm793, %v2480, 0.0
        %2495 = vadd.xlane.f32.xlu0 %v2494
        %v2496 = vpop.xlane.xlu0 %2495
        %v2497 = vsel %vm793, %v2481, 0.0
        %2498 = vadd.xlane.f32.xlu0 %v2497
        %v2499 = vpop.xlane.xlu0 %2498
        %v2500 = vmul.f32 %v2484, %v818
        %v2501 = vmul.f32 %v2487, %v818
        %v2502 = vmul.f32 %v2490, %v818
        %v2503 = vmul.f32 %v2493, %v818
        %v2504 = vmul.f32 %v2496, %v818
        %v2505 = vmul.f32 %v2499, %v818
        %v2506 = vadd.f32 %v2500, 1e-05
        %v2507 = vadd.f32 %v2501, 1e-05
        %v2508 = vadd.f32 %v2502, 1e-05
        %v2509 = vadd.f32 %v2503, 1e-05
        %v2510 = vadd.f32 %v2504, 1e-05
        %v2511 = vadd.f32 %v2505, 1e-05
        %v2512 = vrsqrt.pop %v2506
        %v2513 = vmul.f32 %v2512, %v2506
        %v2514 = vmul.f32 %v2513, %v2512
        %v2515 = vmul.f32 0.5, %v2514
        %v2516 = vsub.f32 1.5, %v2515
        %v2517 = vmul.f32 %v2512, %v2516
        %vm2518 = vweird.f32 %v2506
        %vm2519 = vweird.f32 %v2512
        %vm2520 = vmor %vm2518, %vm2519
        %v2521 = vsel %vm2520, %v2512, %v2517
        %v2522 = vrsqrt.pop %v2507
        %v2523 = vmul.f32 %v2522, %v2507
        %v2524 = vmul.f32 %v2523, %v2522
        %v2525 = vmul.f32 0.5, %v2524
        %v2526 = vsub.f32 1.5, %v2525
        %v2527 = vmul.f32 %v2522, %v2526
        %vm2528 = vweird.f32 %v2507
        %vm2529 = vweird.f32 %v2522
        %vm2530 = vmor %vm2528, %vm2529
        %v2531 = vsel %vm2530, %v2522, %v2527
        %v2532 = vrsqrt.pop %v2508
        %v2533 = vmul.f32 %v2532, %v2508
        %v2534 = vmul.f32 %v2533, %v2532
        %v2535 = vmul.f32 0.5, %v2534
        %v2536 = vsub.f32 1.5, %v2535
        %v2537 = vmul.f32 %v2532, %v2536
        %vm2538 = vweird.f32 %v2508
        %vm2539 = vweird.f32 %v2532
        %vm2540 = vmor %vm2538, %vm2539
        %v2541 = vsel %vm2540, %v2532, %v2537
        %v2542 = vrsqrt.pop %v2509
        %v2543 = vmul.f32 %v2542, %v2509
        %v2544 = vmul.f32 %v2543, %v2542
        %v2545 = vmul.f32 0.5, %v2544
        %v2546 = vsub.f32 1.5, %v2545
        %v2547 = vmul.f32 %v2542, %v2546
        %vm2548 = vweird.f32 %v2509
        %vm2549 = vweird.f32 %v2542
        %vm2550 = vmor %vm2548, %vm2549
        %v2551 = vsel %vm2550, %v2542, %v2547
        %v2552 = vrsqrt.pop %v2510
        %v2553 = vmul.f32 %v2552, %v2510
        %v2554 = vmul.f32 %v2553, %v2552
        %v2555 = vmul.f32 0.5, %v2554
        %v2556 = vsub.f32 1.5, %v2555
        %v2557 = vmul.f32 %v2552, %v2556
        %vm2558 = vweird.f32 %v2510
        %vm2559 = vweird.f32 %v2552
        %vm2560 = vmor %vm2558, %vm2559
        %v2561 = vsel %vm2560, %v2552, %v2557
        %v2562 = vrsqrt.pop %v2511
        %v2563 = vmul.f32 %v2562, %v2511
        %v2564 = vmul.f32 %v2563, %v2562
        %v2565 = vmul.f32 0.5, %v2564
        %v2566 = vsub.f32 1.5, %v2565
        %v2567 = vmul.f32 %v2562, %v2566
        %vm2568 = vweird.f32 %v2511
        %vm2569 = vweird.f32 %v2562
        %vm2570 = vmor %vm2568, %vm2569
        %v2571 = vsel %vm2570, %v2562, %v2567
        %v2572 = vmul.f32 %v2470, %v2521
        %v2573 = vmul.f32 %v2471, %v2531
        %v2574 = vmul.f32 %v2472, %v2541
        %v2575 = vmul.f32 %v2473, %v2551
        %v2576 = vmul.f32 %v2474, %v2561
        %v2577 = vmul.f32 %v2475, %v2571
        %v2578 = vperm.slane %v791, 4
        %v2579 = vmul.f32 %v2572, %v2578
        %v2580 = vmul.f32 %v2573, %v2578
        %v2581 = vmul.f32 %v2574, %v2578
        %v2582 = vmul.f32 %v2575, %v2578
        %v2583 = vmul.f32 %v2576, %v2578
        %v2584 = vmul.f32 %v2577, %v2578
        %v2585 = vperm.slane %v791, 5
        %v2586 = vadd.f32 %v2579, %v2585
        %v2587 = vadd.f32 %v2580, %v2585
        %v2588 = vadd.f32 %v2581, %v2585
        %v2589 = vadd.f32 %v2582, %v2585
        %v2590 = vadd.f32 %v2583, %v2585
        %v2591 = vadd.f32 %v2584, %v2585
        %v2592 = vpack.c.bf16 %v2587, %v2586
        %v2593 = vpack.c.bf16 %v2589, %v2588
        %v2594 = vpack.c.bf16 %v2591, %v2590
        %v2595 = vld [vmem:[%s420] sm:$0xff]
        %v2596 = vld [vmem:[%s420 + $0x8] sm:$0xff]
        %v2597 = vld [vmem:[%s420 + $0x10] sm:$0xff]
        %v2598 = vld [vmem:[%s420 + $0x18] sm:$0xff]
        %v2599 = vld [vmem:[%s420 + $0x20] sm:$0xff]
        %v2600 = vld [vmem:[%s420 + $0x28] sm:$0xff]
        %v2601 = vld [vmem:[%s420 + $0x30] sm:$0xff]
        %v2602 = vld [vmem:[%s420 + $0x38] sm:$0xff]
        %v2603 = vperm.slane %v791, 6
        %v2604 = vperm.slane %v792, 6
        %v2613 = vunpack.c.l.b16 %v2595
        %v2614 = vunpack.c.h.b16 %v2595
        %v2615 = vunpack.c.l.b16 %v2596
        %v2616 = vunpack.c.h.b16 %v2596
        %v2617 = vunpack.c.l.b16 %v2597
        %v2618 = vunpack.c.h.b16 %v2597
        %v2619 = vunpack.c.l.b16 %v2598
        %v2620 = vunpack.c.h.b16 %v2598
        %v2621 = vunpack.c.l.b16 %v2599
        %v2622 = vunpack.c.h.b16 %v2599
        %v2623 = vunpack.c.l.b16 %v2600
        %v2624 = vunpack.c.h.b16 %v2600
        %v2625 = vunpack.c.l.b16 %v2601
        %v2626 = vunpack.c.h.b16 %v2601
        %v2627 = vunpack.c.l.b16 %v2602
        %v2628 = vunpack.c.h.b16 %v2602
        %v2629 = vpack.c.b16 %v2615, %v2613
        %v2630 = vpack.c.b16 %v2616, %v2614
        %v2631 = vpack.c.b16 %v2619, %v2617
        %v2632 = vpack.c.b16 %v2620, %v2618
        %v2633 = vpack.c.b16 %v2623, %v2621
        %v2634 = vpack.c.b16 %v2624, %v2622
        %v2635 = vpack.c.b16 %v2627, %v2625
        %v2636 = vpack.c.b16 %v2628, %v2626
        %v2646 = vsel %vm793, %v2592, 0
        %v2649 = vsel %vm793, %v2593, 0
        %v2652 = vsel %vm793, %v2594, 0
        %2654 = vmatpush.bf16.msra.mxu0 0
        %2655 = vmatpush.bf16.msra.mxu0 0
        %2656 = vmatpush.bf16.msra.mxu0 0
        %2657 = vmatpush.bf16.msra.mxu0 0
        %2658 = vmatpush.bf16.msra.mxu0 %v2635
        %2659 = vmatpush.bf16.msra.mxu0 %v2633
        %2660 = vmatpush.bf16.msra.mxu0 %v2631
        %2661 = vmatpush.bf16.msra.mxu0 %v2629
        %2662 = vmatmul.bf16.gmra.mxu0 %v2646
        %v2663 = vpop.f32.mrf.mxu0
        %v2664 = vadd.f32 %v2603, %v2663
        %v2665 = vpop.f32.mrf.mxu0
        %v2666 = vadd.f32 %v2603, %v2665
        %2667 = vmatmul.bf16.gmra.mxu0 %v2649
        %v2668 = vpop.f32.mrf.mxu0
        %v2669 = vadd.f32 %v2603, %v2668
        %v2670 = vpop.f32.mrf.mxu0
        %v2671 = vadd.f32 %v2603, %v2670
        %2672 = vmatmul.bf16.gmra.mxu0 %v2652
        %v2673 = vpop.f32.mrf.mxu0
        %v2674 = vadd.f32 %v2603, %v2673
        %v2675 = vpop.f32.mrf.mxu0
        %v2676 = vadd.f32 %v2603, %v2675
        %2677 = vdwg.mxu0
        %2678 = vmatpush.bf16.msra.mxu0 0
        %2679 = vmatpush.bf16.msra.mxu0 0
        %2680 = vmatpush.bf16.msra.mxu0 0
        %2681 = vmatpush.bf16.msra.mxu0 0
        %2682 = vmatpush.bf16.msra.mxu0 %v2636
        %2683 = vmatpush.bf16.msra.mxu0 %v2634
        %2684 = vmatpush.bf16.msra.mxu0 %v2632
        %2685 = vmatpush.bf16.msra.mxu0 %v2630
        %2686 = vmatmul.bf16.gmra.mxu0 %v2646
        %v2687 = vpop.f32.mrf.mxu0
        %v2688 = vadd.f32 %v2604, %v2687
        %v2689 = vpop.f32.mrf.mxu0
        %v2690 = vadd.f32 %v2604, %v2689
        %2691 = vmatmul.bf16.gmra.mxu0 %v2649
        %v2692 = vpop.f32.mrf.mxu0
        %v2693 = vadd.f32 %v2604, %v2692
        %v2694 = vpop.f32.mrf.mxu0
        %v2695 = vadd.f32 %v2604, %v2694
        %2696 = vmatmul.bf16.gmra.mxu0 %v2652
        %v2697 = vpop.f32.mrf.mxu0
        %v2698 = vadd.f32 %v2604, %v2697
        %v2699 = vpop.f32.mrf.mxu0
        %v2700 = vadd.f32 %v2604, %v2699
        %2701 = vdwg.mxu0
        %v2702 = vmul.f32 %v2664, 0.851
        %v2703 = vmul.f32 %v2688, 0.851
        %v2704 = vmul.f32 %v2666, 0.851
        %v2705 = vmul.f32 %v2690, 0.851
        %v2706 = vmul.f32 %v2669, 0.851
        %v2707 = vmul.f32 %v2693, 0.851
        %v2708 = vmul.f32 %v2671, 0.851
        %v2709 = vmul.f32 %v2695, 0.851
        %v2710 = vmul.f32 %v2674, 0.851
        %v2711 = vmul.f32 %v2698, 0.851
        %v2712 = vmul.f32 %v2676, 0.851
        %v2713 = vmul.f32 %v2700, 0.851
        %v2714 = vtanh.pop %v2702
        %v2715 = vtanh.pop %v2703
        %v2716 = vtanh.pop %v2704
        %v2717 = vtanh.pop %v2705
        %v2718 = vtanh.pop %v2706
        %v2719 = vtanh.pop %v2707
        %v2720 = vtanh.pop %v2708
        %v2721 = vtanh.pop %v2709
        %v2722 = vtanh.pop %v2710
        %v2723 = vtanh.pop %v2711
        %v2724 = vtanh.pop %v2712
        %v2725 = vtanh.pop %v2713
        %v2726 = vadd.f32 %v2714, 1.0
        %v2727 = vadd.f32 %v2715, 1.0
        %v2728 = vadd.f32 %v2716, 1.0
        %v2729 = vadd.f32 %v2717, 1.0
        %v2730 = vadd.f32 %v2718, 1.0
        %v2731 = vadd.f32 %v2719, 1.0
        %v2732 = vadd.f32 %v2720, 1.0
        %v2733 = vadd.f32 %v2721, 1.0
        %v2734 = vadd.f32 %v2722, 1.0
        %v2735 = vadd.f32 %v2723, 1.0
        %v2736 = vadd.f32 %v2724, 1.0
        %v2737 = vadd.f32 %v2725, 1.0
        %v2738 = vmul.f32 %v2726, 0.5
        %v2739 = vmul.f32 %v2727, 0.5
        %v2740 = vmul.f32 %v2728, 0.5
        %v2741 = vmul.f32 %v2729, 0.5
        %v2742 = vmul.f32 %v2730, 0.5
        %v2743 = vmul.f32 %v2731, 0.5
        %v2744 = vmul.f32 %v2732, 0.5
        %v2745 = vmul.f32 %v2733, 0.5
        %v2746 = vmul.f32 %v2734, 0.5
        %v2747 = vmul.f32 %v2735, 0.5
        %v2748 = vmul.f32 %v2736, 0.5
        %v2749 = vmul.f32 %v2737, 0.5
        %v2750 = vmul.f32 %v2664, %v2738
        %v2751 = vmul.f32 %v2688, %v2739
        %v2752 = vmul.f32 %v2666, %v2740
        %v2753 = vmul.f32 %v2690, %v2741
        %v2754 = vmul.f32 %v2669, %v2742
        %v2755 = vmul.f32 %v2693, %v2743
        %v2756 = vmul.f32 %v2671, %v2744
        %v2757 = vmul.f32 %v2695, %v2745
        %v2758 = vmul.f32 %v2674, %v2746
        %v2759 = vmul.f32 %v2698, %v2747
        %v2760 = vmul.f32 %v2676, %v2748
        %v2761 = vmul.f32 %v2700, %v2749
        %v2762 = vpack.c.bf16 %v2752, %v2750
        %v2763 = vpack.c.bf16 %v2753, %v2751
        %v2764 = vpack.c.bf16 %v2756, %v2754
        %v2765 = vpack.c.bf16 %v2757, %v2755
        %v2766 = vpack.c.bf16 %v2760, %v2758
        %v2767 = vpack.c.bf16 %v2761, %v2759
        %v2768 = vld [vmem:[%s425] sm:$0xf]
        %v2769 = vld [vmem:[%s425 + $0x4] sm:$0xf]
        %v2770 = vld [vmem:[%s425 + $0x8] sm:$0xf]
        %v2771 = vld [vmem:[%s425 + $0xc] sm:$0xf]
        %v2772 = vld [vmem:[%s425 + $0x10] sm:$0xf]
        %v2773 = vld [vmem:[%s425 + $0x14] sm:$0xf]
        %v2774 = vld [vmem:[%s425 + $0x18] sm:$0xf]
        %v2775 = vld [vmem:[%s425 + $0x1c] sm:$0xf]
        %v2776 = vld [vmem:[%s425 + $0x20] sm:$0xf]
        %v2777 = vld [vmem:[%s425 + $0x24] sm:$0xf]
        %v2778 = vld [vmem:[%s425 + $0x28] sm:$0xf]
        %v2779 = vld [vmem:[%s425 + $0x2c] sm:$0xf]
        %v2780 = vld [vmem:[%s425 + $0x30] sm:$0xf]
        %v2781 = vld [vmem:[%s425 + $0x34] sm:$0xf]
        %v2782 = vld [vmem:[%s425 + $0x38] sm:$0xf]
        %v2783 = vld [vmem:[%s425 + $0x3c] sm:$0xf]
        %v2784 = vld [vmem:[%s425 + $0x40] sm:$0xf]
        %v2785 = vld [vmem:[%s425 + $0x44] sm:$0xf]
        %v2786 = vld [vmem:[%s425 + $0x48] sm:$0xf]
        %v2787 = vld [vmem:[%s425 + $0x4c] sm:$0xf]
        %v2788 = vld [vmem:[%s425 + $0x50] sm:$0xf]
        %v2789 = vld [vmem:[%s425 + $0x54] sm:$0xf]
        %v2790 = vld [vmem:[%s425 + $0x58] sm:$0xf]
        %v2791 = vld [vmem:[%s425 + $0x5c] sm:$0xf]
        %v2792 = vld [vmem:[%s425 + $0x60] sm:$0xf]
        %v2793 = vld [vmem:[%s425 + $0x64] sm:$0xf]
        %v2794 = vld [vmem:[%s425 + $0x68] sm:$0xf]
        %v2795 = vld [vmem:[%s425 + $0x6c] sm:$0xf]
        %v2796 = vld [vmem:[%s425 + $0x70] sm:$0xf]
        %v2797 = vld [vmem:[%s425 + $0x74] sm:$0xf]
        %v2798 = vld [vmem:[%s425 + $0x78] sm:$0xf]
        %v2799 = vld [vmem:[%s425 + $0x7c] sm:$0xf]
        %v2832 = vunpack.c.l.b16 %v2768
        %v2833 = vunpack.c.l.b16 %v2769
        %v2834 = vunpack.c.l.b16 %v2770
        %v2835 = vunpack.c.l.b16 %v2771
        %v2836 = vunpack.c.l.b16 %v2772
        %v2837 = vunpack.c.l.b16 %v2773
        %v2838 = vunpack.c.l.b16 %v2774
        %v2839 = vunpack.c.l.b16 %v2775
        %v2840 = vunpack.c.l.b16 %v2776
        %v2841 = vunpack.c.l.b16 %v2777
        %v2842 = vunpack.c.l.b16 %v2778
        %v2843 = vunpack.c.l.b16 %v2779
        %v2844 = vunpack.c.l.b16 %v2780
        %v2845 = vunpack.c.l.b16 %v2781
        %v2846 = vunpack.c.l.b16 %v2782
        %v2847 = vunpack.c.l.b16 %v2783
        %v2848 = vunpack.c.l.b16 %v2784
        %v2849 = vunpack.c.l.b16 %v2785
        %v2850 = vunpack.c.l.b16 %v2786
        %v2851 = vunpack.c.l.b16 %v2787
        %v2852 = vunpack.c.l.b16 %v2788
        %v2853 = vunpack.c.l.b16 %v2789
        %v2854 = vunpack.c.l.b16 %v2790
        %v2855 = vunpack.c.l.b16 %v2791
        %v2856 = vunpack.c.l.b16 %v2792
        %v2857 = vunpack.c.l.b16 %v2793
        %v2858 = vunpack.c.l.b16 %v2794
        %v2859 = vunpack.c.l.b16 %v2795
        %v2860 = vunpack.c.l.b16 %v2796
        %v2861 = vunpack.c.l.b16 %v2797
        %v2862 = vunpack.c.l.b16 %v2798
        %v2863 = vunpack.c.l.b16 %v2799
        %v2864 = vpack.c.b16 %v2833, %v2832
        %v2865 = vpack.c.b16 %v2835, %v2834
        %v2866 = vpack.c.b16 %v2837, %v2836
        %v2867 = vpack.c.b16 %v2839, %v2838
        %v2868 = vpack.c.b16 %v2841, %v2840
        %v2869 = vpack.c.b16 %v2843, %v2842
        %v2870 = vpack.c.b16 %v2845, %v2844
        %v2871 = vpack.c.b16 %v2847, %v2846
        %v2872 = vpack.c.b16 %v2849, %v2848
        %v2873 = vpack.c.b16 %v2851, %v2850
        %v2874 = vpack.c.b16 %v2853, %v2852
        %v2875 = vpack.c.b16 %v2855, %v2854
        %v2876 = vpack.c.b16 %v2857, %v2856
        %v2877 = vpack.c.b16 %v2859, %v2858
        %v2878 = vpack.c.b16 %v2861, %v2860
        %v2879 = vpack.c.b16 %v2863, %v2862
        %2896 = vmatpush.bf16.msra.mxu0 %v2871
        %2897 = vmatpush.bf16.msra.mxu0 %v2870
        %2898 = vmatpush.bf16.msra.mxu0 %v2869
        %2899 = vmatpush.bf16.msra.mxu0 %v2868
        %2900 = vmatpush.bf16.msra.mxu0 %v2867
        %2901 = vmatpush.bf16.msra.mxu0 %v2866
        %2902 = vmatpush.bf16.msra.mxu0 %v2865
        %2903 = vmatpush.bf16.msra.mxu0 %v2864
        %2904 = vmatmul.bf16.gmra.mxu0 %v2762
        %v2905 = vpop.f32.mrf.mxu0
        %v2906 = vadd.f32 0.0, %v2905
        %v2907 = vpop.f32.mrf.mxu0
        %v2908 = vadd.f32 0.0, %v2907
        %2909 = vmatmul.bf16.gmra.mxu0 %v2764
        %v2910 = vpop.f32.mrf.mxu0
        %v2911 = vadd.f32 0.0, %v2910
        %v2912 = vpop.f32.mrf.mxu0
        %v2913 = vadd.f32 0.0, %v2912
        %2914 = vmatmul.bf16.gmra.mxu0 %v2766
        %v2915 = vpop.f32.mrf.mxu0
        %v2916 = vadd.f32 0.0, %v2915
        %v2917 = vpop.f32.mrf.mxu0
        %v2918 = vadd.f32 0.0, %v2917
        %2919 = vdwg.mxu0
        %2920 = vmatpush.bf16.msra.mxu0 %v2879
        %2921 = vmatpush.bf16.msra.mxu0 %v2878
        %2922 = vmatpush.bf16.msra.mxu0 %v2877
        %2923 = vmatpush.bf16.msra.mxu0 %v2876
        %2924 = vmatpush.bf16.msra.mxu0 %v2875
        %2925 = vmatpush.bf16.msra.mxu0 %v2874
        %2926 = vmatpush.bf16.msra.mxu0 %v2873
        %2927 = vmatpush.bf16.msra.mxu0 %v2872
        %2928 = vmatmul.bf16.gmra.mxu0 %v2763
        %v2929 = vpop.f32.mrf.mxu0
        %v2930 = vadd.f32 %v2906, %v2929
        %v2931 = vpop.f32.mrf.mxu0
        %v2932 = vadd.f32 %v2908, %v2931
        %2933 = vmatmul.bf16.gmra.mxu0 %v2765
        %v2934 = vpop.f32.mrf.mxu0
        %v2935 = vadd.f32 %v2911, %v2934
        %v2936 = vpop.f32.mrf.mxu0
        %v2937 = vadd.f32 %v2913, %v2936
        %2938 = vmatmul.bf16.gmra.mxu0 %v2767
        %v2939 = vpop.f32.mrf.mxu0
        %v2940 = vadd.f32 %v2916, %v2939
        %v2941 = vpop.f32.mrf.mxu0
        %v2942 = vadd.f32 %v2918, %v2941
        %2943 = vdwg.mxu0
        %v2944 = vadd.f32 %v2440, %v2930
        %v2945 = vadd.f32 %v2441, %v2932
        %v2946 = vadd.f32 %v2442, %v2935
        %v2947 = vadd.f32 %v2443, %v2937
        %v2948 = vadd.f32 %v2444, %v2940
        %v2949 = vadd.f32 %v2445, %v2942
        %v2950 = vperm.slane %v791, 7
        %v2951 = vadd.f32 %v2944, %v2950
        %v2952 = vadd.f32 %v2945, %v2950
        %v2953 = vadd.f32 %v2946, %v2950
        %v2954 = vadd.f32 %v2947, %v2950
        %v2955 = vadd.f32 %v2948, %v2950
        %v2956 = vadd.f32 %v2949, %v2950
        %2957 = vst.msk [vmem:[#allocation2] sm:$0xff] %vm793, %v2951
        %2958 = vst.msk [vmem:[#allocation2 + $0x8] sm:$0xff] %vm793, %v2952
        %2959 = vst.msk [vmem:[#allocation2 + $0x10] sm:$0xff] %vm793, %v2953
        %2960 = vst.msk [vmem:[#allocation2 + $0x18] sm:$0xff] %vm793, %v2954
        %2961 = vst.msk [vmem:[#allocation2 + $0x20] sm:$0xff] %vm793, %v2955
        %2962 = vst.msk [vmem:[#allocation2 + $0x28] sm:$0xff] %vm793, %v2956
        %p2963 = scmp.eq.s32.totalorder %s22, 1
        // Predicated region
        $region65: #{tpu_custom_call.1} parent=59 // pred_check
          %p2964 = pneg %p2963
        $region66: #{tpu_custom_call.1} parent=59 // pred_check_branch
          %2966 = sbr.rel (%p2964) target = $region68
        $region67: #{tpu_custom_call.1} parent=59 // pred_region
          %v2968 = vrot.slane %v2954, 7
          %vm2970 = vcmask 1040384
          %v2971 = vsel %vm2970, %v2951, %v2968
          %v2972 = vld [vmem:[%s3 + $0x2] sm:$0x1]
          %v2973 = vld [vmem:[%s3 + $0x3] sm:$0x1]
          %vm2974 = vcmask 517120
          %v2975 = vsel %vm2974, %v2971, 0.0
          %2976 = vadd.xlane.f32.xlu0 %v2975
          %v2977 = vpop.xlane.xlu0 %2976
          %v2978 = vmul.f32 %v2977, %v818
          %v2979 = vsub.f32 %v2971, %v2978
          %v2980 = vmul.f32 %v2979, %v2979
          %v2981 = vsel %vm2974, %v2980, 0.0
          %2982 = vadd.xlane.f32.xlu0 %v2981
          %v2983 = vpop.xlane.xlu0 %2982
          %v2984 = vmul.f32 %v2983, %v818
          %v2985 = vadd.f32 %v2984, 1e-05
          %v2986 = vrsqrt.pop %v2985
          %v2987 = vmul.f32 %v2986, %v2985
          %v2988 = vmul.f32 %v2987, %v2986
          %v2989 = vmul.f32 0.5, %v2988
          %v2990 = vsub.f32 1.5, %v2989
          %v2991 = vmul.f32 %v2986, %v2990
          %vm2992 = vweird.f32 %v2985
          %vm2993 = vweird.f32 %v2986
          %vm2994 = vmor %vm2992, %vm2993
          %v2995 = vsel %vm2994, %v2986, %v2991
          %v2996 = vmul.f32 %v2979, %v2995
          %v2997 = vperm.slane %v2972, 0
          %v2998 = vmul.f32 %v2996, %v2997
          %v2999 = vperm.slane %v2973, 0
          %v3000 = vadd.f32 %v2998, %v2999
          %v3001 = vpack.c.bf16 %v3000, %v3000
          %v3002 = vld [vmem:[%s9] sm:$0xf]
          %v3003 = vld [vmem:[%s9 + $0x4] sm:$0xf]
          %v3004 = vld [vmem:[%s9 + $0x8] sm:$0xf]
          %v3005 = vld [vmem:[%s9 + $0xc] sm:$0xf]
          %v3006 = vld [vmem:[%s9 + $0x10] sm:$0xf]
          %v3007 = vld [vmem:[%s9 + $0x14] sm:$0xf]
          %v3008 = vld [vmem:[%s9 + $0x18] sm:$0xf]
          %v3009 = vld [vmem:[%s9 + $0x1c] sm:$0xf]
          %v3018 = vunpack.c.l.b16 %v3002
          %v3019 = vunpack.c.l.b16 %v3003
          %v3020 = vunpack.c.l.b16 %v3004
          %v3021 = vunpack.c.l.b16 %v3005
          %v3022 = vunpack.c.l.b16 %v3006
          %v3023 = vunpack.c.l.b16 %v3007
          %v3024 = vunpack.c.l.b16 %v3008
          %v3025 = vunpack.c.l.b16 %v3009
          %v3026 = vpack.c.b16 %v3019, %v3018
          %v3027 = vpack.c.b16 %v3021, %v3020
          %v3028 = vpack.c.b16 %v3023, %v3022
          %v3029 = vpack.c.b16 %v3025, %v3024
          %v3035 = vsel %vm793, %v3001, 0
          %3037 = vmatpush.bf16.msra.mxu0 0
          %3038 = vmatpush.bf16.msra.mxu0 0
          %3039 = vmatpush.bf16.msra.mxu0 0
          %3040 = vmatpush.bf16.msra.mxu0 0
          %3041 = vmatpush.bf16.msra.mxu0 %v3029
          %3042 = vmatpush.bf16.msra.mxu0 %v3028
          %3043 = vmatpush.bf16.msra.mxu0 %v3027
          %3044 = vmatpush.bf16.msra.mxu0 %v3026
          %3045 = vmatmul.bf16.gmra.mxu0 %v3035
          %v3046 = vpop.f32.mrf.mxu0
          %v3047 = vadd.f32 0.0, %v3046
          %v3048 = vpop.f32.mrf.mxu0
          %3049 = vdwg.mxu0
          %vm3050 = vcmask 254976
          %3051 = vst.msk [vmem:[#allocation3] sm:$0x3] %vm3050, %v3047
        $region68: #{tpu_custom_call.1} parent=59 // pred_fallthru
          _
        // Predicated region
        $region69: #{tpu_custom_call.1} parent=59 // pred_check
          %p3052 = pneg %p270
        $region70: #{tpu_custom_call.1} parent=59 // pred_check_branch
          %3054 = sbr.rel (%p3052) target = $region72
        $region71: #{tpu_custom_call.1} parent=59 // pred_region
          %3056 = vsyncadd [#allocation4], 0
          %s3058 = sshll.u32 [#allocation3], 4
          %s3059 = int_to_ptr.vmem [resolvable:$true] %s3058
          %s3060 = sshll.u32 %s10, 4
          %s3061 = int_to_ptr.hbm [resolvable:$true] %s3060
          %3063 = dma.vmem_to_hbm [thread:$0]  %s3059, 32, %s3061, [#allocation4]
        $region72: #{tpu_custom_call.1} parent=59 // pred_fallthru
          _
        // Predicated region
        $region73: #{tpu_custom_call.1} parent=59 // pred_check
          %p3064 = pneg %p270
        $region74: #{tpu_custom_call.1} parent=59 // pred_check_branch
          %3066 = sbr.rel (%p3064) target = $region76
        $region75: #{tpu_custom_call.1} parent=59 // pred_region
          %3068 = dma.done [#allocation4], 32
        $region76: #{tpu_custom_call.1} parent=59 // pred_fallthru
          _
      $region60: #{tpu_custom_call.1} parent=5 // pred_fallthru
        _
      %p3069 = scmp.le.s32.totalorder 2, %s17
      // Predicated region
      $region77: #{tpu_custom_call.1} parent=5 // pred_check
        %p3070 = pneg %p3069
      $region78: #{tpu_custom_call.1} parent=5 // pred_check_branch
        %3072 = sbr.rel (%p3070) target = $region80
      $region79: #{tpu_custom_call.1} parent=5 // pred_region
        %s3073 = ssub.s32 %s17, 2
      $region80: #{tpu_custom_call.1} parent=5 // pred_fallthru
        _
    $region6: #{tpu_custom_call.1} parent=1 // loop_footer
      %s21 = sadd.s32 1, %s17
    $region7: #{tpu_custom_call.1} parent=1 // loop_footer_branch
      %16 = sbr.rel target = $region3
    $region8: #{tpu_custom_call.1} parent=1 // loop_exit
      _
    %3074 = vsyncpa [#allocation4], 1
    %s3075 = scalar_lea.sflag [#allocation4], 1
    %3076 = vsyncpa %s3075, 1

</llo_original>
